<compile_context>
chip_gen: v7x
topology: tpu7x:2x2x1
jax: 0.10.0
libtpu: 0.0.40
codegen_flags: <defaults>
</compile_context>

<pallas_src>
import functools
import math

import jax
import jax.numpy as jnp
from jax.experimental import pallas as pl
from jax.experimental.pallas import tpu as pltpu

_LANE = 128   # lane width: feature dims padded to this
_MXU = 256    # v6e/v7x MXU tile: node/contraction dim padded to this


def _round_up(x, m):
    return (x + m - 1) // m * m


def _vmem_capacity_bytes():
    """Physical VMEM of the current chip; conservative (v7x) fallback."""
    try:
        info = pltpu.get_tpu_info()
        cap = getattr(info, "vmem_capacity_bytes", None)
        if cap:
            return int(cap)
    except Exception:
        pass
    return 64 << 20  # v7x per-TensorCore VMEM (most restrictive generation)


def _gin_fused_kernel(adj_ref, x_ref, b_ref, *w_and_out_refs,
                      n_layers, dims_p, encoder_mode, compute_dtype):
    """Whole network in one grid step: activations never leave VMEM/vregs."""
    w_refs = w_and_out_refs[:n_layers]
    o_ref = w_and_out_refs[-1]

    adj = adj_ref[...]           # (Np, Np), compute_dtype, includes (1+eps)*I
    biases = b_ref[...]          # (L, Fmax_p), f32
    h = x_ref[...]               # (Np, F0p), compute_dtype

    out = None
    for i in range(n_layers):    # unrolled at trace time
        fi_p, fo_p = dims_p[i], dims_p[i + 1]
        w = w_refs[i][...]                         # (fi_p, fo_p), compute_dtype
        b = biases[i, :fo_p].astype(jnp.float32)   # (fo_p,)

        # GINConv sum aggregation + Linear.  Associativity lets us contract the
        # dominant Np^2 matmul with the narrower of (fi_p, fo_p); the operand
        # of the second matmul is re-cast so BOTH matmuls run bf16 on the MXU
        # with f32 accumulation.
        if fi_p <= fo_p:
            agg = jnp.dot(adj, h, preferred_element_type=jnp.float32)
            out = jnp.dot(agg.astype(compute_dtype), w,
                          preferred_element_type=jnp.float32)
        else:
            hw = jnp.dot(h, w, preferred_element_type=jnp.float32)
            out = jnp.dot(adj, hw.astype(compute_dtype),
                          preferred_element_type=jnp.float32)

        out = out + b[None, :]                      # bias in f32
        if i != n_layers - 1 or encoder_mode:
            out = jnp.maximum(out, 0.0)             # ReLU in f32
        if i != n_layers - 1:
            h = out.astype(compute_dtype)           # next layer's MXU operand

    o_ref[...] = out.astype(o_ref.dtype)


def gin_forward(adj, params, features, *, eps=0.0, encoder_mode=False,
                compute_dtype=jnp.bfloat16, out_dtype=None):
    """Fused GIN forward.

    adj:      [N, N] dense adjacency, adj[i, j] = 1 iff node j messages node i.
    params:   list of (w [in, out], b [out]) (w is PyTorch weight.T).
    features: [N, in_feats].
    Returns:  [N, out_feats_last] in out_dtype (defaults to features.dtype).
    """
    N, F0 = features.shape
    n_layers = len(params)
    dims = [F0] + [w.shape[1] for (w, _) in params]
    out_dtype = out_dtype or features.dtype

    # Pad: node axis to 256 (MXU-friendly contraction dim), features to 128.
    Np = _round_up(N, _MXU)
    dims_p = [_round_up(d, _LANE) for d in dims]
    fmax_p = max(dims_p[1:])

    # ---- host-side padding (zero padding is inert) --------------------------
    # Fold the (1+eps)*I self term into the adjacency; entries {0, 1, 1+eps}
    # are exact in bf16 for eps=0.
    adj_p = jnp.zeros((Np, Np), compute_dtype)
    adj_p = adj_p.at[:N, :N].set(
        (adj + (1.0 + eps) * jnp.eye(N, dtype=adj.dtype)).astype(compute_dtype))

    x_p = jnp.zeros((Np, dims_p[0]), compute_dtype)
    x_p = x_p.at[:N, :F0].set(features.astype(compute_dtype))

    b_pack = jnp.zeros((n_layers, fmax_p), jnp.float32)   # biases stay f32
    w_list = []
    for i, (w, b) in enumerate(params):
        in_, out_ = w.shape
        w_p = jnp.zeros((dims_p[i], dims_p[i + 1]), compute_dtype)
        w_p = w_p.at[:in_, :out_].set(w.astype(compute_dtype))
        w_list.append(w_p)
        b_pack = b_pack.at[i, :out_].set(b.astype(jnp.float32))

    inputs = [adj_p, x_p, b_pack] + w_list

    # ---- VMEM budget / residency check --------------------------------------
    in_bytes = sum(int(math.prod(a.shape)) * a.dtype.itemsize for a in inputs)
    out_bytes = Np * dims_p[-1] * jnp.dtype(out_dtype).itemsize
    resident = in_bytes + out_bytes                       # single-buffered
    vmem_cap = _vmem_capacity_bytes()
    if resident + (4 << 20) > vmem_cap:
        # TODO(synk): tiled large-graph fallback (stream adjacency tiles).
        raise NotImplementedError(
            f"padded graph needs ~{resident >> 20} MiB VMEM, chip has "
            f"{vmem_cap >> 20} MiB; tiled fallback not implemented")
    vmem_limit = int(min(vmem_cap, max(2 * resident + (8 << 20), 32 << 20)))

    # ---- cost estimate -------------------------------------------------------
    flops = 0
    for i in range(n_layers):
        fi_p, fo_p = dims_p[i], dims_p[i + 1]
        flops += 2 * Np * Np * min(fi_p, fo_p) + 2 * Np * fi_p * fo_p
    cost = pl.CostEstimate(flops=flops, transcendentals=0,
                           bytes_accessed=in_bytes + out_bytes)

    kernel = functools.partial(
        _gin_fused_kernel, n_layers=n_layers, dims_p=tuple(dims_p),
        encoder_mode=encoder_mode, compute_dtype=compute_dtype)

    def _call(pipeline_mode):
        def spec(shape):
            kwargs = {}
            if pipeline_mode is not None:
                kwargs["pipeline_mode"] = pipeline_mode
            return pl.BlockSpec(shape, lambda i: (0, 0), **kwargs)

        return pl.pallas_call(
            kernel,
            out_shape=jax.ShapeDtypeStruct((Np, dims_p[-1]), out_dtype),
            grid_spec=pltpu.PrefetchScalarGridSpec(
                num_scalar_prefetch=0,
                grid=(1,),  # whole padded graph + all layers in one step
                in_specs=[spec(a.shape) for a in inputs],
                out_specs=spec((Np, dims_p[-1])),
            ),
            compiler_params=pltpu.CompilerParams(
                dimension_semantics=("arbitrary",),
                vmem_limit_bytes=vmem_limit,
            ),
            cost_estimate=cost,
        )(*inputs)

    try:
        # grid=(1,): double buffering can never overlap anything, so request a
        # single buffer per operand (halves resident VMEM; adjacency dominates).
        out_p = _call(pl.Buffered(1))
        out_p = jax.block_until_ready(out_p)
    except Exception:
        out_p = _call(None)   # fall back to default buffering

    return out_p[:N, :dims[-1]]


def init_gin_params(key, in_feats, hidden_lst, dtype=jnp.float32):
    """Deterministic params; shapes match nn.Linear(in_, out_) per layer
    (stored as [in, out] == PyTorch weight.T)."""
    dims = [in_feats] + list(hidden_lst)
    params = []
    for in_, out_ in zip(dims[:-1], dims[1:]):
        kw, kb, key = jax.random.split(key, 3)
        bound = 1.0 / jnp.sqrt(in_)
        w = jax.random.uniform(kw, (in_, out_), dtype, -bound, bound)
        b = jax.random.uniform(kb, (out_,), dtype, -bound, bound)
        params.append((w, b))
    return params


def gin_reference(adj, params, features, *, eps=0.0, encoder_mode=False,
                  matmul_dtype=jnp.float32):
    """Pure-JAX reference.  With matmul_dtype=bf16 it mirrors the kernel's
    casting points (bf16 MXU operands, f32 accumulation, f32 bias/ReLU)."""
    md = matmul_dtype
    n_layers = len(params)
    N = adj.shape[0]
    adj_c = (adj + (1.0 + eps) * jnp.eye(N, dtype=adj.dtype)).astype(md)
    h = features.astype(md)
    out = None
    for i, (w, b) in enumerate(params):
        agg = jnp.dot(adj_c, h, preferred_element_type=jnp.float32).astype(md)
        out = jnp.dot(agg, w.astype(md), preferred_element_type=jnp.float32)
        out = out + b.astype(jnp.float32)
        if i != n_layers - 1 or encoder_mode:
            out = jnp.maximum(out, 0.0)
        h = out.astype(md)
    return out


if __name__ == "__main__":
    key = jax.random.PRNGKey(0)
    k_adj, k_x, k_p = jax.random.split(key, 3)

    n_nodes = 16
    in_feats = 32
    hidden_lst = [64, 48, 16]

    # Deterministic random graph: adj[i, j] = 1 iff node j messages node i.
    adj = jax.random.bernoulli(k_adj, 0.3, (n_nodes, n_nodes)).astype(jnp.float32)
    x = jax.random.normal(k_x, (n_nodes, in_feats), jnp.float32)
    params = init_gin_params(k_p, in_feats, hidden_lst)

    out = gin_forward(adj, params, x)          # bf16 operands, f32 accumulation
    out = jax.block_until_ready(out)

    # Reference run at matching (bf16-matmul / f32-accumulate) precision.
    ref = gin_reference(adj, params, x, matmul_dtype=jnp.bfloat16)
    assert out.shape == (n_nodes, hidden_lst[-1])
    assert out.dtype == x.dtype
    assert jnp.allclose(out, ref, atol=1e-3, rtol=1e-3)

    print("KERNEL_OK")
</pallas_src>

<mosaic_0001>
module attributes {stable_mosaic.version = 11 : i64} {
  func.func @_gin_fused_kernel(%arg0: i32, %arg1: memref<256x256xbf16, #tpu.memory_space<vmem>>, %arg2: memref<256x128xbf16, #tpu.memory_space<vmem>>, %arg3: memref<3x128xf32, #tpu.memory_space<vmem>>, %arg4: memref<128x128xbf16, #tpu.memory_space<vmem>>, %arg5: memref<128x128xbf16, #tpu.memory_space<vmem>>, %arg6: memref<128x128xbf16, #tpu.memory_space<vmem>>, %arg7: memref<256x128xf32, #tpu.memory_space<vmem>>) attributes {dimension_semantics = [#tpu.dimension_semantics<arbitrary>], iteration_bounds = array<i64: 1>, scalar_prefetch = 0 : i64, scratch_operands = 0 : i64, tpu.core_type = #tpu.core_type<tc>, window_params = [{pipeline_mode = #tpu.pipeline_mode<synchronous>, transform_indices = @transform_0, window_bounds = array<i64: 256, 256>}, {pipeline_mode = #tpu.pipeline_mode<synchronous>, transform_indices = @transform_1, window_bounds = array<i64: 256, 128>}, {pipeline_mode = #tpu.pipeline_mode<synchronous>, transform_indices = @transform_2, window_bounds = array<i64: 3, 128>}, {pipeline_mode = #tpu.pipeline_mode<synchronous>, transform_indices = @transform_3, window_bounds = array<i64: 128, 128>}, {pipeline_mode = #tpu.pipeline_mode<synchronous>, transform_indices = @transform_4, window_bounds = array<i64: 128, 128>}, {pipeline_mode = #tpu.pipeline_mode<synchronous>, transform_indices = @transform_5, window_bounds = array<i64: 128, 128>}, {pipeline_mode = #tpu.pipeline_mode<synchronous>, transform_indices = @transform_6, window_bounds = array<i64: 256, 128>}]} {
    %c0 = arith.constant 0 : index
    %c0_0 = arith.constant 0 : index
    %0 = vector.load %arg1[%c0, %c0_0] : memref<256x256xbf16, #tpu.memory_space<vmem>>, vector<256x256xbf16>
    %c0_1 = arith.constant 0 : index
    %c0_2 = arith.constant 0 : index
    %1 = vector.load %arg3[%c0_1, %c0_2] : memref<3x128xf32, #tpu.memory_space<vmem>>, vector<3x128xf32>
    %c0_3 = arith.constant 0 : index
    %c0_4 = arith.constant 0 : index
    %2 = vector.load %arg2[%c0_3, %c0_4] : memref<256x128xbf16, #tpu.memory_space<vmem>>, vector<256x128xbf16>
    %c0_5 = arith.constant 0 : index
    %c0_6 = arith.constant 0 : index
    %3 = vector.load %arg4[%c0_5, %c0_6] : memref<128x128xbf16, #tpu.memory_space<vmem>>, vector<128x128xbf16>
    %4 = vector.extract_strided_slice %1 {offsets = [0, 0], sizes = [1, 128], strides = [1, 1]} : vector<3x128xf32> to vector<1x128xf32>
    %5 = vector.shape_cast %4 : vector<1x128xf32> to vector<128xf32>
    %cst = arith.constant dense<0.000000e+00> : vector<256x128xf32>
    %6 = tpu.matmul %0, %2, %cst {dimension_numbers = #tpu.dot_dimension_numbers<[1], [0], [0], [1], [0, 0, 1, 1], [], []>} : vector<256x256xbf16>, vector<256x128xbf16>, vector<256x128xf32> -> vector<256x128xf32>
    %7 = arith.truncf %6 : vector<256x128xf32> to vector<256x128xbf16>
    %cst_7 = arith.constant dense<0.000000e+00> : vector<256x128xf32>
    %8 = tpu.matmul %7, %3, %cst_7 {dimension_numbers = #tpu.dot_dimension_numbers<[1], [0], [0], [1], [0, 0, 1, 1], [], []>} : vector<256x128xbf16>, vector<128x128xbf16>, vector<256x128xf32> -> vector<256x128xf32>
    %9 = vector.shape_cast %5 : vector<128xf32> to vector<1x128xf32>
    %10 = vector.broadcast %9 : vector<1x128xf32> to vector<256x128xf32>
    %11 = arith.addf %8, %10 : vector<256x128xf32>
    %cst_8 = arith.constant 0.000000e+00 : f32
    %12 = vector.broadcast %cst_8 : f32 to vector<256x128xf32>
    %13 = arith.maximumf %11, %12 : vector<256x128xf32>
    %14 = arith.truncf %13 : vector<256x128xf32> to vector<256x128xbf16>
    %c0_9 = arith.constant 0 : index
    %c0_10 = arith.constant 0 : index
    %15 = vector.load %arg5[%c0_9, %c0_10] : memref<128x128xbf16, #tpu.memory_space<vmem>>, vector<128x128xbf16>
    %16 = vector.extract_strided_slice %1 {offsets = [1, 0], sizes = [1, 128], strides = [1, 1]} : vector<3x128xf32> to vector<1x128xf32>
    %17 = vector.shape_cast %16 : vector<1x128xf32> to vector<128xf32>
    %cst_11 = arith.constant dense<0.000000e+00> : vector<256x128xf32>
    %18 = tpu.matmul %0, %14, %cst_11 {dimension_numbers = #tpu.dot_dimension_numbers<[1], [0], [0], [1], [0, 0, 1, 1], [], []>} : vector<256x256xbf16>, vector<256x128xbf16>, vector<256x128xf32> -> vector<256x128xf32>
    %19 = arith.truncf %18 : vector<256x128xf32> to vector<256x128xbf16>
    %cst_12 = arith.constant dense<0.000000e+00> : vector<256x128xf32>
    %20 = tpu.matmul %19, %15, %cst_12 {dimension_numbers = #tpu.dot_dimension_numbers<[1], [0], [0], [1], [0, 0, 1, 1], [], []>} : vector<256x128xbf16>, vector<128x128xbf16>, vector<256x128xf32> -> vector<256x128xf32>
    %21 = vector.shape_cast %17 : vector<128xf32> to vector<1x128xf32>
    %22 = vector.broadcast %21 : vector<1x128xf32> to vector<256x128xf32>
    %23 = arith.addf %20, %22 : vector<256x128xf32>
    %cst_13 = arith.constant 0.000000e+00 : f32
    %24 = vector.broadcast %cst_13 : f32 to vector<256x128xf32>
    %25 = arith.maximumf %23, %24 : vector<256x128xf32>
    %26 = arith.truncf %25 : vector<256x128xf32> to vector<256x128xbf16>
    %c0_14 = arith.constant 0 : index
    %c0_15 = arith.constant 0 : index
    %27 = vector.load %arg6[%c0_14, %c0_15] : memref<128x128xbf16, #tpu.memory_space<vmem>>, vector<128x128xbf16>
    %28 = vector.extract_strided_slice %1 {offsets = [2, 0], sizes = [1, 128], strides = [1, 1]} : vector<3x128xf32> to vector<1x128xf32>
    %29 = vector.shape_cast %28 : vector<1x128xf32> to vector<128xf32>
    %cst_16 = arith.constant dense<0.000000e+00> : vector<256x128xf32>
    %30 = tpu.matmul %0, %26, %cst_16 {dimension_numbers = #tpu.dot_dimension_numbers<[1], [0], [0], [1], [0, 0, 1, 1], [], []>} : vector<256x256xbf16>, vector<256x128xbf16>, vector<256x128xf32> -> vector<256x128xf32>
    %31 = arith.truncf %30 : vector<256x128xf32> to vector<256x128xbf16>
    %cst_17 = arith.constant dense<0.000000e+00> : vector<256x128xf32>
    %32 = tpu.matmul %31, %27, %cst_17 {dimension_numbers = #tpu.dot_dimension_numbers<[1], [0], [0], [1], [0, 0, 1, 1], [], []>} : vector<256x128xbf16>, vector<128x128xbf16>, vector<256x128xf32> -> vector<256x128xf32>
    %33 = vector.shape_cast %29 : vector<128xf32> to vector<1x128xf32>
    %34 = vector.broadcast %33 : vector<1x128xf32> to vector<256x128xf32>
    %35 = arith.addf %32, %34 : vector<256x128xf32>
    %c0_18 = arith.constant 0 : index
    %c0_19 = arith.constant 0 : index
    %36 = vector.load %arg7[%c0_18, %c0_19] : memref<256x128xf32, #tpu.memory_space<vmem>>, vector<256x128xf32>
    tpu.vector_store %arg7[%c0_18, %c0_19], %35 {strides = array<i32>} : memref<256x128xf32, #tpu.memory_space<vmem>>, vector<256x128xf32>,
    return
  }
  func.func @transform_0(%arg0: i32) -> (i32, i32) {
    %c0_i32 = arith.constant 0 : i32
    %c0_i32_0 = arith.constant 0 : i32
    %c0_i32_1 = arith.constant 0 : i32
    return %c0_i32, %c0_i32_0 : i32, i32
  }
  func.func @transform_1(%arg0: i32) -> (i32, i32) {
    %c0_i32 = arith.constant 0 : i32
    %c0_i32_0 = arith.constant 0 : i32
    %c0_i32_1 = arith.constant 0 : i32
    return %c0_i32, %c0_i32_0 : i32, i32
  }
  func.func @transform_2(%arg0: i32) -> (i32, i32) {
    %c0_i32 = arith.constant 0 : i32
    %c0_i32_0 = arith.constant 0 : i32
    %c0_i32_1 = arith.constant 0 : i32
    return %c0_i32, %c0_i32_0 : i32, i32
  }
  func.func @transform_3(%arg0: i32) -> (i32, i32) {
    %c0_i32 = arith.constant 0 : i32
    %c0_i32_0 = arith.constant 0 : i32
    %c0_i32_1 = arith.constant 0 : i32
    return %c0_i32, %c0_i32_0 : i32, i32
  }
  func.func @transform_4(%arg0: i32) -> (i32, i32) {
    %c0_i32 = arith.constant 0 : i32
    %c0_i32_0 = arith.constant 0 : i32
    %c0_i32_1 = arith.constant 0 : i32
    return %c0_i32, %c0_i32_0 : i32, i32
  }
  func.func @transform_5(%arg0: i32) -> (i32, i32) {
    %c0_i32 = arith.constant 0 : i32
    %c0_i32_0 = arith.constant 0 : i32
    %c0_i32_1 = arith.constant 0 : i32
    return %c0_i32, %c0_i32_0 : i32, i32
  }
  func.func @transform_6(%arg0: i32) -> (i32, i32) {
    %c0_i32 = arith.constant 0 : i32
    %c0_i32_0 = arith.constant 0 : i32
    %c0_i32_1 = arith.constant 0 : i32
    return %c0_i32, %c0_i32_0 : i32, i32
  }
}

module attributes {stable_mosaic.version = 11 : i64} {
  func.func @_gin_fused_kernel(%arg0: i32, %arg1: memref<256x256xbf16, #tpu.memory_space<vmem>>, %arg2: memref<256x128xbf16, #tpu.memory_space<vmem>>, %arg3: memref<3x128xf32, #tpu.memory_space<vmem>>, %arg4: memref<128x128xbf16, #tpu.memory_space<vmem>>, %arg5: memref<128x128xbf16, #tpu.memory_space<vmem>>, %arg6: memref<128x128xbf16, #tpu.memory_space<vmem>>, %arg7: memref<256x128xf32, #tpu.memory_space<vmem>>) attributes {dimension_semantics = [#tpu.dimension_semantics<arbitrary>], iteration_bounds = array<i64: 1>, scalar_prefetch = 0 : i64, scratch_operands = 0 : i64, tpu.core_type = #tpu.core_type<tc>, window_params = [{pipeline_mode = #tpu.pipeline_mode<synchronous>, transform_indices = @transform_0, window_bounds = array<i64: 256, 256>}, {pipeline_mode = #tpu.pipeline_mode<synchronous>, transform_indices = @transform_1, window_bounds = array<i64: 256, 128>}, {pipeline_mode = #tpu.pipeline_mode<synchronous>, transform_indices = @transform_2, window_bounds = array<i64: 3, 128>}, {pipeline_mode = #tpu.pipeline_mode<synchronous>, transform_indices = @transform_3, window_bounds = array<i64: 128, 128>}, {pipeline_mode = #tpu.pipeline_mode<synchronous>, transform_indices = @transform_4, window_bounds = array<i64: 128, 128>}, {pipeline_mode = #tpu.pipeline_mode<synchronous>, transform_indices = @transform_5, window_bounds = array<i64: 128, 128>}, {pipeline_mode = #tpu.pipeline_mode<synchronous>, transform_indices = @transform_6, window_bounds = array<i64: 256, 128>}]} {
    %c0 = arith.constant 0 : index
    %c0_0 = arith.constant 0 : index
    %0 = vector.load %arg1[%c0, %c0_0] : memref<256x256xbf16, #tpu.memory_space<vmem>>, vector<256x256xbf16>
    %c0_1 = arith.constant 0 : index
    %c0_2 = arith.constant 0 : index
    %1 = vector.load %arg3[%c0_1, %c0_2] : memref<3x128xf32, #tpu.memory_space<vmem>>, vector<3x128xf32>
    %c0_3 = arith.constant 0 : index
    %c0_4 = arith.constant 0 : index
    %2 = vector.load %arg2[%c0_3, %c0_4] : memref<256x128xbf16, #tpu.memory_space<vmem>>, vector<256x128xbf16>
    %c0_5 = arith.constant 0 : index
    %c0_6 = arith.constant 0 : index
    %3 = vector.load %arg4[%c0_5, %c0_6] : memref<128x128xbf16, #tpu.memory_space<vmem>>, vector<128x128xbf16>
    %4 = vector.extract_strided_slice %1 {offsets = [0, 0], sizes = [1, 128], strides = [1, 1]} : vector<3x128xf32> to vector<1x128xf32>
    %5 = vector.shape_cast %4 : vector<1x128xf32> to vector<128xf32>
    %cst = arith.constant dense<0.000000e+00> : vector<256x128xf32>
    %6 = tpu.matmul %0, %2, %cst {dimension_numbers = #tpu.dot_dimension_numbers<[1], [0], [0], [1], [0, 0, 1, 1], [], []>} : vector<256x256xbf16>, vector<256x128xbf16>, vector<256x128xf32> -> vector<256x128xf32>
    %7 = arith.truncf %6 : vector<256x128xf32> to vector<256x128xbf16>
    %cst_7 = arith.constant dense<0.000000e+00> : vector<256x128xf32>
    %8 = tpu.matmul %7, %3, %cst_7 {dimension_numbers = #tpu.dot_dimension_numbers<[1], [0], [0], [1], [0, 0, 1, 1], [], []>} : vector<256x128xbf16>, vector<128x128xbf16>, vector<256x128xf32> -> vector<256x128xf32>
    %9 = vector.shape_cast %5 : vector<128xf32> to vector<1x128xf32>
    %10 = vector.broadcast %9 : vector<1x128xf32> to vector<256x128xf32>
    %11 = arith.addf %8, %10 : vector<256x128xf32>
    %cst_8 = arith.constant 0.000000e+00 : f32
    %12 = vector.broadcast %cst_8 : f32 to vector<256x128xf32>
    %13 = arith.maximumf %11, %12 : vector<256x128xf32>
    %14 = arith.truncf %13 : vector<256x128xf32> to vector<256x128xbf16>
    %c0_9 = arith.constant 0 : index
    %c0_10 = arith.constant 0 : index
    %15 = vector.load %arg5[%c0_9, %c0_10] : memref<128x128xbf16, #tpu.memory_space<vmem>>, vector<128x128xbf16>
    %16 = vector.extract_strided_slice %1 {offsets = [1, 0], sizes = [1, 128], strides = [1, 1]} : vector<3x128xf32> to vector<1x128xf32>
    %17 = vector.shape_cast %16 : vector<1x128xf32> to vector<128xf32>
    %cst_11 = arith.constant dense<0.000000e+00> : vector<256x128xf32>
    %18 = tpu.matmul %0, %14, %cst_11 {dimension_numbers = #tpu.dot_dimension_numbers<[1], [0], [0], [1], [0, 0, 1, 1], [], []>} : vector<256x256xbf16>, vector<256x128xbf16>, vector<256x128xf32> -> vector<256x128xf32>
    %19 = arith.truncf %18 : vector<256x128xf32> to vector<256x128xbf16>
    %cst_12 = arith.constant dense<0.000000e+00> : vector<256x128xf32>
    %20 = tpu.matmul %19, %15, %cst_12 {dimension_numbers = #tpu.dot_dimension_numbers<[1], [0], [0], [1], [0, 0, 1, 1], [], []>} : vector<256x128xbf16>, vector<128x128xbf16>, vector<256x128xf32> -> vector<256x128xf32>
    %21 = vector.shape_cast %17 : vector<128xf32> to vector<1x128xf32>
    %22 = vector.broadcast %21 : vector<1x128xf32> to vector<256x128xf32>
    %23 = arith.addf %20, %22 : vector<256x128xf32>
    %cst_13 = arith.constant 0.000000e+00 : f32
    %24 = vector.broadcast %cst_13 : f32 to vector<256x128xf32>
    %25 = arith.maximumf %23, %24 : vector<256x128xf32>
    %26 = arith.truncf %25 : vector<256x128xf32> to vector<256x128xbf16>
    %c0_14 = arith.constant 0 : index
    %c0_15 = arith.constant 0 : index
    %27 = vector.load %arg6[%c0_14, %c0_15] : memref<128x128xbf16, #tpu.memory_space<vmem>>, vector<128x128xbf16>
    %28 = vector.extract_strided_slice %1 {offsets = [2, 0], sizes = [1, 128], strides = [1, 1]} : vector<3x128xf32> to vector<1x128xf32>
    %29 = vector.shape_cast %28 : vector<1x128xf32> to vector<128xf32>
    %cst_16 = arith.constant dense<0.000000e+00> : vector<256x128xf32>
    %30 = tpu.matmul %0, %26, %cst_16 {dimension_numbers = #tpu.dot_dimension_numbers<[1], [0], [0], [1], [0, 0, 1, 1], [], []>} : vector<256x256xbf16>, vector<256x128xbf16>, vector<256x128xf32> -> vector<256x128xf32>
    %31 = arith.truncf %30 : vector<256x128xf32> to vector<256x128xbf16>
    %cst_17 = arith.constant dense<0.000000e+00> : vector<256x128xf32>
    %32 = tpu.matmul %31, %27, %cst_17 {dimension_numbers = #tpu.dot_dimension_numbers<[1], [0], [0], [1], [0, 0, 1, 1], [], []>} : vector<256x128xbf16>, vector<128x128xbf16>, vector<256x128xf32> -> vector<256x128xf32>
    %33 = vector.shape_cast %29 : vector<128xf32> to vector<1x128xf32>
    %34 = vector.broadcast %33 : vector<1x128xf32> to vector<256x128xf32>
    %35 = arith.addf %32, %34 : vector<256x128xf32>
    %c0_18 = arith.constant 0 : index
    %c0_19 = arith.constant 0 : index
    %36 = vector.load %arg7[%c0_18, %c0_19] : memref<256x128xf32, #tpu.memory_space<vmem>>, vector<256x128xf32>
    tpu.vector_store %arg7[%c0_18, %c0_19], %35 {strides = array<i32>} : memref<256x128xf32, #tpu.memory_space<vmem>>, vector<256x128xf32>,
    return
  }
  func.func @transform_0(%arg0: i32) -> (i32, i32) {
    %c0_i32 = arith.constant 0 : i32
    %c0_i32_0 = arith.constant 0 : i32
    %c0_i32_1 = arith.constant 0 : i32
    return %c0_i32, %c0_i32_0 : i32, i32
  }
  func.func @transform_1(%arg0: i32) -> (i32, i32) {
    %c0_i32 = arith.constant 0 : i32
    %c0_i32_0 = arith.constant 0 : i32
    %c0_i32_1 = arith.constant 0 : i32
    return %c0_i32, %c0_i32_0 : i32, i32
  }
  func.func @transform_2(%arg0: i32) -> (i32, i32) {
    %c0_i32 = arith.constant 0 : i32
    %c0_i32_0 = arith.constant 0 : i32
    %c0_i32_1 = arith.constant 0 : i32
    return %c0_i32, %c0_i32_0 : i32, i32
  }
  func.func @transform_3(%arg0: i32) -> (i32, i32) {
    %c0_i32 = arith.constant 0 : i32
    %c0_i32_0 = arith.constant 0 : i32
    %c0_i32_1 = arith.constant 0 : i32
    return %c0_i32, %c0_i32_0 : i32, i32
  }
  func.func @transform_4(%arg0: i32) -> (i32, i32) {
    %c0_i32 = arith.constant 0 : i32
    %c0_i32_0 = arith.constant 0 : i32
    %c0_i32_1 = arith.constant 0 : i32
    return %c0_i32, %c0_i32_0 : i32, i32
  }
  func.func @transform_5(%arg0: i32) -> (i32, i32) {
    %c0_i32 = arith.constant 0 : i32
    %c0_i32_0 = arith.constant 0 : i32
    %c0_i32_1 = arith.constant 0 : i32
    return %c0_i32, %c0_i32_0 : i32, i32
  }
  func.func @transform_6(%arg0: i32) -> (i32, i32) {
    %c0_i32 = arith.constant 0 : i32
    %c0_i32_0 = arith.constant 0 : i32
    %c0_i32_1 = arith.constant 0 : i32
    return %c0_i32, %c0_i32_0 : i32, i32
  }
}

</mosaic_0001>

<llo_original>
// kernel: tpu_custom_call.1
$region0: #{tpu_custom_call.1}
  #allocation0 [shape = 'u32[]', space=smem, size = 0x4, offset = 0x4, fixed_abs, tag = 'smem constant byte address 0x4 - core index']
  #allocation1 [shape = 'u32[144,128]{1,0:T(1,128)}', space=vmem, size = 0x12000, scoped, tag = 'internal scratch']
  %s0 = inlined_call_operand.hbm [shape: bf16[256,256], index: 0, kind: input, shape index: {}]
  %s1 = inlined_call_operand.hbm [shape: bf16[256,128], index: 1, kind: input, shape index: {}]
  %s2 = inlined_call_operand.vmem [shape: f32[3,128], index: 2, kind: input, shape index: {}]
  %s3 = inlined_call_operand.hbm [shape: bf16[128,128], index: 3, kind: input, shape index: {}]
  %s4 = inlined_call_operand.hbm [shape: bf16[128,128], index: 4, kind: input, shape index: {}]
  %s5 = inlined_call_operand.hbm [shape: bf16[128,128], index: 5, kind: input, shape index: {}]
  %s6 = inlined_call_operand.hbm [shape: f32[256,128], index: 6, kind: output, shape index: {}]
  %s7 = sld [smem:[#allocation0]]
  $region54: #{tpu_custom_call.1} parent=0
    _
  %s9 = ssub.s32 1, %s7
  %s10 = scalar_select 0, %s9, %s7
  $region1: #{tpu_custom_call.1} parent=0
    #allocation2 [shape = 'u8[131072]{0}', space=vmem, size = 0x20000, scoped, tag = 'input window, operand 0, single buffered']
    #allocation3 [shape = 's32[1]{0}', space=sflag, size = 0x4, scoped, tag = 'scoped memory for tpu_custom_call.1']
    #allocation4 [shape = 's32[1]{0}', space=sflag, size = 0x4, scoped, tag = 'scoped memory for tpu_custom_call.1']
    #allocation5 [shape = 'u8[65536]{0}', space=vmem, size = 0x10000, scoped, tag = 'input window, operand 1, single buffered']
    #allocation6 [shape = 's32[1]{0}', space=sflag, size = 0x4, scoped, tag = 'scoped memory for tpu_custom_call.1']
    #allocation7 [shape = 'u8[32768]{0}', space=vmem, size = 0x8000, scoped, tag = 'input window, operand 3, single buffered']
    #allocation8 [shape = 'u8[32768]{0}', space=vmem, size = 0x8000, scoped, tag = 'input window, operand 4, single buffered']
    #allocation9 [shape = 's32[1]{0}', space=sflag, size = 0x4, scoped, tag = 'scoped memory for tpu_custom_call.1']
    #allocation10 [shape = 'u8[32768]{0}', space=vmem, size = 0x8000, scoped, tag = 'input window, operand 5, single buffered']
    #allocation11 [shape = 'u8[131072]{0}', space=vmem, size = 0x20000, scoped, tag = 'output window, operand 0, single buffered']
    %11 = vsyncpa [#allocation3], 0
    %12 = vsyncpa [#allocation6], 0
    %13 = vsyncpa [#allocation9], 0
    %14 = vsyncpa [#allocation4], 0
    // Predicated region
    $region2: #{tpu_custom_call.1} parent=1 // pred_check
      _
    $region3: #{tpu_custom_call.1} parent=1 // pred_check_branch
      %16 = sbr.rel (0) target = $region5
    $region4: #{tpu_custom_call.1} parent=1 // pred_region
      %s18 = ssub.s32 4096, 4096
      %19 = vsyncadd [#allocation3], %s18
      %s20 = sshll.u32 [#allocation2], 4
      %s21 = int_to_ptr.vmem [resolvable:$true] %s20
      %26 = dma.hbm_to_vmem [thread:$0]  %s0, 4096, %s21, [#allocation3], 128, 128, 8
    $region5: #{tpu_custom_call.1} parent=1 // pred_fallthru
      _
    // Predicated region
    $region6: #{tpu_custom_call.1} parent=1 // pred_check
      _
    $region7: #{tpu_custom_call.1} parent=1 // pred_check_branch
      %28 = sbr.rel (0) target = $region9
    $region8: #{tpu_custom_call.1} parent=1 // pred_region
      %s30 = ssub.s32 2048, 2048
      %31 = vsyncadd [#allocation6], %s30
      %s32 = sshll.u32 [#allocation5], 4
      %s33 = int_to_ptr.vmem [resolvable:$true] %s32
      %38 = dma.hbm_to_vmem [thread:$0]  %s1, 2048, %s33, [#allocation6], 64, 64, 4
    $region9: #{tpu_custom_call.1} parent=1 // pred_fallthru
      _
    // Predicated region
    $region10: #{tpu_custom_call.1} parent=1 // pred_check
      _
    $region11: #{tpu_custom_call.1} parent=1 // pred_check_branch
      %40 = sbr.rel (0) target = $region13
    $region12: #{tpu_custom_call.1} parent=1 // pred_region
      _
    $region13: #{tpu_custom_call.1} parent=1 // pred_fallthru
      _
    // Predicated region
    $region14: #{tpu_custom_call.1} parent=1 // pred_check
      _
    $region15: #{tpu_custom_call.1} parent=1 // pred_check_branch
      %42 = sbr.rel (0) target = $region17
    $region16: #{tpu_custom_call.1} parent=1 // pred_region
      %s44 = ssub.s32 1024, 1024
      %45 = vsyncadd [#allocation6], %s44
      %s46 = sshll.u32 [#allocation7], 4
      %s47 = int_to_ptr.vmem [resolvable:$true] %s46
      %52 = dma.hbm_to_vmem [thread:$0]  %s3, 1024, %s47, [#allocation6], 64, 64, 4
    $region17: #{tpu_custom_call.1} parent=1 // pred_fallthru
      _
    // Predicated region
    $region18: #{tpu_custom_call.1} parent=1 // pred_check
      _
    $region19: #{tpu_custom_call.1} parent=1 // pred_check_branch
      %54 = sbr.rel (0) target = $region21
    $region20: #{tpu_custom_call.1} parent=1 // pred_region
      %s56 = ssub.s32 1024, 1024
      %57 = vsyncadd [#allocation9], %s56
      %s58 = sshll.u32 [#allocation8], 4
      %s59 = int_to_ptr.vmem [resolvable:$true] %s58
      %64 = dma.hbm_to_vmem [thread:$0]  %s4, 1024, %s59, [#allocation9], 64, 64, 4
    $region21: #{tpu_custom_call.1} parent=1 // pred_fallthru
      _
    // Predicated region
    $region22: #{tpu_custom_call.1} parent=1 // pred_check
      _
    $region23: #{tpu_custom_call.1} parent=1 // pred_check_branch
      %66 = sbr.rel (0) target = $region25
    $region24: #{tpu_custom_call.1} parent=1 // pred_region
      %s68 = ssub.s32 1024, 1024
      %69 = vsyncadd [#allocation9], %s68
      %s70 = sshll.u32 [#allocation10], 4
      %s71 = int_to_ptr.vmem [resolvable:$true] %s70
      %76 = dma.hbm_to_vmem [thread:$0]  %s5, 1024, %s71, [#allocation9], 64, 64, 4
    $region25: #{tpu_custom_call.1} parent=1 // pred_fallthru
      _
    // Predicated region
    $region26: #{tpu_custom_call.1} parent=1 // pred_check
      _
    $region27: #{tpu_custom_call.1} parent=1 // pred_check_branch
      %78 = sbr.rel (0) target = $region29
    $region28: #{tpu_custom_call.1} parent=1 // pred_region
      %79 = dma.done [#allocation3], 4096
    $region29: #{tpu_custom_call.1} parent=1 // pred_fallthru
      _
    // Predicated region
    $region30: #{tpu_custom_call.1} parent=1 // pred_check
      _
    $region31: #{tpu_custom_call.1} parent=1 // pred_check_branch
      %81 = sbr.rel (0) target = $region33
    $region32: #{tpu_custom_call.1} parent=1 // pred_region
      %82 = dma.done [#allocation6], 2048
    $region33: #{tpu_custom_call.1} parent=1 // pred_fallthru
      _
    // Predicated region
    $region34: #{tpu_custom_call.1} parent=1 // pred_check
      _
    $region35: #{tpu_custom_call.1} parent=1 // pred_check_branch
      %84 = sbr.rel (0) target = $region37
    $region36: #{tpu_custom_call.1} parent=1 // pred_region
      %85 = dma.done [#allocation6], 1024
    $region37: #{tpu_custom_call.1} parent=1 // pred_fallthru
      _
    // Predicated region
    $region38: #{tpu_custom_call.1} parent=1 // pred_check
      _
    $region39: #{tpu_custom_call.1} parent=1 // pred_check_branch
      %87 = sbr.rel (0) target = $region41
    $region40: #{tpu_custom_call.1} parent=1 // pred_region
      %88 = dma.done [#allocation9], 1024
    $region41: #{tpu_custom_call.1} parent=1 // pred_fallthru
      _
    // Predicated region
    $region42: #{tpu_custom_call.1} parent=1 // pred_check
      _
    $region43: #{tpu_custom_call.1} parent=1 // pred_check_branch
      %90 = sbr.rel (0) target = $region45
    $region44: #{tpu_custom_call.1} parent=1 // pred_region
      %91 = dma.done [#allocation9], 1024
    $region45: #{tpu_custom_call.1} parent=1 // pred_fallthru
      _
    %v93 = vld [vmem:[#allocation2] sm:$0xff]
    %v94 = vld [vmem:[#allocation2 + $0x8] sm:$0xff]
    %v95 = vld [vmem:[#allocation2 + $0x10] sm:$0xff]
    %v96 = vld [vmem:[#allocation2 + $0x18] sm:$0xff]
    %v97 = vld [vmem:[#allocation2 + $0x20] sm:$0xff]
    %v98 = vld [vmem:[#allocation2 + $0x28] sm:$0xff]
    %v99 = vld [vmem:[#allocation2 + $0x30] sm:$0xff]
    %v100 = vld [vmem:[#allocation2 + $0x38] sm:$0xff]
    %v101 = vld [vmem:[#allocation2 + $0x40] sm:$0xff]
    %v102 = vld [vmem:[#allocation2 + $0x48] sm:$0xff]
    %v103 = vld [vmem:[#allocation2 + $0x50] sm:$0xff]
    %v104 = vld [vmem:[#allocation2 + $0x58] sm:$0xff]
    %v105 = vld [vmem:[#allocation2 + $0x60] sm:$0xff]
    %v106 = vld [vmem:[#allocation2 + $0x68] sm:$0xff]
    %v107 = vld [vmem:[#allocation2 + $0x70] sm:$0xff]
    %v108 = vld [vmem:[#allocation2 + $0x78] sm:$0xff]
    %v109 = vld [vmem:[#allocation2 + $0x80] sm:$0xff]
    %v110 = vld [vmem:[#allocation2 + $0x88] sm:$0xff]
    %v111 = vld [vmem:[#allocation2 + $0x90] sm:$0xff]
    %v112 = vld [vmem:[#allocation2 + $0x98] sm:$0xff]
    %v113 = vld [vmem:[#allocation2 + $0xa0] sm:$0xff]
    %v114 = vld [vmem:[#allocation2 + $0xa8] sm:$0xff]
    %v115 = vld [vmem:[#allocation2 + $0xb0] sm:$0xff]
    %v116 = vld [vmem:[#allocation2 + $0xb8] sm:$0xff]
    %v117 = vld [vmem:[#allocation2 + $0xc0] sm:$0xff]
    %v118 = vld [vmem:[#allocation2 + $0xc8] sm:$0xff]
    %v119 = vld [vmem:[#allocation2 + $0xd0] sm:$0xff]
    %v120 = vld [vmem:[#allocation2 + $0xd8] sm:$0xff]
    %v121 = vld [vmem:[#allocation2 + $0xe0] sm:$0xff]
    %v122 = vld [vmem:[#allocation2 + $0xe8] sm:$0xff]
    %v123 = vld [vmem:[#allocation2 + $0xf0] sm:$0xff]
    %v124 = vld [vmem:[#allocation2 + $0xf8] sm:$0xff]
    %v125 = vld [vmem:[%s2] sm:$0x7]
    %v126 = vld [vmem:[#allocation5] sm:$0xf]
    %v127 = vld [vmem:[#allocation5 + $0x4] sm:$0xf]
    %v128 = vld [vmem:[#allocation5 + $0x8] sm:$0xf]
    %v129 = vld [vmem:[#allocation5 + $0xc] sm:$0xf]
    %v130 = vld [vmem:[#allocation5 + $0x10] sm:$0xf]
    %v131 = vld [vmem:[#allocation5 + $0x14] sm:$0xf]
    %v132 = vld [vmem:[#allocation5 + $0x18] sm:$0xf]
    %v133 = vld [vmem:[#allocation5 + $0x1c] sm:$0xf]
    %v134 = vld [vmem:[#allocation5 + $0x20] sm:$0xf]
    %v135 = vld [vmem:[#allocation5 + $0x24] sm:$0xf]
    %v136 = vld [vmem:[#allocation5 + $0x28] sm:$0xf]
    %v137 = vld [vmem:[#allocation5 + $0x2c] sm:$0xf]
    %v138 = vld [vmem:[#allocation5 + $0x30] sm:$0xf]
    %v139 = vld [vmem:[#allocation5 + $0x34] sm:$0xf]
    %v140 = vld [vmem:[#allocation5 + $0x38] sm:$0xf]
    %v141 = vld [vmem:[#allocation5 + $0x3c] sm:$0xf]
    %v142 = vld [vmem:[#allocation5 + $0x40] sm:$0xf]
    %v143 = vld [vmem:[#allocation5 + $0x44] sm:$0xf]
    %v144 = vld [vmem:[#allocation5 + $0x48] sm:$0xf]
    %v145 = vld [vmem:[#allocation5 + $0x4c] sm:$0xf]
    %v146 = vld [vmem:[#allocation5 + $0x50] sm:$0xf]
    %v147 = vld [vmem:[#allocation5 + $0x54] sm:$0xf]
    %v148 = vld [vmem:[#allocation5 + $0x58] sm:$0xf]
    %v149 = vld [vmem:[#allocation5 + $0x5c] sm:$0xf]
    %v150 = vld [vmem:[#allocation5 + $0x60] sm:$0xf]
    %v151 = vld [vmem:[#allocation5 + $0x64] sm:$0xf]
    %v152 = vld [vmem:[#allocation5 + $0x68] sm:$0xf]
    %v153 = vld [vmem:[#allocation5 + $0x6c] sm:$0xf]
    %v154 = vld [vmem:[#allocation5 + $0x70] sm:$0xf]
    %v155 = vld [vmem:[#allocation5 + $0x74] sm:$0xf]
    %v156 = vld [vmem:[#allocation5 + $0x78] sm:$0xf]
    %v157 = vld [vmem:[#allocation5 + $0x7c] sm:$0xf]
    %v158 = vld [vmem:[#allocation7] sm:$0xf]
    %v159 = vld [vmem:[#allocation7 + $0x4] sm:$0xf]
    %v160 = vld [vmem:[#allocation7 + $0x8] sm:$0xf]
    %v161 = vld [vmem:[#allocation7 + $0xc] sm:$0xf]
    %v162 = vld [vmem:[#allocation7 + $0x10] sm:$0xf]
    %v163 = vld [vmem:[#allocation7 + $0x14] sm:$0xf]
    %v164 = vld [vmem:[#allocation7 + $0x18] sm:$0xf]
    %v165 = vld [vmem:[#allocation7 + $0x1c] sm:$0xf]
    %v166 = vld [vmem:[#allocation7 + $0x20] sm:$0xf]
    %v167 = vld [vmem:[#allocation7 + $0x24] sm:$0xf]
    %v168 = vld [vmem:[#allocation7 + $0x28] sm:$0xf]
    %v169 = vld [vmem:[#allocation7 + $0x2c] sm:$0xf]
    %v170 = vld [vmem:[#allocation7 + $0x30] sm:$0xf]
    %v171 = vld [vmem:[#allocation7 + $0x34] sm:$0xf]
    %v172 = vld [vmem:[#allocation7 + $0x38] sm:$0xf]
    %v173 = vld [vmem:[#allocation7 + $0x3c] sm:$0xf]
    %v206 = vunpack.c.l.b16 %v93
    %v207 = vunpack.c.h.b16 %v93
    %v208 = vunpack.c.l.b16 %v94
    %v209 = vunpack.c.h.b16 %v94
    %v210 = vunpack.c.l.b16 %v95
    %v211 = vunpack.c.h.b16 %v95
    %v212 = vunpack.c.l.b16 %v96
    %v213 = vunpack.c.h.b16 %v96
    %v214 = vunpack.c.l.b16 %v97
    %v215 = vunpack.c.h.b16 %v97
    %v216 = vunpack.c.l.b16 %v98
    %v217 = vunpack.c.h.b16 %v98
    %v218 = vunpack.c.l.b16 %v99
    %v219 = vunpack.c.h.b16 %v99
    %v220 = vunpack.c.l.b16 %v100
    %v221 = vunpack.c.h.b16 %v100
    %v222 = vunpack.c.l.b16 %v101
    %v223 = vunpack.c.h.b16 %v101
    %v224 = vunpack.c.l.b16 %v102
    %v225 = vunpack.c.h.b16 %v102
    %v226 = vunpack.c.l.b16 %v103
    %v227 = vunpack.c.h.b16 %v103
    %v228 = vunpack.c.l.b16 %v104
    %v229 = vunpack.c.h.b16 %v104
    %v230 = vunpack.c.l.b16 %v105
    %v231 = vunpack.c.h.b16 %v105
    %v232 = vunpack.c.l.b16 %v106
    %v233 = vunpack.c.h.b16 %v106
    %v234 = vunpack.c.l.b16 %v107
    %v235 = vunpack.c.h.b16 %v107
    %v236 = vunpack.c.l.b16 %v108
    %v237 = vunpack.c.h.b16 %v108
    %v238 = vunpack.c.l.b16 %v109
    %v239 = vunpack.c.h.b16 %v109
    %v240 = vunpack.c.l.b16 %v110
    %v241 = vunpack.c.h.b16 %v110
    %v242 = vunpack.c.l.b16 %v111
    %v243 = vunpack.c.h.b16 %v111
    %v244 = vunpack.c.l.b16 %v112
    %v245 = vunpack.c.h.b16 %v112
    %v246 = vunpack.c.l.b16 %v113
    %v247 = vunpack.c.h.b16 %v113
    %v248 = vunpack.c.l.b16 %v114
    %v249 = vunpack.c.h.b16 %v114
    %v250 = vunpack.c.l.b16 %v115
    %v251 = vunpack.c.h.b16 %v115
    %v252 = vunpack.c.l.b16 %v116
    %v253 = vunpack.c.h.b16 %v116
    %v254 = vunpack.c.l.b16 %v117
    %v255 = vunpack.c.h.b16 %v117
    %v256 = vunpack.c.l.b16 %v118
    %v257 = vunpack.c.h.b16 %v118
    %v258 = vunpack.c.l.b16 %v119
    %v259 = vunpack.c.h.b16 %v119
    %v260 = vunpack.c.l.b16 %v120
    %v261 = vunpack.c.h.b16 %v120
    %v262 = vunpack.c.l.b16 %v121
    %v263 = vunpack.c.h.b16 %v121
    %v264 = vunpack.c.l.b16 %v122
    %v265 = vunpack.c.h.b16 %v122
    %v266 = vunpack.c.l.b16 %v123
    %v267 = vunpack.c.h.b16 %v123
    %v268 = vunpack.c.l.b16 %v124
    %v269 = vunpack.c.h.b16 %v124
    %v270 = vpack.c.b16 %v208, %v206
    %v271 = vpack.c.b16 %v209, %v207
    %v272 = vpack.c.b16 %v212, %v210
    %v273 = vpack.c.b16 %v213, %v211
    %v274 = vpack.c.b16 %v216, %v214
    %v275 = vpack.c.b16 %v217, %v215
    %v276 = vpack.c.b16 %v220, %v218
    %v277 = vpack.c.b16 %v221, %v219
    %v278 = vpack.c.b16 %v224, %v222
    %v279 = vpack.c.b16 %v225, %v223
    %v280 = vpack.c.b16 %v228, %v226
    %v281 = vpack.c.b16 %v229, %v227
    %v282 = vpack.c.b16 %v232, %v230
    %v283 = vpack.c.b16 %v233, %v231
    %v284 = vpack.c.b16 %v236, %v234
    %v285 = vpack.c.b16 %v237, %v235
    %v286 = vpack.c.b16 %v240, %v238
    %v287 = vpack.c.b16 %v241, %v239
    %v288 = vpack.c.b16 %v244, %v242
    %v289 = vpack.c.b16 %v245, %v243
    %v290 = vpack.c.b16 %v248, %v246
    %v291 = vpack.c.b16 %v249, %v247
    %v292 = vpack.c.b16 %v252, %v250
    %v293 = vpack.c.b16 %v253, %v251
    %v294 = vpack.c.b16 %v256, %v254
    %v295 = vpack.c.b16 %v257, %v255
    %v296 = vpack.c.b16 %v260, %v258
    %v297 = vpack.c.b16 %v261, %v259
    %v298 = vpack.c.b16 %v264, %v262
    %v299 = vpack.c.b16 %v265, %v263
    %v300 = vpack.c.b16 %v268, %v266
    %v301 = vpack.c.b16 %v269, %v267
    %v366 = vunpack.c.l.b16 %v126
    %v367 = vunpack.c.l.b16 %v127
    %v368 = vunpack.c.l.b16 %v128
    %v369 = vunpack.c.l.b16 %v129
    %v370 = vunpack.c.l.b16 %v130
    %v371 = vunpack.c.l.b16 %v131
    %v372 = vunpack.c.l.b16 %v132
    %v373 = vunpack.c.l.b16 %v133
    %v374 = vunpack.c.l.b16 %v134
    %v375 = vunpack.c.l.b16 %v135
    %v376 = vunpack.c.l.b16 %v136
    %v377 = vunpack.c.l.b16 %v137
    %v378 = vunpack.c.l.b16 %v138
    %v379 = vunpack.c.l.b16 %v139
    %v380 = vunpack.c.l.b16 %v140
    %v381 = vunpack.c.l.b16 %v141
    %v382 = vunpack.c.l.b16 %v142
    %v383 = vunpack.c.l.b16 %v143
    %v384 = vunpack.c.l.b16 %v144
    %v385 = vunpack.c.l.b16 %v145
    %v386 = vunpack.c.l.b16 %v146
    %v387 = vunpack.c.l.b16 %v147
    %v388 = vunpack.c.l.b16 %v148
    %v389 = vunpack.c.l.b16 %v149
    %v390 = vunpack.c.l.b16 %v150
    %v391 = vunpack.c.l.b16 %v151
    %v392 = vunpack.c.l.b16 %v152
    %v393 = vunpack.c.l.b16 %v153
    %v394 = vunpack.c.l.b16 %v154
    %v395 = vunpack.c.l.b16 %v155
    %v396 = vunpack.c.l.b16 %v156
    %v397 = vunpack.c.l.b16 %v157
    %v398 = vpack.c.b16 %v367, %v366
    %v399 = vpack.c.b16 %v369, %v368
    %v400 = vpack.c.b16 %v371, %v370
    %v401 = vpack.c.b16 %v373, %v372
    %v402 = vpack.c.b16 %v375, %v374
    %v403 = vpack.c.b16 %v377, %v376
    %v404 = vpack.c.b16 %v379, %v378
    %v405 = vpack.c.b16 %v381, %v380
    %v406 = vpack.c.b16 %v383, %v382
    %v407 = vpack.c.b16 %v385, %v384
    %v408 = vpack.c.b16 %v387, %v386
    %v409 = vpack.c.b16 %v389, %v388
    %v410 = vpack.c.b16 %v391, %v390
    %v411 = vpack.c.b16 %v393, %v392
    %v412 = vpack.c.b16 %v395, %v394
    %v413 = vpack.c.b16 %v397, %v396
    %430 = vmatprep.subr.bf16.mxu0 0
    %431 = vmatpush1.bf16.msra.mxu0 %v398
    %432 = vmatprep.subr.bf16.mxu0 0
    %433 = vmatpush1.bf16.msra.mxu0 %v399
    %434 = vmatprep.subr.bf16.mxu0 0
    %435 = vmatpush1.bf16.msra.mxu0 %v400
    %436 = vmatprep.subr.bf16.mxu0 0
    %437 = vmatpush1.bf16.msra.mxu0 %v401
    %438 = vmatprep.subr.bf16.mxu0 0
    %439 = vmatpush1.bf16.msra.mxu0 %v402
    %440 = vmatprep.subr.bf16.mxu0 0
    %441 = vmatpush1.bf16.msra.mxu0 %v403
    %442 = vmatprep.subr.bf16.mxu0 0
    %443 = vmatpush1.bf16.msra.mxu0 %v404
    %444 = vmatprep.subr.bf16.mxu0 0
    %445 = vmatpush1.bf16.msra.mxu0 %v405
    %446 = vmatprep.subr.bf16.mxu0 0
    %447 = vmatpush1.bf16.msra.mxu0 %v406
    %448 = vmatprep.subr.bf16.mxu0 0
    %449 = vmatpush1.bf16.msra.mxu0 %v407
    %450 = vmatprep.subr.bf16.mxu0 0
    %451 = vmatpush1.bf16.msra.mxu0 %v408
    %452 = vmatprep.subr.bf16.mxu0 0
    %453 = vmatpush1.bf16.msra.mxu0 %v409
    %454 = vmatprep.subr.bf16.mxu0 0
    %455 = vmatpush1.bf16.msra.mxu0 %v410
    %456 = vmatprep.subr.bf16.mxu0 0
    %457 = vmatpush1.bf16.msra.mxu0 %v411
    %458 = vmatprep.subr.bf16.mxu0 0
    %459 = vmatpush1.bf16.msra.mxu0 %v412
    %460 = vmatprep.subr.bf16.mxu0 0
    %461 = vmatpush1.bf16.msra.mxu0 %v413
    %462 = vmatprep.mubr.bf16.mxu0 %v271
    %463 = vmatmul.mubr.bf16.gmra.mrb[0].mxu0 %v270
    %v464 = vpop.f32.mrb[0].mxu0
    %v465 = vadd.f32 0.0, %v464
    %v466 = vpop.f32.mrb[0].mxu0
    %v467 = vpop.f32.mrb[0].mxu0
    %v468 = vadd.f32 0.0, %v467
    %v469 = vpop.f32.mrb[0].mxu0
    %470 = vmatprep.mubr.bf16.mxu0 %v273
    %471 = vmatmul.mubr.bf16.gmra.mrb[0].mxu0 %v272
    %v472 = vpop.f32.mrb[0].mxu0
    %v473 = vadd.f32 0.0, %v472
    %v474 = vpop.f32.mrb[0].mxu0
    %v475 = vpop.f32.mrb[0].mxu0
    %v476 = vadd.f32 0.0, %v475
    %v477 = vpop.f32.mrb[0].mxu0
    %478 = vmatprep.mubr.bf16.mxu0 %v275
    %479 = vmatmul.mubr.bf16.gmra.mrb[0].mxu0 %v274
    %v480 = vpop.f32.mrb[0].mxu0
    %v481 = vadd.f32 0.0, %v480
    %v482 = vpop.f32.mrb[0].mxu0
    %v483 = vpop.f32.mrb[0].mxu0
    %v484 = vadd.f32 0.0, %v483
    %v485 = vpop.f32.mrb[0].mxu0
    %486 = vmatprep.mubr.bf16.mxu0 %v277
    %487 = vmatmul.mubr.bf16.gmra.mrb[0].mxu0 %v276
    %v488 = vpop.f32.mrb[0].mxu0
    %v489 = vadd.f32 0.0, %v488
    %v490 = vpop.f32.mrb[0].mxu0
    %v491 = vpop.f32.mrb[0].mxu0
    %v492 = vadd.f32 0.0, %v491
    %v493 = vpop.f32.mrb[0].mxu0
    %494 = vmatprep.mubr.bf16.mxu0 %v279
    %495 = vmatmul.mubr.bf16.gmra.mrb[0].mxu0 %v278
    %v496 = vpop.f32.mrb[0].mxu0
    %v497 = vadd.f32 0.0, %v496
    %v498 = vpop.f32.mrb[0].mxu0
    %v499 = vpop.f32.mrb[0].mxu0
    %v500 = vadd.f32 0.0, %v499
    %v501 = vpop.f32.mrb[0].mxu0
    %502 = vmatprep.mubr.bf16.mxu0 %v281
    %503 = vmatmul.mubr.bf16.gmra.mrb[0].mxu0 %v280
    %v504 = vpop.f32.mrb[0].mxu0
    %v505 = vadd.f32 0.0, %v504
    %v506 = vpop.f32.mrb[0].mxu0
    %v507 = vpop.f32.mrb[0].mxu0
    %v508 = vadd.f32 0.0, %v507
    %v509 = vpop.f32.mrb[0].mxu0
    %510 = vmatprep.mubr.bf16.mxu0 %v283
    %511 = vmatmul.mubr.bf16.gmra.mrb[0].mxu0 %v282
    %v512 = vpop.f32.mrb[0].mxu0
    %v513 = vadd.f32 0.0, %v512
    %v514 = vpop.f32.mrb[0].mxu0
    %v515 = vpop.f32.mrb[0].mxu0
    %v516 = vadd.f32 0.0, %v515
    %v517 = vpop.f32.mrb[0].mxu0
    %518 = vmatprep.mubr.bf16.mxu0 %v285
    %519 = vmatmul.mubr.bf16.gmra.mrb[0].mxu0 %v284
    %v520 = vpop.f32.mrb[0].mxu0
    %v521 = vadd.f32 0.0, %v520
    %v522 = vpop.f32.mrb[0].mxu0
    %v523 = vpop.f32.mrb[0].mxu0
    %v524 = vadd.f32 0.0, %v523
    %v525 = vpop.f32.mrb[0].mxu0
    %526 = vmatprep.mubr.bf16.mxu0 %v287
    %527 = vmatmul.mubr.bf16.gmra.mrb[0].mxu0 %v286
    %v528 = vpop.f32.mrb[0].mxu0
    %v529 = vadd.f32 0.0, %v528
    %v530 = vpop.f32.mrb[0].mxu0
    %v531 = vpop.f32.mrb[0].mxu0
    %v532 = vadd.f32 0.0, %v531
    %v533 = vpop.f32.mrb[0].mxu0
    %534 = vmatprep.mubr.bf16.mxu0 %v289
    %535 = vmatmul.mubr.bf16.gmra.mrb[0].mxu0 %v288
    %v536 = vpop.f32.mrb[0].mxu0
    %v537 = vadd.f32 0.0, %v536
    %v538 = vpop.f32.mrb[0].mxu0
    %v539 = vpop.f32.mrb[0].mxu0
    %v540 = vadd.f32 0.0, %v539
    %v541 = vpop.f32.mrb[0].mxu0
    %542 = vmatprep.mubr.bf16.mxu0 %v291
    %543 = vmatmul.mubr.bf16.gmra.mrb[0].mxu0 %v290
    %v544 = vpop.f32.mrb[0].mxu0
    %v545 = vadd.f32 0.0, %v544
    %v546 = vpop.f32.mrb[0].mxu0
    %v547 = vpop.f32.mrb[0].mxu0
    %v548 = vadd.f32 0.0, %v547
    %v549 = vpop.f32.mrb[0].mxu0
    %550 = vmatprep.mubr.bf16.mxu0 %v293
    %551 = vmatmul.mubr.bf16.gmra.mrb[0].mxu0 %v292
    %v552 = vpop.f32.mrb[0].mxu0
    %v553 = vadd.f32 0.0, %v552
    %v554 = vpop.f32.mrb[0].mxu0
    %v555 = vpop.f32.mrb[0].mxu0
    %v556 = vadd.f32 0.0, %v555
    %v557 = vpop.f32.mrb[0].mxu0
    %558 = vmatprep.mubr.bf16.mxu0 %v295
    %559 = vmatmul.mubr.bf16.gmra.mrb[0].mxu0 %v294
    %v560 = vpop.f32.mrb[0].mxu0
    %v561 = vadd.f32 0.0, %v560
    %v562 = vpop.f32.mrb[0].mxu0
    %v563 = vpop.f32.mrb[0].mxu0
    %v564 = vadd.f32 0.0, %v563
    %v565 = vpop.f32.mrb[0].mxu0
    %566 = vmatprep.mubr.bf16.mxu0 %v297
    %567 = vmatmul.mubr.bf16.gmra.mrb[0].mxu0 %v296
    %v568 = vpop.f32.mrb[0].mxu0
    %v569 = vadd.f32 0.0, %v568
    %v570 = vpop.f32.mrb[0].mxu0
    %v571 = vpop.f32.mrb[0].mxu0
    %v572 = vadd.f32 0.0, %v571
    %v573 = vpop.f32.mrb[0].mxu0
    %574 = vmatprep.mubr.bf16.mxu0 %v299
    %575 = vmatmul.mubr.bf16.gmra.mrb[0].mxu0 %v298
    %v576 = vpop.f32.mrb[0].mxu0
    %v577 = vadd.f32 0.0, %v576
    %v578 = vpop.f32.mrb[0].mxu0
    %v579 = vpop.f32.mrb[0].mxu0
    %v580 = vadd.f32 0.0, %v579
    %v581 = vpop.f32.mrb[0].mxu0
    %582 = vmatprep.mubr.bf16.mxu0 %v301
    %583 = vmatmul.mubr.bf16.gmra.mrb[0].mxu0 %v300
    %v584 = vpop.f32.mrb[0].mxu0
    %v585 = vadd.f32 0.0, %v584
    %v586 = vpop.f32.mrb[0].mxu0
    %v587 = vpop.f32.mrb[0].mxu0
    %v588 = vadd.f32 0.0, %v587
    %v589 = vpop.f32.mrb[0].mxu0
    %590 = vdwg.mxu0
    %v591 = vpack.c.bf16 %v468, %v465
    %v592 = vpack.c.bf16 %v476, %v473
    %v593 = vpack.c.bf16 %v484, %v481
    %v594 = vpack.c.bf16 %v492, %v489
    %v595 = vpack.c.bf16 %v500, %v497
    %v596 = vpack.c.bf16 %v508, %v505
    %v597 = vpack.c.bf16 %v516, %v513
    %v598 = vpack.c.bf16 %v524, %v521
    %v599 = vpack.c.bf16 %v532, %v529
    %v600 = vpack.c.bf16 %v540, %v537
    %v601 = vpack.c.bf16 %v548, %v545
    %v602 = vpack.c.bf16 %v556, %v553
    %v603 = vpack.c.bf16 %v564, %v561
    %v604 = vpack.c.bf16 %v572, %v569
    %v605 = vpack.c.bf16 %v580, %v577
    %v606 = vpack.c.bf16 %v588, %v585
    %v607 = vlaneseq
    %v608 = vshrl.u32 %v607, 7
    %v609 = vsub.s32 0, %v608
    %v610 = vrot.slane %v125, %v609
    %v627 = vunpack.c.l.b16 %v158
    %v628 = vunpack.c.l.b16 %v159
    %v629 = vunpack.c.l.b16 %v160
    %v630 = vunpack.c.l.b16 %v161
    %v631 = vunpack.c.l.b16 %v162
    %v632 = vunpack.c.l.b16 %v163
    %v633 = vunpack.c.l.b16 %v164
    %v634 = vunpack.c.l.b16 %v165
    %v635 = vunpack.c.l.b16 %v166
    %v636 = vunpack.c.l.b16 %v167
    %v637 = vunpack.c.l.b16 %v168
    %v638 = vunpack.c.l.b16 %v169
    %v639 = vunpack.c.l.b16 %v170
    %v640 = vunpack.c.l.b16 %v171
    %v641 = vunpack.c.l.b16 %v172
    %v642 = vunpack.c.l.b16 %v173
    %v643 = vpack.c.b16 %v628, %v627
    %v644 = vpack.c.b16 %v630, %v629
    %v645 = vpack.c.b16 %v632, %v631
    %v646 = vpack.c.b16 %v634, %v633
    %v647 = vpack.c.b16 %v636, %v635
    %v648 = vpack.c.b16 %v638, %v637
    %v649 = vpack.c.b16 %v640, %v639
    %v650 = vpack.c.b16 %v642, %v641
    %659 = vmatprep.subr.bf16.mxu0 0
    %660 = vmatpush1.bf16.msra.mxu0 %v643
    %661 = vmatprep.subr.bf16.mxu0 0
    %662 = vmatpush1.bf16.msra.mxu0 %v644
    %663 = vmatprep.subr.bf16.mxu0 0
    %664 = vmatpush1.bf16.msra.mxu0 %v645
    %665 = vmatprep.subr.bf16.mxu0 0
    %666 = vmatpush1.bf16.msra.mxu0 %v646
    %667 = vmatprep.subr.bf16.mxu0 0
    %668 = vmatpush1.bf16.msra.mxu0 %v647
    %669 = vmatprep.subr.bf16.mxu0 0
    %670 = vmatpush1.bf16.msra.mxu0 %v648
    %671 = vmatprep.subr.bf16.mxu0 0
    %672 = vmatpush1.bf16.msra.mxu0 %v649
    %673 = vmatprep.subr.bf16.mxu0 0
    %674 = vmatpush1.bf16.msra.mxu0 %v650
    %675 = vmatprep.subr.bf16.mxu0 0
    %676 = vmatpush1.bf16.msra.mxu0 0
    %677 = vmatprep.subr.bf16.mxu0 0
    %678 = vmatpush1.bf16.msra.mxu0 0
    %679 = vmatprep.subr.bf16.mxu0 0
    %680 = vmatpush1.bf16.msra.mxu0 0
    %681 = vmatprep.subr.bf16.mxu0 0
    %682 = vmatpush1.bf16.msra.mxu0 0
    %683 = vmatprep.subr.bf16.mxu0 0
    %684 = vmatpush1.bf16.msra.mxu0 0
    %685 = vmatprep.subr.bf16.mxu0 0
    %686 = vmatpush1.bf16.msra.mxu0 0
    %687 = vmatprep.subr.bf16.mxu0 0
    %688 = vmatpush1.bf16.msra.mxu0 0
    %689 = vmatprep.subr.bf16.mxu0 0
    %690 = vmatpush1.bf16.msra.mxu0 0
    %691 = vmatprep.mubr.bf16.mxu0 0
    %692 = vmatmul.mubr.bf16.gmra.mrb[0].mxu0 %v591
    %v693 = vpop.f32.mrb[0].mxu0
    %v694 = vadd.f32 %v610, %v693
    %v695 = vpop.f32.mrb[0].mxu0
    %v696 = vpop.f32.mrb[0].mxu0
    %v697 = vadd.f32 %v610, %v696
    %v698 = vpop.f32.mrb[0].mxu0
    %699 = vmatprep.mubr.bf16.mxu0 0
    %700 = vmatmul.mubr.bf16.gmra.mrb[0].mxu0 %v592
    %v701 = vpop.f32.mrb[0].mxu0
    %v702 = vadd.f32 %v610, %v701
    %v703 = vpop.f32.mrb[0].mxu0
    %v704 = vpop.f32.mrb[0].mxu0
    %v705 = vadd.f32 %v610, %v704
    %v706 = vpop.f32.mrb[0].mxu0
    %707 = vmatprep.mubr.bf16.mxu0 0
    %708 = vmatmul.mubr.bf16.gmra.mrb[0].mxu0 %v593
    %v709 = vpop.f32.mrb[0].mxu0
    %v710 = vadd.f32 %v610, %v709
    %v711 = vpop.f32.mrb[0].mxu0
    %v712 = vpop.f32.mrb[0].mxu0
    %v713 = vadd.f32 %v610, %v712
    %v714 = vpop.f32.mrb[0].mxu0
    %715 = vmatprep.mubr.bf16.mxu0 0
    %716 = vmatmul.mubr.bf16.gmra.mrb[0].mxu0 %v594
    %v717 = vpop.f32.mrb[0].mxu0
    %v718 = vadd.f32 %v610, %v717
    %v719 = vpop.f32.mrb[0].mxu0
    %v720 = vpop.f32.mrb[0].mxu0
    %v721 = vadd.f32 %v610, %v720
    %v722 = vpop.f32.mrb[0].mxu0
    %723 = vmatprep.mubr.bf16.mxu0 0
    %724 = vmatmul.mubr.bf16.gmra.mrb[0].mxu0 %v595
    %v725 = vpop.f32.mrb[0].mxu0
    %v726 = vadd.f32 %v610, %v725
    %v727 = vpop.f32.mrb[0].mxu0
    %v728 = vpop.f32.mrb[0].mxu0
    %v729 = vadd.f32 %v610, %v728
    %v730 = vpop.f32.mrb[0].mxu0
    %731 = vmatprep.mubr.bf16.mxu0 0
    %732 = vmatmul.mubr.bf16.gmra.mrb[0].mxu0 %v596
    %v733 = vpop.f32.mrb[0].mxu0
    %v734 = vadd.f32 %v610, %v733
    %v735 = vpop.f32.mrb[0].mxu0
    %v736 = vpop.f32.mrb[0].mxu0
    %v737 = vadd.f32 %v610, %v736
    %v738 = vpop.f32.mrb[0].mxu0
    %739 = vmatprep.mubr.bf16.mxu0 0
    %740 = vmatmul.mubr.bf16.gmra.mrb[0].mxu0 %v597
    %v741 = vpop.f32.mrb[0].mxu0
    %v742 = vadd.f32 %v610, %v741
    %v743 = vpop.f32.mrb[0].mxu0
    %v744 = vpop.f32.mrb[0].mxu0
    %v745 = vadd.f32 %v610, %v744
    %v746 = vpop.f32.mrb[0].mxu0
    %747 = vmatprep.mubr.bf16.mxu0 0
    %748 = vmatmul.mubr.bf16.gmra.mrb[0].mxu0 %v598
    %v749 = vpop.f32.mrb[0].mxu0
    %v750 = vadd.f32 %v610, %v749
    %v751 = vpop.f32.mrb[0].mxu0
    %v752 = vpop.f32.mrb[0].mxu0
    %v753 = vadd.f32 %v610, %v752
    %v754 = vpop.f32.mrb[0].mxu0
    %755 = vmatprep.mubr.bf16.mxu0 0
    %756 = vmatmul.mubr.bf16.gmra.mrb[0].mxu0 %v599
    %v757 = vpop.f32.mrb[0].mxu0
    %v758 = vadd.f32 %v610, %v757
    %v759 = vpop.f32.mrb[0].mxu0
    %v760 = vpop.f32.mrb[0].mxu0
    %v761 = vadd.f32 %v610, %v760
    %v762 = vpop.f32.mrb[0].mxu0
    %763 = vmatprep.mubr.bf16.mxu0 0
    %764 = vmatmul.mubr.bf16.gmra.mrb[0].mxu0 %v600
    %v765 = vpop.f32.mrb[0].mxu0
    %v766 = vadd.f32 %v610, %v765
    %v767 = vpop.f32.mrb[0].mxu0
    %v768 = vpop.f32.mrb[0].mxu0
    %v769 = vadd.f32 %v610, %v768
    %v770 = vpop.f32.mrb[0].mxu0
    %771 = vmatprep.mubr.bf16.mxu0 0
    %772 = vmatmul.mubr.bf16.gmra.mrb[0].mxu0 %v601
    %v773 = vpop.f32.mrb[0].mxu0
    %v774 = vadd.f32 %v610, %v773
    %v775 = vpop.f32.mrb[0].mxu0
    %v776 = vpop.f32.mrb[0].mxu0
    %v777 = vadd.f32 %v610, %v776
    %v778 = vpop.f32.mrb[0].mxu0
    %779 = vmatprep.mubr.bf16.mxu0 0
    %780 = vmatmul.mubr.bf16.gmra.mrb[0].mxu0 %v602
    %v781 = vpop.f32.mrb[0].mxu0
    %v782 = vadd.f32 %v610, %v781
    %v783 = vpop.f32.mrb[0].mxu0
    %v784 = vpop.f32.mrb[0].mxu0
    %v785 = vadd.f32 %v610, %v784
    %v786 = vpop.f32.mrb[0].mxu0
    %787 = vmatprep.mubr.bf16.mxu0 0
    %788 = vmatmul.mubr.bf16.gmra.mrb[0].mxu0 %v603
    %v789 = vpop.f32.mrb[0].mxu0
    %v790 = vadd.f32 %v610, %v789
    %v791 = vpop.f32.mrb[0].mxu0
    %v792 = vpop.f32.mrb[0].mxu0
    %v793 = vadd.f32 %v610, %v792
    %v794 = vpop.f32.mrb[0].mxu0
    %795 = vmatprep.mubr.bf16.mxu0 0
    %796 = vmatmul.mubr.bf16.gmra.mrb[0].mxu0 %v604
    %v797 = vpop.f32.mrb[0].mxu0
    %v798 = vadd.f32 %v610, %v797
    %v799 = vpop.f32.mrb[0].mxu0
    %v800 = vpop.f32.mrb[0].mxu0
    %v801 = vadd.f32 %v610, %v800
    %v802 = vpop.f32.mrb[0].mxu0
    %803 = vmatprep.mubr.bf16.mxu0 0
    %804 = vmatmul.mubr.bf16.gmra.mrb[0].mxu0 %v605
    %v805 = vpop.f32.mrb[0].mxu0
    %v806 = vadd.f32 %v610, %v805
    %v807 = vpop.f32.mrb[0].mxu0
    %v808 = vpop.f32.mrb[0].mxu0
    %v809 = vadd.f32 %v610, %v808
    %v810 = vpop.f32.mrb[0].mxu0
    %811 = vmatprep.mubr.bf16.mxu0 0
    %812 = vmatmul.mubr.bf16.gmra.mrb[0].mxu0 %v606
    %v813 = vpop.f32.mrb[0].mxu0
    %v814 = vadd.f32 %v610, %v813
    %v815 = vpop.f32.mrb[0].mxu0
    %v816 = vpop.f32.mrb[0].mxu0
    %v817 = vadd.f32 %v610, %v816
    %v818 = vpop.f32.mrb[0].mxu0
    %819 = vdwg.mxu0
    %v820 = vmax.f32 %v694, 0.0
    %v821 = vmax.f32 %v697, 0.0
    %v822 = vmax.f32 %v702, 0.0
    %v823 = vmax.f32 %v705, 0.0
    %v824 = vmax.f32 %v710, 0.0
    %v825 = vmax.f32 %v713, 0.0
    %v826 = vmax.f32 %v718, 0.0
    %v827 = vmax.f32 %v721, 0.0
    %v828 = vmax.f32 %v726, 0.0
    %v829 = vmax.f32 %v729, 0.0
    %v830 = vmax.f32 %v734, 0.0
    %v831 = vmax.f32 %v737, 0.0
    %v832 = vmax.f32 %v742, 0.0
    %v833 = vmax.f32 %v745, 0.0
    %v834 = vmax.f32 %v750, 0.0
    %v835 = vmax.f32 %v753, 0.0
    %v836 = vmax.f32 %v758, 0.0
    %v837 = vmax.f32 %v761, 0.0
    %v838 = vmax.f32 %v766, 0.0
    %v839 = vmax.f32 %v769, 0.0
    %v840 = vmax.f32 %v774, 0.0
    %v841 = vmax.f32 %v777, 0.0
    %v842 = vmax.f32 %v782, 0.0
    %v843 = vmax.f32 %v785, 0.0
    %v844 = vmax.f32 %v790, 0.0
    %v845 = vmax.f32 %v793, 0.0
    %v846 = vmax.f32 %v798, 0.0
    %v847 = vmax.f32 %v801, 0.0
    %v848 = vmax.f32 %v806, 0.0
    %v849 = vmax.f32 %v809, 0.0
    %v850 = vmax.f32 %v814, 0.0
    %v851 = vmax.f32 %v817, 0.0
    %v852 = vpack.c.bf16 %v821, %v820
    %v853 = vpack.c.bf16 %v823, %v822
    %v854 = vpack.c.bf16 %v825, %v824
    %v855 = vpack.c.bf16 %v827, %v826
    %v856 = vpack.c.bf16 %v829, %v828
    %v857 = vpack.c.bf16 %v831, %v830
    %v858 = vpack.c.bf16 %v833, %v832
    %v859 = vpack.c.bf16 %v835, %v834
    %v860 = vpack.c.bf16 %v837, %v836
    %v861 = vpack.c.bf16 %v839, %v838
    %v862 = vpack.c.bf16 %v841, %v840
    %v863 = vpack.c.bf16 %v843, %v842
    %v864 = vpack.c.bf16 %v845, %v844
    %v865 = vpack.c.bf16 %v847, %v846
    %v866 = vpack.c.bf16 %v849, %v848
    %v867 = vpack.c.bf16 %v851, %v850
    %v868 = vld [vmem:[#allocation8] sm:$0xf]
    %v869 = vld [vmem:[#allocation8 + $0x4] sm:$0xf]
    %v870 = vld [vmem:[#allocation8 + $0x8] sm:$0xf]
    %v871 = vld [vmem:[#allocation8 + $0xc] sm:$0xf]
    %v872 = vld [vmem:[#allocation8 + $0x10] sm:$0xf]
    %v873 = vld [vmem:[#allocation8 + $0x14] sm:$0xf]
    %v874 = vld [vmem:[#allocation8 + $0x18] sm:$0xf]
    %v875 = vld [vmem:[#allocation8 + $0x1c] sm:$0xf]
    %v876 = vld [vmem:[#allocation8 + $0x20] sm:$0xf]
    %v877 = vld [vmem:[#allocation8 + $0x24] sm:$0xf]
    %v878 = vld [vmem:[#allocation8 + $0x28] sm:$0xf]
    %v879 = vld [vmem:[#allocation8 + $0x2c] sm:$0xf]
    %v880 = vld [vmem:[#allocation8 + $0x30] sm:$0xf]
    %v881 = vld [vmem:[#allocation8 + $0x34] sm:$0xf]
    %v882 = vld [vmem:[#allocation8 + $0x38] sm:$0xf]
    %v883 = vld [vmem:[#allocation8 + $0x3c] sm:$0xf]
    %884 = vmatprep.subr.bf16.mxu0 0
    %885 = vmatpush1.bf16.msra.mxu0 %v852
    %886 = vmatprep.subr.bf16.mxu0 0
    %887 = vmatpush1.bf16.msra.mxu0 %v853
    %888 = vmatprep.subr.bf16.mxu0 0
    %889 = vmatpush1.bf16.msra.mxu0 %v854
    %890 = vmatprep.subr.bf16.mxu0 0
    %891 = vmatpush1.bf16.msra.mxu0 %v855
    %892 = vmatprep.subr.bf16.mxu0 0
    %893 = vmatpush1.bf16.msra.mxu0 %v856
    %894 = vmatprep.subr.bf16.mxu0 0
    %895 = vmatpush1.bf16.msra.mxu0 %v857
    %896 = vmatprep.subr.bf16.mxu0 0
    %897 = vmatpush1.bf16.msra.mxu0 %v858
    %898 = vmatprep.subr.bf16.mxu0 0
    %899 = vmatpush1.bf16.msra.mxu0 %v859
    %900 = vmatprep.subr.bf16.mxu0 0
    %901 = vmatpush1.bf16.msra.mxu0 %v860
    %902 = vmatprep.subr.bf16.mxu0 0
    %903 = vmatpush1.bf16.msra.mxu0 %v861
    %904 = vmatprep.subr.bf16.mxu0 0
    %905 = vmatpush1.bf16.msra.mxu0 %v862
    %906 = vmatprep.subr.bf16.mxu0 0
    %907 = vmatpush1.bf16.msra.mxu0 %v863
    %908 = vmatprep.subr.bf16.mxu0 0
    %909 = vmatpush1.bf16.msra.mxu0 %v864
    %910 = vmatprep.subr.bf16.mxu0 0
    %911 = vmatpush1.bf16.msra.mxu0 %v865
    %912 = vmatprep.subr.bf16.mxu0 0
    %913 = vmatpush1.bf16.msra.mxu0 %v866
    %914 = vmatprep.subr.bf16.mxu0 0
    %915 = vmatpush1.bf16.msra.mxu0 %v867
    %916 = vmatprep.mubr.bf16.mxu0 %v271
    %917 = vmatmul.mubr.bf16.gmra.mrb[0].mxu0 %v270
    %v918 = vpop.f32.mrb[0].mxu0
    %v919 = vadd.f32 0.0, %v918
    %v920 = vpop.f32.mrb[0].mxu0
    %v921 = vpop.f32.mrb[0].mxu0
    %v922 = vadd.f32 0.0, %v921
    %v923 = vpop.f32.mrb[0].mxu0
    %924 = vmatprep.mubr.bf16.mxu0 %v273
    %925 = vmatmul.mubr.bf16.gmra.mrb[0].mxu0 %v272
    %v926 = vpop.f32.mrb[0].mxu0
    %v927 = vadd.f32 0.0, %v926
    %v928 = vpop.f32.mrb[0].mxu0
    %v929 = vpop.f32.mrb[0].mxu0
    %v930 = vadd.f32 0.0, %v929
    %v931 = vpop.f32.mrb[0].mxu0
    %932 = vmatprep.mubr.bf16.mxu0 %v275
    %933 = vmatmul.mubr.bf16.gmra.mrb[0].mxu0 %v274
    %v934 = vpop.f32.mrb[0].mxu0
    %v935 = vadd.f32 0.0, %v934
    %v936 = vpop.f32.mrb[0].mxu0
    %v937 = vpop.f32.mrb[0].mxu0
    %v938 = vadd.f32 0.0, %v937
    %v939 = vpop.f32.mrb[0].mxu0
    %940 = vmatprep.mubr.bf16.mxu0 %v277
    %941 = vmatmul.mubr.bf16.gmra.mrb[0].mxu0 %v276
    %v942 = vpop.f32.mrb[0].mxu0
    %v943 = vadd.f32 0.0, %v942
    %v944 = vpop.f32.mrb[0].mxu0
    %v945 = vpop.f32.mrb[0].mxu0
    %v946 = vadd.f32 0.0, %v945
    %v947 = vpop.f32.mrb[0].mxu0
    %948 = vmatprep.mubr.bf16.mxu0 %v279
    %949 = vmatmul.mubr.bf16.gmra.mrb[0].mxu0 %v278
    %v950 = vpop.f32.mrb[0].mxu0
    %v951 = vadd.f32 0.0, %v950
    %v952 = vpop.f32.mrb[0].mxu0
    %v953 = vpop.f32.mrb[0].mxu0
    %v954 = vadd.f32 0.0, %v953
    %v955 = vpop.f32.mrb[0].mxu0
    %956 = vmatprep.mubr.bf16.mxu0 %v281
    %957 = vmatmul.mubr.bf16.gmra.mrb[0].mxu0 %v280
    %v958 = vpop.f32.mrb[0].mxu0
    %v959 = vadd.f32 0.0, %v958
    %v960 = vpop.f32.mrb[0].mxu0
    %v961 = vpop.f32.mrb[0].mxu0
    %v962 = vadd.f32 0.0, %v961
    %v963 = vpop.f32.mrb[0].mxu0
    %964 = vmatprep.mubr.bf16.mxu0 %v283
    %965 = vmatmul.mubr.bf16.gmra.mrb[0].mxu0 %v282
    %v966 = vpop.f32.mrb[0].mxu0
    %v967 = vadd.f32 0.0, %v966
    %v968 = vpop.f32.mrb[0].mxu0
    %v969 = vpop.f32.mrb[0].mxu0
    %v970 = vadd.f32 0.0, %v969
    %v971 = vpop.f32.mrb[0].mxu0
    %972 = vmatprep.mubr.bf16.mxu0 %v285
    %973 = vmatmul.mubr.bf16.gmra.mrb[0].mxu0 %v284
    %v974 = vpop.f32.mrb[0].mxu0
    %v975 = vadd.f32 0.0, %v974
    %v976 = vpop.f32.mrb[0].mxu0
    %v977 = vpop.f32.mrb[0].mxu0
    %v978 = vadd.f32 0.0, %v977
    %v979 = vpop.f32.mrb[0].mxu0
    %980 = vmatprep.mubr.bf16.mxu0 %v287
    %981 = vmatmul.mubr.bf16.gmra.mrb[0].mxu0 %v286
    %v982 = vpop.f32.mrb[0].mxu0
    %v983 = vadd.f32 0.0, %v982
    %v984 = vpop.f32.mrb[0].mxu0
    %v985 = vpop.f32.mrb[0].mxu0
    %v986 = vadd.f32 0.0, %v985
    %v987 = vpop.f32.mrb[0].mxu0
    %988 = vmatprep.mubr.bf16.mxu0 %v289
    %989 = vmatmul.mubr.bf16.gmra.mrb[0].mxu0 %v288
    %v990 = vpop.f32.mrb[0].mxu0
    %v991 = vadd.f32 0.0, %v990
    %v992 = vpop.f32.mrb[0].mxu0
    %v993 = vpop.f32.mrb[0].mxu0
    %v994 = vadd.f32 0.0, %v993
    %v995 = vpop.f32.mrb[0].mxu0
    %996 = vmatprep.mubr.bf16.mxu0 %v291
    %997 = vmatmul.mubr.bf16.gmra.mrb[0].mxu0 %v290
    %v998 = vpop.f32.mrb[0].mxu0
    %v999 = vadd.f32 0.0, %v998
    %v1000 = vpop.f32.mrb[0].mxu0
    %v1001 = vpop.f32.mrb[0].mxu0
    %v1002 = vadd.f32 0.0, %v1001
    %v1003 = vpop.f32.mrb[0].mxu0
    %1004 = vmatprep.mubr.bf16.mxu0 %v293
    %1005 = vmatmul.mubr.bf16.gmra.mrb[0].mxu0 %v292
    %v1006 = vpop.f32.mrb[0].mxu0
    %v1007 = vadd.f32 0.0, %v1006
    %v1008 = vpop.f32.mrb[0].mxu0
    %v1009 = vpop.f32.mrb[0].mxu0
    %v1010 = vadd.f32 0.0, %v1009
    %v1011 = vpop.f32.mrb[0].mxu0
    %1012 = vmatprep.mubr.bf16.mxu0 %v295
    %1013 = vmatmul.mubr.bf16.gmra.mrb[0].mxu0 %v294
    %v1014 = vpop.f32.mrb[0].mxu0
    %v1015 = vadd.f32 0.0, %v1014
    %v1016 = vpop.f32.mrb[0].mxu0
    %v1017 = vpop.f32.mrb[0].mxu0
    %v1018 = vadd.f32 0.0, %v1017
    %v1019 = vpop.f32.mrb[0].mxu0
    %1020 = vmatprep.mubr.bf16.mxu0 %v297
    %1021 = vmatmul.mubr.bf16.gmra.mrb[0].mxu0 %v296
    %v1022 = vpop.f32.mrb[0].mxu0
    %v1023 = vadd.f32 0.0, %v1022
    %v1024 = vpop.f32.mrb[0].mxu0
    %v1025 = vpop.f32.mrb[0].mxu0
    %v1026 = vadd.f32 0.0, %v1025
    %v1027 = vpop.f32.mrb[0].mxu0
    %1028 = vmatprep.mubr.bf16.mxu0 %v299
    %1029 = vmatmul.mubr.bf16.gmra.mrb[0].mxu0 %v298
    %v1030 = vpop.f32.mrb[0].mxu0
    %v1031 = vadd.f32 0.0, %v1030
    %v1032 = vpop.f32.mrb[0].mxu0
    %v1033 = vpop.f32.mrb[0].mxu0
    %v1034 = vadd.f32 0.0, %v1033
    %v1035 = vpop.f32.mrb[0].mxu0
    %1036 = vmatprep.mubr.bf16.mxu0 %v301
    %1037 = vmatmul.mubr.bf16.gmra.mrb[0].mxu0 %v300
    %v1038 = vpop.f32.mrb[0].mxu0
    %v1039 = vadd.f32 0.0, %v1038
    %v1040 = vpop.f32.mrb[0].mxu0
    %v1041 = vpop.f32.mrb[0].mxu0
    %v1042 = vadd.f32 0.0, %v1041
    %v1043 = vpop.f32.mrb[0].mxu0
    %1044 = vdwg.mxu0
    %v1045 = vpack.c.bf16 %v922, %v919
    %v1046 = vpack.c.bf16 %v930, %v927
    %v1047 = vpack.c.bf16 %v938, %v935
    %v1048 = vpack.c.bf16 %v946, %v943
    %v1049 = vpack.c.bf16 %v954, %v951
    %v1050 = vpack.c.bf16 %v962, %v959
    %v1051 = vpack.c.bf16 %v970, %v967
    %v1052 = vpack.c.bf16 %v978, %v975
    %v1053 = vpack.c.bf16 %v986, %v983
    %v1054 = vpack.c.bf16 %v994, %v991
    %v1055 = vpack.c.bf16 %v1002, %v999
    %v1056 = vpack.c.bf16 %v1010, %v1007
    %v1057 = vpack.c.bf16 %v1018, %v1015
    %v1058 = vpack.c.bf16 %v1026, %v1023
    %v1059 = vpack.c.bf16 %v1034, %v1031
    %v1060 = vpack.c.bf16 %v1042, %v1039
    %v1061 = vlaneseq
    %v1062 = vshrl.u32 %v1061, 7
    %v1063 = vsub.s32 1, %v1062
    %v1064 = vrot.slane %v125, %v1063
    %v1081 = vunpack.c.l.b16 %v868
    %v1082 = vunpack.c.l.b16 %v869
    %v1083 = vunpack.c.l.b16 %v870
    %v1084 = vunpack.c.l.b16 %v871
    %v1085 = vunpack.c.l.b16 %v872
    %v1086 = vunpack.c.l.b16 %v873
    %v1087 = vunpack.c.l.b16 %v874
    %v1088 = vunpack.c.l.b16 %v875
    %v1089 = vunpack.c.l.b16 %v876
    %v1090 = vunpack.c.l.b16 %v877
    %v1091 = vunpack.c.l.b16 %v878
    %v1092 = vunpack.c.l.b16 %v879
    %v1093 = vunpack.c.l.b16 %v880
    %v1094 = vunpack.c.l.b16 %v881
    %v1095 = vunpack.c.l.b16 %v882
    %v1096 = vunpack.c.l.b16 %v883
    %v1097 = vpack.c.b16 %v1082, %v1081
    %v1098 = vpack.c.b16 %v1084, %v1083
    %v1099 = vpack.c.b16 %v1086, %v1085
    %v1100 = vpack.c.b16 %v1088, %v1087
    %v1101 = vpack.c.b16 %v1090, %v1089
    %v1102 = vpack.c.b16 %v1092, %v1091
    %v1103 = vpack.c.b16 %v1094, %v1093
    %v1104 = vpack.c.b16 %v1096, %v1095
    %1113 = vmatprep.subr.bf16.mxu0 0
    %1114 = vmatpush1.bf16.msra.mxu0 %v1097
    %1115 = vmatprep.subr.bf16.mxu0 0
    %1116 = vmatpush1.bf16.msra.mxu0 %v1098
    %1117 = vmatprep.subr.bf16.mxu0 0
    %1118 = vmatpush1.bf16.msra.mxu0 %v1099
    %1119 = vmatprep.subr.bf16.mxu0 0
    %1120 = vmatpush1.bf16.msra.mxu0 %v1100
    %1121 = vmatprep.subr.bf16.mxu0 0
    %1122 = vmatpush1.bf16.msra.mxu0 %v1101
    %1123 = vmatprep.subr.bf16.mxu0 0
    %1124 = vmatpush1.bf16.msra.mxu0 %v1102
    %1125 = vmatprep.subr.bf16.mxu0 0
    %1126 = vmatpush1.bf16.msra.mxu0 %v1103
    %1127 = vmatprep.subr.bf16.mxu0 0
    %1128 = vmatpush1.bf16.msra.mxu0 %v1104
    %1129 = vmatprep.subr.bf16.mxu0 0
    %1130 = vmatpush1.bf16.msra.mxu0 0
    %1131 = vmatprep.subr.bf16.mxu0 0
    %1132 = vmatpush1.bf16.msra.mxu0 0
    %1133 = vmatprep.subr.bf16.mxu0 0
    %1134 = vmatpush1.bf16.msra.mxu0 0
    %1135 = vmatprep.subr.bf16.mxu0 0
    %1136 = vmatpush1.bf16.msra.mxu0 0
    %1137 = vmatprep.subr.bf16.mxu0 0
    %1138 = vmatpush1.bf16.msra.mxu0 0
    %1139 = vmatprep.subr.bf16.mxu0 0
    %1140 = vmatpush1.bf16.msra.mxu0 0
    %1141 = vmatprep.subr.bf16.mxu0 0
    %1142 = vmatpush1.bf16.msra.mxu0 0
    %1143 = vmatprep.subr.bf16.mxu0 0
    %1144 = vmatpush1.bf16.msra.mxu0 0
    %1145 = vmatprep.mubr.bf16.mxu0 0
    %1146 = vmatmul.mubr.bf16.gmra.mrb[0].mxu0 %v1045
    %v1147 = vpop.f32.mrb[0].mxu0
    %v1148 = vadd.f32 %v1064, %v1147
    %v1149 = vpop.f32.mrb[0].mxu0
    %v1150 = vpop.f32.mrb[0].mxu0
    %v1151 = vadd.f32 %v1064, %v1150
    %v1152 = vpop.f32.mrb[0].mxu0
    %1153 = vmatprep.mubr.bf16.mxu0 0
    %1154 = vmatmul.mubr.bf16.gmra.mrb[0].mxu0 %v1046
    %v1155 = vpop.f32.mrb[0].mxu0
    %v1156 = vadd.f32 %v1064, %v1155
    %v1157 = vpop.f32.mrb[0].mxu0
    %v1158 = vpop.f32.mrb[0].mxu0
    %v1159 = vadd.f32 %v1064, %v1158
    %v1160 = vpop.f32.mrb[0].mxu0
    %1161 = vmatprep.mubr.bf16.mxu0 0
    %1162 = vmatmul.mubr.bf16.gmra.mrb[0].mxu0 %v1047
    %v1163 = vpop.f32.mrb[0].mxu0
    %v1164 = vadd.f32 %v1064, %v1163
    %v1165 = vpop.f32.mrb[0].mxu0
    %v1166 = vpop.f32.mrb[0].mxu0
    %v1167 = vadd.f32 %v1064, %v1166
    %v1168 = vpop.f32.mrb[0].mxu0
    %1169 = vmatprep.mubr.bf16.mxu0 0
    %1170 = vmatmul.mubr.bf16.gmra.mrb[0].mxu0 %v1048
    %v1171 = vpop.f32.mrb[0].mxu0
    %v1172 = vadd.f32 %v1064, %v1171
    %v1173 = vpop.f32.mrb[0].mxu0
    %v1174 = vpop.f32.mrb[0].mxu0
    %v1175 = vadd.f32 %v1064, %v1174
    %v1176 = vpop.f32.mrb[0].mxu0
    %1177 = vmatprep.mubr.bf16.mxu0 0
    %1178 = vmatmul.mubr.bf16.gmra.mrb[0].mxu0 %v1049
    %v1179 = vpop.f32.mrb[0].mxu0
    %v1180 = vadd.f32 %v1064, %v1179
    %v1181 = vpop.f32.mrb[0].mxu0
    %v1182 = vpop.f32.mrb[0].mxu0
    %v1183 = vadd.f32 %v1064, %v1182
    %v1184 = vpop.f32.mrb[0].mxu0
    %1185 = vmatprep.mubr.bf16.mxu0 0
    %1186 = vmatmul.mubr.bf16.gmra.mrb[0].mxu0 %v1050
    %v1187 = vpop.f32.mrb[0].mxu0
    %v1188 = vadd.f32 %v1064, %v1187
    %v1189 = vpop.f32.mrb[0].mxu0
    %v1190 = vpop.f32.mrb[0].mxu0
    %v1191 = vadd.f32 %v1064, %v1190
    %v1192 = vpop.f32.mrb[0].mxu0
    %1193 = vmatprep.mubr.bf16.mxu0 0
    %1194 = vmatmul.mubr.bf16.gmra.mrb[0].mxu0 %v1051
    %v1195 = vpop.f32.mrb[0].mxu0
    %v1196 = vadd.f32 %v1064, %v1195
    %v1197 = vpop.f32.mrb[0].mxu0
    %v1198 = vpop.f32.mrb[0].mxu0
    %v1199 = vadd.f32 %v1064, %v1198
    %v1200 = vpop.f32.mrb[0].mxu0
    %1201 = vmatprep.mubr.bf16.mxu0 0
    %1202 = vmatmul.mubr.bf16.gmra.mrb[0].mxu0 %v1052
    %v1203 = vpop.f32.mrb[0].mxu0
    %v1204 = vadd.f32 %v1064, %v1203
    %v1205 = vpop.f32.mrb[0].mxu0
    %v1206 = vpop.f32.mrb[0].mxu0
    %v1207 = vadd.f32 %v1064, %v1206
    %v1208 = vpop.f32.mrb[0].mxu0
    %1209 = vmatprep.mubr.bf16.mxu0 0
    %1210 = vmatmul.mubr.bf16.gmra.mrb[0].mxu0 %v1053
    %v1211 = vpop.f32.mrb[0].mxu0
    %v1212 = vadd.f32 %v1064, %v1211
    %v1213 = vpop.f32.mrb[0].mxu0
    %v1214 = vpop.f32.mrb[0].mxu0
    %v1215 = vadd.f32 %v1064, %v1214
    %v1216 = vpop.f32.mrb[0].mxu0
    %1217 = vmatprep.mubr.bf16.mxu0 0
    %1218 = vmatmul.mubr.bf16.gmra.mrb[0].mxu0 %v1054
    %v1219 = vpop.f32.mrb[0].mxu0
    %v1220 = vadd.f32 %v1064, %v1219
    %v1221 = vpop.f32.mrb[0].mxu0
    %v1222 = vpop.f32.mrb[0].mxu0
    %v1223 = vadd.f32 %v1064, %v1222
    %v1224 = vpop.f32.mrb[0].mxu0
    %1225 = vmatprep.mubr.bf16.mxu0 0
    %1226 = vmatmul.mubr.bf16.gmra.mrb[0].mxu0 %v1055
    %v1227 = vpop.f32.mrb[0].mxu0
    %v1228 = vadd.f32 %v1064, %v1227
    %v1229 = vpop.f32.mrb[0].mxu0
    %v1230 = vpop.f32.mrb[0].mxu0
    %v1231 = vadd.f32 %v1064, %v1230
    %v1232 = vpop.f32.mrb[0].mxu0
    %1233 = vmatprep.mubr.bf16.mxu0 0
    %1234 = vmatmul.mubr.bf16.gmra.mrb[0].mxu0 %v1056
    %v1235 = vpop.f32.mrb[0].mxu0
    %v1236 = vadd.f32 %v1064, %v1235
    %v1237 = vpop.f32.mrb[0].mxu0
    %v1238 = vpop.f32.mrb[0].mxu0
    %v1239 = vadd.f32 %v1064, %v1238
    %v1240 = vpop.f32.mrb[0].mxu0
    %1241 = vmatprep.mubr.bf16.mxu0 0
    %1242 = vmatmul.mubr.bf16.gmra.mrb[0].mxu0 %v1057
    %v1243 = vpop.f32.mrb[0].mxu0
    %v1244 = vadd.f32 %v1064, %v1243
    %v1245 = vpop.f32.mrb[0].mxu0
    %v1246 = vpop.f32.mrb[0].mxu0
    %v1247 = vadd.f32 %v1064, %v1246
    %v1248 = vpop.f32.mrb[0].mxu0
    %1249 = vmatprep.mubr.bf16.mxu0 0
    %1250 = vmatmul.mubr.bf16.gmra.mrb[0].mxu0 %v1058
    %v1251 = vpop.f32.mrb[0].mxu0
    %v1252 = vadd.f32 %v1064, %v1251
    %v1253 = vpop.f32.mrb[0].mxu0
    %v1254 = vpop.f32.mrb[0].mxu0
    %v1255 = vadd.f32 %v1064, %v1254
    %v1256 = vpop.f32.mrb[0].mxu0
    %1257 = vmatprep.mubr.bf16.mxu0 0
    %1258 = vmatmul.mubr.bf16.gmra.mrb[0].mxu0 %v1059
    %v1259 = vpop.f32.mrb[0].mxu0
    %v1260 = vadd.f32 %v1064, %v1259
    %v1261 = vpop.f32.mrb[0].mxu0
    %v1262 = vpop.f32.mrb[0].mxu0
    %v1263 = vadd.f32 %v1064, %v1262
    %v1264 = vpop.f32.mrb[0].mxu0
    %1265 = vmatprep.mubr.bf16.mxu0 0
    %1266 = vmatmul.mubr.bf16.gmra.mrb[0].mxu0 %v1060
    %v1267 = vpop.f32.mrb[0].mxu0
    %v1268 = vadd.f32 %v1064, %v1267
    %v1269 = vpop.f32.mrb[0].mxu0
    %v1270 = vpop.f32.mrb[0].mxu0
    %v1271 = vadd.f32 %v1064, %v1270
    %v1272 = vpop.f32.mrb[0].mxu0
    %1273 = vdwg.mxu0
    %v1274 = vmax.f32 %v1148, 0.0
    %v1275 = vmax.f32 %v1151, 0.0
    %v1276 = vmax.f32 %v1156, 0.0
    %v1277 = vmax.f32 %v1159, 0.0
    %v1278 = vmax.f32 %v1164, 0.0
    %v1279 = vmax.f32 %v1167, 0.0
    %v1280 = vmax.f32 %v1172, 0.0
    %v1281 = vmax.f32 %v1175, 0.0
    %v1282 = vmax.f32 %v1180, 0.0
    %v1283 = vmax.f32 %v1183, 0.0
    %v1284 = vmax.f32 %v1188, 0.0
    %v1285 = vmax.f32 %v1191, 0.0
    %v1286 = vmax.f32 %v1196, 0.0
    %v1287 = vmax.f32 %v1199, 0.0
    %v1288 = vmax.f32 %v1204, 0.0
    %v1289 = vmax.f32 %v1207, 0.0
    %v1290 = vmax.f32 %v1212, 0.0
    %v1291 = vmax.f32 %v1215, 0.0
    %v1292 = vmax.f32 %v1220, 0.0
    %v1293 = vmax.f32 %v1223, 0.0
    %v1294 = vmax.f32 %v1228, 0.0
    %v1295 = vmax.f32 %v1231, 0.0
    %v1296 = vmax.f32 %v1236, 0.0
    %v1297 = vmax.f32 %v1239, 0.0
    %v1298 = vmax.f32 %v1244, 0.0
    %v1299 = vmax.f32 %v1247, 0.0
    %v1300 = vmax.f32 %v1252, 0.0
    %v1301 = vmax.f32 %v1255, 0.0
    %v1302 = vmax.f32 %v1260, 0.0
    %v1303 = vmax.f32 %v1263, 0.0
    %v1304 = vmax.f32 %v1268, 0.0
    %v1305 = vmax.f32 %v1271, 0.0
    %v1306 = vpack.c.bf16 %v1275, %v1274
    %v1307 = vpack.c.bf16 %v1277, %v1276
    %v1308 = vpack.c.bf16 %v1279, %v1278
    %v1309 = vpack.c.bf16 %v1281, %v1280
    %v1310 = vpack.c.bf16 %v1283, %v1282
    %v1311 = vpack.c.bf16 %v1285, %v1284
    %v1312 = vpack.c.bf16 %v1287, %v1286
    %v1313 = vpack.c.bf16 %v1289, %v1288
    %v1314 = vpack.c.bf16 %v1291, %v1290
    %v1315 = vpack.c.bf16 %v1293, %v1292
    %v1316 = vpack.c.bf16 %v1295, %v1294
    %v1317 = vpack.c.bf16 %v1297, %v1296
    %v1318 = vpack.c.bf16 %v1299, %v1298
    %v1319 = vpack.c.bf16 %v1301, %v1300
    %v1320 = vpack.c.bf16 %v1303, %v1302
    %v1321 = vpack.c.bf16 %v1305, %v1304
    %v1322 = vld [vmem:[#allocation10] sm:$0xf]
    %v1323 = vld [vmem:[#allocation10 + $0x4] sm:$0xf]
    %v1324 = vld [vmem:[#allocation10 + $0x8] sm:$0xf]
    %v1325 = vld [vmem:[#allocation10 + $0xc] sm:$0xf]
    %v1326 = vld [vmem:[#allocation10 + $0x10] sm:$0xf]
    %v1327 = vld [vmem:[#allocation10 + $0x14] sm:$0xf]
    %v1328 = vld [vmem:[#allocation10 + $0x18] sm:$0xf]
    %v1329 = vld [vmem:[#allocation10 + $0x1c] sm:$0xf]
    %v1330 = vld [vmem:[#allocation10 + $0x20] sm:$0xf]
    %v1331 = vld [vmem:[#allocation10 + $0x24] sm:$0xf]
    %v1332 = vld [vmem:[#allocation10 + $0x28] sm:$0xf]
    %v1333 = vld [vmem:[#allocation10 + $0x2c] sm:$0xf]
    %v1334 = vld [vmem:[#allocation10 + $0x30] sm:$0xf]
    %v1335 = vld [vmem:[#allocation10 + $0x34] sm:$0xf]
    %v1336 = vld [vmem:[#allocation10 + $0x38] sm:$0xf]
    %v1337 = vld [vmem:[#allocation10 + $0x3c] sm:$0xf]
    %1338 = vmatprep.subr.bf16.mxu0 0
    %1339 = vmatpush1.bf16.msra.mxu0 %v1306
    %1340 = vmatprep.subr.bf16.mxu0 0
    %1341 = vmatpush1.bf16.msra.mxu0 %v1307
    %1342 = vmatprep.subr.bf16.mxu0 0
    %1343 = vmatpush1.bf16.msra.mxu0 %v1308
    %1344 = vmatprep.subr.bf16.mxu0 0
    %1345 = vmatpush1.bf16.msra.mxu0 %v1309
    %1346 = vmatprep.subr.bf16.mxu0 0
    %1347 = vmatpush1.bf16.msra.mxu0 %v1310
    %1348 = vmatprep.subr.bf16.mxu0 0
    %1349 = vmatpush1.bf16.msra.mxu0 %v1311
    %1350 = vmatprep.subr.bf16.mxu0 0
    %1351 = vmatpush1.bf16.msra.mxu0 %v1312
    %1352 = vmatprep.subr.bf16.mxu0 0
    %1353 = vmatpush1.bf16.msra.mxu0 %v1313
    %1354 = vmatprep.subr.bf16.mxu0 0
    %1355 = vmatpush1.bf16.msra.mxu0 %v1314
    %1356 = vmatprep.subr.bf16.mxu0 0
    %1357 = vmatpush1.bf16.msra.mxu0 %v1315
    %1358 = vmatprep.subr.bf16.mxu0 0
    %1359 = vmatpush1.bf16.msra.mxu0 %v1316
    %1360 = vmatprep.subr.bf16.mxu0 0
    %1361 = vmatpush1.bf16.msra.mxu0 %v1317
    %1362 = vmatprep.subr.bf16.mxu0 0
    %1363 = vmatpush1.bf16.msra.mxu0 %v1318
    %1364 = vmatprep.subr.bf16.mxu0 0
    %1365 = vmatpush1.bf16.msra.mxu0 %v1319
    %1366 = vmatprep.subr.bf16.mxu0 0
    %1367 = vmatpush1.bf16.msra.mxu0 %v1320
    %1368 = vmatprep.subr.bf16.mxu0 0
    %1369 = vmatpush1.bf16.msra.mxu0 %v1321
    %1370 = vmatprep.mubr.bf16.mxu0 %v271
    %1371 = vmatmul.mubr.bf16.gmra.mrb[0].mxu0 %v270
    %v1372 = vpop.f32.mrb[0].mxu0
    %v1373 = vadd.f32 0.0, %v1372
    %v1374 = vpop.f32.mrb[0].mxu0
    %v1375 = vpop.f32.mrb[0].mxu0
    %v1376 = vadd.f32 0.0, %v1375
    %v1377 = vpop.f32.mrb[0].mxu0
    %1378 = vmatprep.mubr.bf16.mxu0 %v273
    %1379 = vmatmul.mubr.bf16.gmra.mrb[0].mxu0 %v272
    %v1380 = vpop.f32.mrb[0].mxu0
    %v1381 = vadd.f32 0.0, %v1380
    %v1382 = vpop.f32.mrb[0].mxu0
    %v1383 = vpop.f32.mrb[0].mxu0
    %v1384 = vadd.f32 0.0, %v1383
    %v1385 = vpop.f32.mrb[0].mxu0
    %1386 = vmatprep.mubr.bf16.mxu0 %v275
    %1387 = vmatmul.mubr.bf16.gmra.mrb[0].mxu0 %v274
    %v1388 = vpop.f32.mrb[0].mxu0
    %v1389 = vadd.f32 0.0, %v1388
    %v1390 = vpop.f32.mrb[0].mxu0
    %v1391 = vpop.f32.mrb[0].mxu0
    %v1392 = vadd.f32 0.0, %v1391
    %v1393 = vpop.f32.mrb[0].mxu0
    %1394 = vmatprep.mubr.bf16.mxu0 %v277
    %1395 = vmatmul.mubr.bf16.gmra.mrb[0].mxu0 %v276
    %v1396 = vpop.f32.mrb[0].mxu0
    %v1397 = vadd.f32 0.0, %v1396
    %v1398 = vpop.f32.mrb[0].mxu0
    %v1399 = vpop.f32.mrb[0].mxu0
    %v1400 = vadd.f32 0.0, %v1399
    %v1401 = vpop.f32.mrb[0].mxu0
    %1402 = vmatprep.mubr.bf16.mxu0 %v279
    %1403 = vmatmul.mubr.bf16.gmra.mrb[0].mxu0 %v278
    %v1404 = vpop.f32.mrb[0].mxu0
    %v1405 = vadd.f32 0.0, %v1404
    %v1406 = vpop.f32.mrb[0].mxu0
    %v1407 = vpop.f32.mrb[0].mxu0
    %v1408 = vadd.f32 0.0, %v1407
    %v1409 = vpop.f32.mrb[0].mxu0
    %1410 = vmatprep.mubr.bf16.mxu0 %v281
    %1411 = vmatmul.mubr.bf16.gmra.mrb[0].mxu0 %v280
    %v1412 = vpop.f32.mrb[0].mxu0
    %v1413 = vadd.f32 0.0, %v1412
    %v1414 = vpop.f32.mrb[0].mxu0
    %v1415 = vpop.f32.mrb[0].mxu0
    %v1416 = vadd.f32 0.0, %v1415
    %v1417 = vpop.f32.mrb[0].mxu0
    %1418 = vmatprep.mubr.bf16.mxu0 %v283
    %1419 = vmatmul.mubr.bf16.gmra.mrb[0].mxu0 %v282
    %v1420 = vpop.f32.mrb[0].mxu0
    %v1421 = vadd.f32 0.0, %v1420
    %v1422 = vpop.f32.mrb[0].mxu0
    %v1423 = vpop.f32.mrb[0].mxu0
    %v1424 = vadd.f32 0.0, %v1423
    %v1425 = vpop.f32.mrb[0].mxu0
    %1426 = vmatprep.mubr.bf16.mxu0 %v285
    %1427 = vmatmul.mubr.bf16.gmra.mrb[0].mxu0 %v284
    %v1428 = vpop.f32.mrb[0].mxu0
    %v1429 = vadd.f32 0.0, %v1428
    %v1430 = vpop.f32.mrb[0].mxu0
    %v1431 = vpop.f32.mrb[0].mxu0
    %v1432 = vadd.f32 0.0, %v1431
    %v1433 = vpop.f32.mrb[0].mxu0
    %1434 = vmatprep.mubr.bf16.mxu0 %v287
    %1435 = vmatmul.mubr.bf16.gmra.mrb[0].mxu0 %v286
    %v1436 = vpop.f32.mrb[0].mxu0
    %v1437 = vadd.f32 0.0, %v1436
    %v1438 = vpop.f32.mrb[0].mxu0
    %v1439 = vpop.f32.mrb[0].mxu0
    %v1440 = vadd.f32 0.0, %v1439
    %v1441 = vpop.f32.mrb[0].mxu0
    %1442 = vmatprep.mubr.bf16.mxu0 %v289
    %1443 = vmatmul.mubr.bf16.gmra.mrb[0].mxu0 %v288
    %v1444 = vpop.f32.mrb[0].mxu0
    %v1445 = vadd.f32 0.0, %v1444
    %v1446 = vpop.f32.mrb[0].mxu0
    %v1447 = vpop.f32.mrb[0].mxu0
    %v1448 = vadd.f32 0.0, %v1447
    %v1449 = vpop.f32.mrb[0].mxu0
    %1450 = vmatprep.mubr.bf16.mxu0 %v291
    %1451 = vmatmul.mubr.bf16.gmra.mrb[0].mxu0 %v290
    %v1452 = vpop.f32.mrb[0].mxu0
    %v1453 = vadd.f32 0.0, %v1452
    %v1454 = vpop.f32.mrb[0].mxu0
    %v1455 = vpop.f32.mrb[0].mxu0
    %v1456 = vadd.f32 0.0, %v1455
    %v1457 = vpop.f32.mrb[0].mxu0
    %1458 = vmatprep.mubr.bf16.mxu0 %v293
    %1459 = vmatmul.mubr.bf16.gmra.mrb[0].mxu0 %v292
    %v1460 = vpop.f32.mrb[0].mxu0
    %v1461 = vadd.f32 0.0, %v1460
    %v1462 = vpop.f32.mrb[0].mxu0
    %v1463 = vpop.f32.mrb[0].mxu0
    %v1464 = vadd.f32 0.0, %v1463
    %v1465 = vpop.f32.mrb[0].mxu0
    %1466 = vmatprep.mubr.bf16.mxu0 %v295
    %1467 = vmatmul.mubr.bf16.gmra.mrb[0].mxu0 %v294
    %v1468 = vpop.f32.mrb[0].mxu0
    %v1469 = vadd.f32 0.0, %v1468
    %v1470 = vpop.f32.mrb[0].mxu0
    %v1471 = vpop.f32.mrb[0].mxu0
    %v1472 = vadd.f32 0.0, %v1471
    %v1473 = vpop.f32.mrb[0].mxu0
    %1474 = vmatprep.mubr.bf16.mxu0 %v297
    %1475 = vmatmul.mubr.bf16.gmra.mrb[0].mxu0 %v296
    %v1476 = vpop.f32.mrb[0].mxu0
    %v1477 = vadd.f32 0.0, %v1476
    %v1478 = vpop.f32.mrb[0].mxu0
    %v1479 = vpop.f32.mrb[0].mxu0
    %v1480 = vadd.f32 0.0, %v1479
    %v1481 = vpop.f32.mrb[0].mxu0
    %1482 = vmatprep.mubr.bf16.mxu0 %v299
    %1483 = vmatmul.mubr.bf16.gmra.mrb[0].mxu0 %v298
    %v1484 = vpop.f32.mrb[0].mxu0
    %v1485 = vadd.f32 0.0, %v1484
    %v1486 = vpop.f32.mrb[0].mxu0
    %v1487 = vpop.f32.mrb[0].mxu0
    %v1488 = vadd.f32 0.0, %v1487
    %v1489 = vpop.f32.mrb[0].mxu0
    %1490 = vmatprep.mubr.bf16.mxu0 %v301
    %1491 = vmatmul.mubr.bf16.gmra.mrb[0].mxu0 %v300
    %v1492 = vpop.f32.mrb[0].mxu0
    %v1493 = vadd.f32 0.0, %v1492
    %v1494 = vpop.f32.mrb[0].mxu0
    %v1495 = vpop.f32.mrb[0].mxu0
    %v1496 = vadd.f32 0.0, %v1495
    %v1497 = vpop.f32.mrb[0].mxu0
    %1498 = vdwg.mxu0
    %v1499 = vpack.c.bf16 %v1376, %v1373
    %v1500 = vpack.c.bf16 %v1384, %v1381
    %v1501 = vpack.c.bf16 %v1392, %v1389
    %v1502 = vpack.c.bf16 %v1400, %v1397
    %v1503 = vpack.c.bf16 %v1408, %v1405
    %v1504 = vpack.c.bf16 %v1416, %v1413
    %v1505 = vpack.c.bf16 %v1424, %v1421
    %v1506 = vpack.c.bf16 %v1432, %v1429
    %v1507 = vpack.c.bf16 %v1440, %v1437
    %v1508 = vpack.c.bf16 %v1448, %v1445
    %v1509 = vpack.c.bf16 %v1456, %v1453
    %v1510 = vpack.c.bf16 %v1464, %v1461
    %v1511 = vpack.c.bf16 %v1472, %v1469
    %v1512 = vpack.c.bf16 %v1480, %v1477
    %v1513 = vpack.c.bf16 %v1488, %v1485
    %v1514 = vpack.c.bf16 %v1496, %v1493
    %v1515 = vlaneseq
    %v1516 = vshrl.u32 %v1515, 7
    %v1517 = vsub.s32 2, %v1516
    %v1518 = vrot.slane %v125, %v1517
    %v1535 = vunpack.c.l.b16 %v1322
    %v1536 = vunpack.c.l.b16 %v1323
    %v1537 = vunpack.c.l.b16 %v1324
    %v1538 = vunpack.c.l.b16 %v1325
    %v1539 = vunpack.c.l.b16 %v1326
    %v1540 = vunpack.c.l.b16 %v1327
    %v1541 = vunpack.c.l.b16 %v1328
    %v1542 = vunpack.c.l.b16 %v1329
    %v1543 = vunpack.c.l.b16 %v1330
    %v1544 = vunpack.c.l.b16 %v1331
    %v1545 = vunpack.c.l.b16 %v1332
    %v1546 = vunpack.c.l.b16 %v1333
    %v1547 = vunpack.c.l.b16 %v1334
    %v1548 = vunpack.c.l.b16 %v1335
    %v1549 = vunpack.c.l.b16 %v1336
    %v1550 = vunpack.c.l.b16 %v1337
    %v1551 = vpack.c.b16 %v1536, %v1535
    %v1552 = vpack.c.b16 %v1538, %v1537
    %v1553 = vpack.c.b16 %v1540, %v1539
    %v1554 = vpack.c.b16 %v1542, %v1541
    %v1555 = vpack.c.b16 %v1544, %v1543
    %v1556 = vpack.c.b16 %v1546, %v1545
    %v1557 = vpack.c.b16 %v1548, %v1547
    %v1558 = vpack.c.b16 %v1550, %v1549
    %1567 = vmatprep.subr.bf16.mxu0 0
    %1568 = vmatpush1.bf16.msra.mxu0 %v1551
    %1569 = vmatprep.subr.bf16.mxu0 0
    %1570 = vmatpush1.bf16.msra.mxu0 %v1552
    %1571 = vmatprep.subr.bf16.mxu0 0
    %1572 = vmatpush1.bf16.msra.mxu0 %v1553
    %1573 = vmatprep.subr.bf16.mxu0 0
    %1574 = vmatpush1.bf16.msra.mxu0 %v1554
    %1575 = vmatprep.subr.bf16.mxu0 0
    %1576 = vmatpush1.bf16.msra.mxu0 %v1555
    %1577 = vmatprep.subr.bf16.mxu0 0
    %1578 = vmatpush1.bf16.msra.mxu0 %v1556
    %1579 = vmatprep.subr.bf16.mxu0 0
    %1580 = vmatpush1.bf16.msra.mxu0 %v1557
    %1581 = vmatprep.subr.bf16.mxu0 0
    %1582 = vmatpush1.bf16.msra.mxu0 %v1558
    %1583 = vmatprep.subr.bf16.mxu0 0
    %1584 = vmatpush1.bf16.msra.mxu0 0
    %1585 = vmatprep.subr.bf16.mxu0 0
    %1586 = vmatpush1.bf16.msra.mxu0 0
    %1587 = vmatprep.subr.bf16.mxu0 0
    %1588 = vmatpush1.bf16.msra.mxu0 0
    %1589 = vmatprep.subr.bf16.mxu0 0
    %1590 = vmatpush1.bf16.msra.mxu0 0
    %1591 = vmatprep.subr.bf16.mxu0 0
    %1592 = vmatpush1.bf16.msra.mxu0 0
    %1593 = vmatprep.subr.bf16.mxu0 0
    %1594 = vmatpush1.bf16.msra.mxu0 0
    %1595 = vmatprep.subr.bf16.mxu0 0
    %1596 = vmatpush1.bf16.msra.mxu0 0
    %1597 = vmatprep.subr.bf16.mxu0 0
    %1598 = vmatpush1.bf16.msra.mxu0 0
    %1599 = vmatprep.mubr.bf16.mxu0 0
    %1600 = vmatmul.mubr.bf16.gmra.mrb[0].mxu0 %v1499
    %v1601 = vpop.f32.mrb[0].mxu0
    %v1602 = vadd.f32 %v1518, %v1601
    %v1603 = vpop.f32.mrb[0].mxu0
    %v1604 = vpop.f32.mrb[0].mxu0
    %v1605 = vadd.f32 %v1518, %v1604
    %v1606 = vpop.f32.mrb[0].mxu0
    %1607 = vmatprep.mubr.bf16.mxu0 0
    %1608 = vmatmul.mubr.bf16.gmra.mrb[0].mxu0 %v1500
    %v1609 = vpop.f32.mrb[0].mxu0
    %v1610 = vadd.f32 %v1518, %v1609
    %v1611 = vpop.f32.mrb[0].mxu0
    %v1612 = vpop.f32.mrb[0].mxu0
    %v1613 = vadd.f32 %v1518, %v1612
    %v1614 = vpop.f32.mrb[0].mxu0
    %1615 = vmatprep.mubr.bf16.mxu0 0
    %1616 = vmatmul.mubr.bf16.gmra.mrb[0].mxu0 %v1501
    %v1617 = vpop.f32.mrb[0].mxu0
    %v1618 = vadd.f32 %v1518, %v1617
    %v1619 = vpop.f32.mrb[0].mxu0
    %v1620 = vpop.f32.mrb[0].mxu0
    %v1621 = vadd.f32 %v1518, %v1620
    %v1622 = vpop.f32.mrb[0].mxu0
    %1623 = vmatprep.mubr.bf16.mxu0 0
    %1624 = vmatmul.mubr.bf16.gmra.mrb[0].mxu0 %v1502
    %v1625 = vpop.f32.mrb[0].mxu0
    %v1626 = vadd.f32 %v1518, %v1625
    %v1627 = vpop.f32.mrb[0].mxu0
    %v1628 = vpop.f32.mrb[0].mxu0
    %v1629 = vadd.f32 %v1518, %v1628
    %v1630 = vpop.f32.mrb[0].mxu0
    %1631 = vmatprep.mubr.bf16.mxu0 0
    %1632 = vmatmul.mubr.bf16.gmra.mrb[0].mxu0 %v1503
    %v1633 = vpop.f32.mrb[0].mxu0
    %v1634 = vadd.f32 %v1518, %v1633
    %v1635 = vpop.f32.mrb[0].mxu0
    %v1636 = vpop.f32.mrb[0].mxu0
    %v1637 = vadd.f32 %v1518, %v1636
    %v1638 = vpop.f32.mrb[0].mxu0
    %1639 = vmatprep.mubr.bf16.mxu0 0
    %1640 = vmatmul.mubr.bf16.gmra.mrb[0].mxu0 %v1504
    %v1641 = vpop.f32.mrb[0].mxu0
    %v1642 = vadd.f32 %v1518, %v1641
    %v1643 = vpop.f32.mrb[0].mxu0
    %v1644 = vpop.f32.mrb[0].mxu0
    %v1645 = vadd.f32 %v1518, %v1644
    %v1646 = vpop.f32.mrb[0].mxu0
    %1647 = vmatprep.mubr.bf16.mxu0 0
    %1648 = vmatmul.mubr.bf16.gmra.mrb[0].mxu0 %v1505
    %v1649 = vpop.f32.mrb[0].mxu0
    %v1650 = vadd.f32 %v1518, %v1649
    %v1651 = vpop.f32.mrb[0].mxu0
    %v1652 = vpop.f32.mrb[0].mxu0
    %v1653 = vadd.f32 %v1518, %v1652
    %v1654 = vpop.f32.mrb[0].mxu0
    %1655 = vmatprep.mubr.bf16.mxu0 0
    %1656 = vmatmul.mubr.bf16.gmra.mrb[0].mxu0 %v1506
    %v1657 = vpop.f32.mrb[0].mxu0
    %v1658 = vadd.f32 %v1518, %v1657
    %v1659 = vpop.f32.mrb[0].mxu0
    %v1660 = vpop.f32.mrb[0].mxu0
    %v1661 = vadd.f32 %v1518, %v1660
    %v1662 = vpop.f32.mrb[0].mxu0
    %1663 = vmatprep.mubr.bf16.mxu0 0
    %1664 = vmatmul.mubr.bf16.gmra.mrb[0].mxu0 %v1507
    %v1665 = vpop.f32.mrb[0].mxu0
    %v1666 = vadd.f32 %v1518, %v1665
    %v1667 = vpop.f32.mrb[0].mxu0
    %v1668 = vpop.f32.mrb[0].mxu0
    %v1669 = vadd.f32 %v1518, %v1668
    %v1670 = vpop.f32.mrb[0].mxu0
    %1671 = vmatprep.mubr.bf16.mxu0 0
    %1672 = vmatmul.mubr.bf16.gmra.mrb[0].mxu0 %v1508
    %v1673 = vpop.f32.mrb[0].mxu0
    %v1674 = vadd.f32 %v1518, %v1673
    %v1675 = vpop.f32.mrb[0].mxu0
    %v1676 = vpop.f32.mrb[0].mxu0
    %v1677 = vadd.f32 %v1518, %v1676
    %v1678 = vpop.f32.mrb[0].mxu0
    %1679 = vmatprep.mubr.bf16.mxu0 0
    %1680 = vmatmul.mubr.bf16.gmra.mrb[0].mxu0 %v1509
    %v1681 = vpop.f32.mrb[0].mxu0
    %v1682 = vadd.f32 %v1518, %v1681
    %v1683 = vpop.f32.mrb[0].mxu0
    %v1684 = vpop.f32.mrb[0].mxu0
    %v1685 = vadd.f32 %v1518, %v1684
    %v1686 = vpop.f32.mrb[0].mxu0
    %1687 = vmatprep.mubr.bf16.mxu0 0
    %1688 = vmatmul.mubr.bf16.gmra.mrb[0].mxu0 %v1510
    %v1689 = vpop.f32.mrb[0].mxu0
    %v1690 = vadd.f32 %v1518, %v1689
    %v1691 = vpop.f32.mrb[0].mxu0
    %v1692 = vpop.f32.mrb[0].mxu0
    %v1693 = vadd.f32 %v1518, %v1692
    %v1694 = vpop.f32.mrb[0].mxu0
    %1695 = vmatprep.mubr.bf16.mxu0 0
    %1696 = vmatmul.mubr.bf16.gmra.mrb[0].mxu0 %v1511
    %v1697 = vpop.f32.mrb[0].mxu0
    %v1698 = vadd.f32 %v1518, %v1697
    %v1699 = vpop.f32.mrb[0].mxu0
    %v1700 = vpop.f32.mrb[0].mxu0
    %v1701 = vadd.f32 %v1518, %v1700
    %v1702 = vpop.f32.mrb[0].mxu0
    %1703 = vmatprep.mubr.bf16.mxu0 0
    %1704 = vmatmul.mubr.bf16.gmra.mrb[0].mxu0 %v1512
    %v1705 = vpop.f32.mrb[0].mxu0
    %v1706 = vadd.f32 %v1518, %v1705
    %v1707 = vpop.f32.mrb[0].mxu0
    %v1708 = vpop.f32.mrb[0].mxu0
    %v1709 = vadd.f32 %v1518, %v1708
    %v1710 = vpop.f32.mrb[0].mxu0
    %1711 = vmatprep.mubr.bf16.mxu0 0
    %1712 = vmatmul.mubr.bf16.gmra.mrb[0].mxu0 %v1513
    %v1713 = vpop.f32.mrb[0].mxu0
    %v1714 = vadd.f32 %v1518, %v1713
    %v1715 = vpop.f32.mrb[0].mxu0
    %v1716 = vpop.f32.mrb[0].mxu0
    %v1717 = vadd.f32 %v1518, %v1716
    %v1718 = vpop.f32.mrb[0].mxu0
    %1719 = vmatprep.mubr.bf16.mxu0 0
    %1720 = vmatmul.mubr.bf16.gmra.mrb[0].mxu0 %v1514
    %v1721 = vpop.f32.mrb[0].mxu0
    %v1722 = vadd.f32 %v1518, %v1721
    %v1723 = vpop.f32.mrb[0].mxu0
    %v1724 = vpop.f32.mrb[0].mxu0
    %v1725 = vadd.f32 %v1518, %v1724
    %v1726 = vpop.f32.mrb[0].mxu0
    %1727 = vdwg.mxu0
    %1728 = vst [vmem:[#allocation11] sm:$0xff] %v1602
    %1729 = vst [vmem:[#allocation11 + $0x8] sm:$0xff] %v1605
    %1730 = vst [vmem:[#allocation11 + $0x10] sm:$0xff] %v1610
    %1731 = vst [vmem:[#allocation11 + $0x18] sm:$0xff] %v1613
    %1732 = vst [vmem:[#allocation11 + $0x20] sm:$0xff] %v1618
    %1733 = vst [vmem:[#allocation11 + $0x28] sm:$0xff] %v1621
    %1734 = vst [vmem:[#allocation11 + $0x30] sm:$0xff] %v1626
    %1735 = vst [vmem:[#allocation11 + $0x38] sm:$0xff] %v1629
    %1736 = vst [vmem:[#allocation11 + $0x40] sm:$0xff] %v1634
    %1737 = vst [vmem:[#allocation11 + $0x48] sm:$0xff] %v1637
    %1738 = vst [vmem:[#allocation11 + $0x50] sm:$0xff] %v1642
    %1739 = vst [vmem:[#allocation11 + $0x58] sm:$0xff] %v1645
    %1740 = vst [vmem:[#allocation11 + $0x60] sm:$0xff] %v1650
    %1741 = vst [vmem:[#allocation11 + $0x68] sm:$0xff] %v1653
    %1742 = vst [vmem:[#allocation11 + $0x70] sm:$0xff] %v1658
    %1743 = vst [vmem:[#allocation11 + $0x78] sm:$0xff] %v1661
    %1744 = vst [vmem:[#allocation11 + $0x80] sm:$0xff] %v1666
    %1745 = vst [vmem:[#allocation11 + $0x88] sm:$0xff] %v1669
    %1746 = vst [vmem:[#allocation11 + $0x90] sm:$0xff] %v1674
    %1747 = vst [vmem:[#allocation11 + $0x98] sm:$0xff] %v1677
    %1748 = vst [vmem:[#allocation11 + $0xa0] sm:$0xff] %v1682
    %1749 = vst [vmem:[#allocation11 + $0xa8] sm:$0xff] %v1685
    %1750 = vst [vmem:[#allocation11 + $0xb0] sm:$0xff] %v1690
    %1751 = vst [vmem:[#allocation11 + $0xb8] sm:$0xff] %v1693
    %1752 = vst [vmem:[#allocation11 + $0xc0] sm:$0xff] %v1698
    %1753 = vst [vmem:[#allocation11 + $0xc8] sm:$0xff] %v1701
    %1754 = vst [vmem:[#allocation11 + $0xd0] sm:$0xff] %v1706
    %1755 = vst [vmem:[#allocation11 + $0xd8] sm:$0xff] %v1709
    %1756 = vst [vmem:[#allocation11 + $0xe0] sm:$0xff] %v1714
    %1757 = vst [vmem:[#allocation11 + $0xe8] sm:$0xff] %v1717
    %1758 = vst [vmem:[#allocation11 + $0xf0] sm:$0xff] %v1722
    %1759 = vst [vmem:[#allocation11 + $0xf8] sm:$0xff] %v1725
    // Predicated region
    $region46: #{tpu_custom_call.1} parent=1 // pred_check
      _
    $region47: #{tpu_custom_call.1} parent=1 // pred_check_branch
      %1761 = sbr.rel (0) target = $region49
    $region48: #{tpu_custom_call.1} parent=1 // pred_region
      %s1763 = ssub.s32 4096, 4096
      %1764 = vsyncadd [#allocation4], %s1763
      %s1765 = sshll.u32 [#allocation11], 4
      %s1766 = int_to_ptr.vmem [resolvable:$true] %s1765
      %1771 = dma.vmem_to_hbm [thread:$0]  %s1766, 4096, %s6, [#allocation4], 128, 128, 8
    $region49: #{tpu_custom_call.1} parent=1 // pred_fallthru
      _
    // Predicated region
    $region50: #{tpu_custom_call.1} parent=1 // pred_check
      _
    $region51: #{tpu_custom_call.1} parent=1 // pred_check_branch
      %1773 = sbr.rel (0) target = $region53
    $region52: #{tpu_custom_call.1} parent=1 // pred_region
      %1774 = dma.done [#allocation4], 4096
    $region53: #{tpu_custom_call.1} parent=1 // pred_fallthru
      _
    %1775 = vsyncpa [#allocation3], 1
    %1776 = vsyncpa [#allocation6], 1
    %1777 = vsyncpa [#allocation9], 1
    %1778 = vsyncpa [#allocation4], 1

// kernel: tpu_custom_call.1
$region0: #{tpu_custom_call.1}
  #allocation0 [shape = 'u32[]', space=smem, size = 0x4, offset = 0x4, fixed_abs, tag = 'smem constant byte address 0x4 - core index']
  #allocation1 [shape = 'u32[144,128]{1,0:T(1,128)}', space=vmem, size = 0x12000, scoped, tag = 'internal scratch']
  %s0 = inlined_call_operand.hbm [shape: bf16[256,256], index: 0, kind: input, shape index: {}]
  %s1 = inlined_call_operand.hbm [shape: bf16[256,128], index: 1, kind: input, shape index: {}]
  %s2 = inlined_call_operand.vmem [shape: f32[3,128], index: 2, kind: input, shape index: {}]
  %s3 = inlined_call_operand.hbm [shape: bf16[128,128], index: 3, kind: input, shape index: {}]
  %s4 = inlined_call_operand.hbm [shape: bf16[128,128], index: 4, kind: input, shape index: {}]
  %s5 = inlined_call_operand.hbm [shape: bf16[128,128], index: 5, kind: input, shape index: {}]
  %s6 = inlined_call_operand.hbm [shape: f32[256,128], index: 6, kind: output, shape index: {}]
  %s7 = sld [smem:[#allocation0]]
  $region54: #{tpu_custom_call.1} parent=0
    _
  %s9 = ssub.s32 1, %s7
  %s10 = scalar_select 0, %s9, %s7
  $region1: #{tpu_custom_call.1} parent=0
    #allocation2 [shape = 'u8[131072]{0}', space=vmem, size = 0x20000, scoped, tag = 'input window, operand 0, single buffered']
    #allocation3 [shape = 's32[1]{0}', space=sflag, size = 0x4, scoped, tag = 'scoped memory for tpu_custom_call.1']
    #allocation4 [shape = 's32[1]{0}', space=sflag, size = 0x4, scoped, tag = 'scoped memory for tpu_custom_call.1']
    #allocation5 [shape = 'u8[65536]{0}', space=vmem, size = 0x10000, scoped, tag = 'input window, operand 1, single buffered']
    #allocation6 [shape = 's32[1]{0}', space=sflag, size = 0x4, scoped, tag = 'scoped memory for tpu_custom_call.1']
    #allocation7 [shape = 'u8[32768]{0}', space=vmem, size = 0x8000, scoped, tag = 'input window, operand 3, single buffered']
    #allocation8 [shape = 'u8[32768]{0}', space=vmem, size = 0x8000, scoped, tag = 'input window, operand 4, single buffered']
    #allocation9 [shape = 's32[1]{0}', space=sflag, size = 0x4, scoped, tag = 'scoped memory for tpu_custom_call.1']
    #allocation10 [shape = 'u8[32768]{0}', space=vmem, size = 0x8000, scoped, tag = 'input window, operand 5, single buffered']
    #allocation11 [shape = 'u8[131072]{0}', space=vmem, size = 0x20000, scoped, tag = 'output window, operand 0, single buffered']
    %11 = vsyncpa [#allocation3], 0
    %12 = vsyncpa [#allocation6], 0
    %13 = vsyncpa [#allocation9], 0
    %14 = vsyncpa [#allocation4], 0
    // Predicated region
    $region2: #{tpu_custom_call.1} parent=1 // pred_check
      _
    $region3: #{tpu_custom_call.1} parent=1 // pred_check_branch
      %16 = sbr.rel (0) target = $region5
    $region4: #{tpu_custom_call.1} parent=1 // pred_region
      %s18 = ssub.s32 4096, 4096
      %19 = vsyncadd [#allocation3], %s18
      %s20 = sshll.u32 [#allocation2], 4
      %s21 = int_to_ptr.vmem [resolvable:$true] %s20
      %26 = dma.hbm_to_vmem [thread:$0]  %s0, 4096, %s21, [#allocation3], 128, 128, 8
    $region5: #{tpu_custom_call.1} parent=1 // pred_fallthru
      _
    // Predicated region
    $region6: #{tpu_custom_call.1} parent=1 // pred_check
      _
    $region7: #{tpu_custom_call.1} parent=1 // pred_check_branch
      %28 = sbr.rel (0) target = $region9
    $region8: #{tpu_custom_call.1} parent=1 // pred_region
      %s30 = ssub.s32 2048, 2048
      %31 = vsyncadd [#allocation6], %s30
      %s32 = sshll.u32 [#allocation5], 4
      %s33 = int_to_ptr.vmem [resolvable:$true] %s32
      %38 = dma.hbm_to_vmem [thread:$0]  %s1, 2048, %s33, [#allocation6], 64, 64, 4
    $region9: #{tpu_custom_call.1} parent=1 // pred_fallthru
      _
    // Predicated region
    $region10: #{tpu_custom_call.1} parent=1 // pred_check
      _
    $region11: #{tpu_custom_call.1} parent=1 // pred_check_branch
      %40 = sbr.rel (0) target = $region13
    $region12: #{tpu_custom_call.1} parent=1 // pred_region
      _
    $region13: #{tpu_custom_call.1} parent=1 // pred_fallthru
      _
    // Predicated region
    $region14: #{tpu_custom_call.1} parent=1 // pred_check
      _
    $region15: #{tpu_custom_call.1} parent=1 // pred_check_branch
      %42 = sbr.rel (0) target = $region17
    $region16: #{tpu_custom_call.1} parent=1 // pred_region
      %s44 = ssub.s32 1024, 1024
      %45 = vsyncadd [#allocation6], %s44
      %s46 = sshll.u32 [#allocation7], 4
      %s47 = int_to_ptr.vmem [resolvable:$true] %s46
      %52 = dma.hbm_to_vmem [thread:$0]  %s3, 1024, %s47, [#allocation6], 64, 64, 4
    $region17: #{tpu_custom_call.1} parent=1 // pred_fallthru
      _
    // Predicated region
    $region18: #{tpu_custom_call.1} parent=1 // pred_check
      _
    $region19: #{tpu_custom_call.1} parent=1 // pred_check_branch
      %54 = sbr.rel (0) target = $region21
    $region20: #{tpu_custom_call.1} parent=1 // pred_region
      %s56 = ssub.s32 1024, 1024
      %57 = vsyncadd [#allocation9], %s56
      %s58 = sshll.u32 [#allocation8], 4
      %s59 = int_to_ptr.vmem [resolvable:$true] %s58
      %64 = dma.hbm_to_vmem [thread:$0]  %s4, 1024, %s59, [#allocation9], 64, 64, 4
    $region21: #{tpu_custom_call.1} parent=1 // pred_fallthru
      _
    // Predicated region
    $region22: #{tpu_custom_call.1} parent=1 // pred_check
      _
    $region23: #{tpu_custom_call.1} parent=1 // pred_check_branch
      %66 = sbr.rel (0) target = $region25
    $region24: #{tpu_custom_call.1} parent=1 // pred_region
      %s68 = ssub.s32 1024, 1024
      %69 = vsyncadd [#allocation9], %s68
      %s70 = sshll.u32 [#allocation10], 4
      %s71 = int_to_ptr.vmem [resolvable:$true] %s70
      %76 = dma.hbm_to_vmem [thread:$0]  %s5, 1024, %s71, [#allocation9], 64, 64, 4
    $region25: #{tpu_custom_call.1} parent=1 // pred_fallthru
      _
    // Predicated region
    $region26: #{tpu_custom_call.1} parent=1 // pred_check
      _
    $region27: #{tpu_custom_call.1} parent=1 // pred_check_branch
      %78 = sbr.rel (0) target = $region29
    $region28: #{tpu_custom_call.1} parent=1 // pred_region
      %79 = dma.done [#allocation3], 4096
    $region29: #{tpu_custom_call.1} parent=1 // pred_fallthru
      _
    // Predicated region
    $region30: #{tpu_custom_call.1} parent=1 // pred_check
      _
    $region31: #{tpu_custom_call.1} parent=1 // pred_check_branch
      %81 = sbr.rel (0) target = $region33
    $region32: #{tpu_custom_call.1} parent=1 // pred_region
      %82 = dma.done [#allocation6], 2048
    $region33: #{tpu_custom_call.1} parent=1 // pred_fallthru
      _
    // Predicated region
    $region34: #{tpu_custom_call.1} parent=1 // pred_check
      _
    $region35: #{tpu_custom_call.1} parent=1 // pred_check_branch
      %84 = sbr.rel (0) target = $region37
    $region36: #{tpu_custom_call.1} parent=1 // pred_region
      %85 = dma.done [#allocation6], 1024
    $region37: #{tpu_custom_call.1} parent=1 // pred_fallthru
      _
    // Predicated region
    $region38: #{tpu_custom_call.1} parent=1 // pred_check
      _
    $region39: #{tpu_custom_call.1} parent=1 // pred_check_branch
      %87 = sbr.rel (0) target = $region41
    $region40: #{tpu_custom_call.1} parent=1 // pred_region
      %88 = dma.done [#allocation9], 1024
    $region41: #{tpu_custom_call.1} parent=1 // pred_fallthru
      _
    // Predicated region
    $region42: #{tpu_custom_call.1} parent=1 // pred_check
      _
    $region43: #{tpu_custom_call.1} parent=1 // pred_check_branch
      %90 = sbr.rel (0) target = $region45
    $region44: #{tpu_custom_call.1} parent=1 // pred_region
      %91 = dma.done [#allocation9], 1024
    $region45: #{tpu_custom_call.1} parent=1 // pred_fallthru
      _
    %v93 = vld [vmem:[#allocation2] sm:$0xff]
    %v94 = vld [vmem:[#allocation2 + $0x8] sm:$0xff]
    %v95 = vld [vmem:[#allocation2 + $0x10] sm:$0xff]
    %v96 = vld [vmem:[#allocation2 + $0x18] sm:$0xff]
    %v97 = vld [vmem:[#allocation2 + $0x20] sm:$0xff]
    %v98 = vld [vmem:[#allocation2 + $0x28] sm:$0xff]
    %v99 = vld [vmem:[#allocation2 + $0x30] sm:$0xff]
    %v100 = vld [vmem:[#allocation2 + $0x38] sm:$0xff]
    %v101 = vld [vmem:[#allocation2 + $0x40] sm:$0xff]
    %v102 = vld [vmem:[#allocation2 + $0x48] sm:$0xff]
    %v103 = vld [vmem:[#allocation2 + $0x50] sm:$0xff]
    %v104 = vld [vmem:[#allocation2 + $0x58] sm:$0xff]
    %v105 = vld [vmem:[#allocation2 + $0x60] sm:$0xff]
    %v106 = vld [vmem:[#allocation2 + $0x68] sm:$0xff]
    %v107 = vld [vmem:[#allocation2 + $0x70] sm:$0xff]
    %v108 = vld [vmem:[#allocation2 + $0x78] sm:$0xff]
    %v109 = vld [vmem:[#allocation2 + $0x80] sm:$0xff]
    %v110 = vld [vmem:[#allocation2 + $0x88] sm:$0xff]
    %v111 = vld [vmem:[#allocation2 + $0x90] sm:$0xff]
    %v112 = vld [vmem:[#allocation2 + $0x98] sm:$0xff]
    %v113 = vld [vmem:[#allocation2 + $0xa0] sm:$0xff]
    %v114 = vld [vmem:[#allocation2 + $0xa8] sm:$0xff]
    %v115 = vld [vmem:[#allocation2 + $0xb0] sm:$0xff]
    %v116 = vld [vmem:[#allocation2 + $0xb8] sm:$0xff]
    %v117 = vld [vmem:[#allocation2 + $0xc0] sm:$0xff]
    %v118 = vld [vmem:[#allocation2 + $0xc8] sm:$0xff]
    %v119 = vld [vmem:[#allocation2 + $0xd0] sm:$0xff]
    %v120 = vld [vmem:[#allocation2 + $0xd8] sm:$0xff]
    %v121 = vld [vmem:[#allocation2 + $0xe0] sm:$0xff]
    %v122 = vld [vmem:[#allocation2 + $0xe8] sm:$0xff]
    %v123 = vld [vmem:[#allocation2 + $0xf0] sm:$0xff]
    %v124 = vld [vmem:[#allocation2 + $0xf8] sm:$0xff]
    %v125 = vld [vmem:[%s2] sm:$0x7]
    %v126 = vld [vmem:[#allocation5] sm:$0xf]
    %v127 = vld [vmem:[#allocation5 + $0x4] sm:$0xf]
    %v128 = vld [vmem:[#allocation5 + $0x8] sm:$0xf]
    %v129 = vld [vmem:[#allocation5 + $0xc] sm:$0xf]
    %v130 = vld [vmem:[#allocation5 + $0x10] sm:$0xf]
    %v131 = vld [vmem:[#allocation5 + $0x14] sm:$0xf]
    %v132 = vld [vmem:[#allocation5 + $0x18] sm:$0xf]
    %v133 = vld [vmem:[#allocation5 + $0x1c] sm:$0xf]
    %v134 = vld [vmem:[#allocation5 + $0x20] sm:$0xf]
    %v135 = vld [vmem:[#allocation5 + $0x24] sm:$0xf]
    %v136 = vld [vmem:[#allocation5 + $0x28] sm:$0xf]
    %v137 = vld [vmem:[#allocation5 + $0x2c] sm:$0xf]
    %v138 = vld [vmem:[#allocation5 + $0x30] sm:$0xf]
    %v139 = vld [vmem:[#allocation5 + $0x34] sm:$0xf]
    %v140 = vld [vmem:[#allocation5 + $0x38] sm:$0xf]
    %v141 = vld [vmem:[#allocation5 + $0x3c] sm:$0xf]
    %v142 = vld [vmem:[#allocation5 + $0x40] sm:$0xf]
    %v143 = vld [vmem:[#allocation5 + $0x44] sm:$0xf]
    %v144 = vld [vmem:[#allocation5 + $0x48] sm:$0xf]
    %v145 = vld [vmem:[#allocation5 + $0x4c] sm:$0xf]
    %v146 = vld [vmem:[#allocation5 + $0x50] sm:$0xf]
    %v147 = vld [vmem:[#allocation5 + $0x54] sm:$0xf]
    %v148 = vld [vmem:[#allocation5 + $0x58] sm:$0xf]
    %v149 = vld [vmem:[#allocation5 + $0x5c] sm:$0xf]
    %v150 = vld [vmem:[#allocation5 + $0x60] sm:$0xf]
    %v151 = vld [vmem:[#allocation5 + $0x64] sm:$0xf]
    %v152 = vld [vmem:[#allocation5 + $0x68] sm:$0xf]
    %v153 = vld [vmem:[#allocation5 + $0x6c] sm:$0xf]
    %v154 = vld [vmem:[#allocation5 + $0x70] sm:$0xf]
    %v155 = vld [vmem:[#allocation5 + $0x74] sm:$0xf]
    %v156 = vld [vmem:[#allocation5 + $0x78] sm:$0xf]
    %v157 = vld [vmem:[#allocation5 + $0x7c] sm:$0xf]
    %v158 = vld [vmem:[#allocation7] sm:$0xf]
    %v159 = vld [vmem:[#allocation7 + $0x4] sm:$0xf]
    %v160 = vld [vmem:[#allocation7 + $0x8] sm:$0xf]
    %v161 = vld [vmem:[#allocation7 + $0xc] sm:$0xf]
    %v162 = vld [vmem:[#allocation7 + $0x10] sm:$0xf]
    %v163 = vld [vmem:[#allocation7 + $0x14] sm:$0xf]
    %v164 = vld [vmem:[#allocation7 + $0x18] sm:$0xf]
    %v165 = vld [vmem:[#allocation7 + $0x1c] sm:$0xf]
    %v166 = vld [vmem:[#allocation7 + $0x20] sm:$0xf]
    %v167 = vld [vmem:[#allocation7 + $0x24] sm:$0xf]
    %v168 = vld [vmem:[#allocation7 + $0x28] sm:$0xf]
    %v169 = vld [vmem:[#allocation7 + $0x2c] sm:$0xf]
    %v170 = vld [vmem:[#allocation7 + $0x30] sm:$0xf]
    %v171 = vld [vmem:[#allocation7 + $0x34] sm:$0xf]
    %v172 = vld [vmem:[#allocation7 + $0x38] sm:$0xf]
    %v173 = vld [vmem:[#allocation7 + $0x3c] sm:$0xf]
    %v206 = vunpack.c.l.b16 %v93
    %v207 = vunpack.c.h.b16 %v93
    %v208 = vunpack.c.l.b16 %v94
    %v209 = vunpack.c.h.b16 %v94
    %v210 = vunpack.c.l.b16 %v95
    %v211 = vunpack.c.h.b16 %v95
    %v212 = vunpack.c.l.b16 %v96
    %v213 = vunpack.c.h.b16 %v96
    %v214 = vunpack.c.l.b16 %v97
    %v215 = vunpack.c.h.b16 %v97
    %v216 = vunpack.c.l.b16 %v98
    %v217 = vunpack.c.h.b16 %v98
    %v218 = vunpack.c.l.b16 %v99
    %v219 = vunpack.c.h.b16 %v99
    %v220 = vunpack.c.l.b16 %v100
    %v221 = vunpack.c.h.b16 %v100
    %v222 = vunpack.c.l.b16 %v101
    %v223 = vunpack.c.h.b16 %v101
    %v224 = vunpack.c.l.b16 %v102
    %v225 = vunpack.c.h.b16 %v102
    %v226 = vunpack.c.l.b16 %v103
    %v227 = vunpack.c.h.b16 %v103
    %v228 = vunpack.c.l.b16 %v104
    %v229 = vunpack.c.h.b16 %v104
    %v230 = vunpack.c.l.b16 %v105
    %v231 = vunpack.c.h.b16 %v105
    %v232 = vunpack.c.l.b16 %v106
    %v233 = vunpack.c.h.b16 %v106
    %v234 = vunpack.c.l.b16 %v107
    %v235 = vunpack.c.h.b16 %v107
    %v236 = vunpack.c.l.b16 %v108
    %v237 = vunpack.c.h.b16 %v108
    %v238 = vunpack.c.l.b16 %v109
    %v239 = vunpack.c.h.b16 %v109
    %v240 = vunpack.c.l.b16 %v110
    %v241 = vunpack.c.h.b16 %v110
    %v242 = vunpack.c.l.b16 %v111
    %v243 = vunpack.c.h.b16 %v111
    %v244 = vunpack.c.l.b16 %v112
    %v245 = vunpack.c.h.b16 %v112
    %v246 = vunpack.c.l.b16 %v113
    %v247 = vunpack.c.h.b16 %v113
    %v248 = vunpack.c.l.b16 %v114
    %v249 = vunpack.c.h.b16 %v114
    %v250 = vunpack.c.l.b16 %v115
    %v251 = vunpack.c.h.b16 %v115
    %v252 = vunpack.c.l.b16 %v116
    %v253 = vunpack.c.h.b16 %v116
    %v254 = vunpack.c.l.b16 %v117
    %v255 = vunpack.c.h.b16 %v117
    %v256 = vunpack.c.l.b16 %v118
    %v257 = vunpack.c.h.b16 %v118
    %v258 = vunpack.c.l.b16 %v119
    %v259 = vunpack.c.h.b16 %v119
    %v260 = vunpack.c.l.b16 %v120
    %v261 = vunpack.c.h.b16 %v120
    %v262 = vunpack.c.l.b16 %v121
    %v263 = vunpack.c.h.b16 %v121
    %v264 = vunpack.c.l.b16 %v122
    %v265 = vunpack.c.h.b16 %v122
    %v266 = vunpack.c.l.b16 %v123
    %v267 = vunpack.c.h.b16 %v123
    %v268 = vunpack.c.l.b16 %v124
    %v269 = vunpack.c.h.b16 %v124
    %v270 = vpack.c.b16 %v208, %v206
    %v271 = vpack.c.b16 %v209, %v207
    %v272 = vpack.c.b16 %v212, %v210
    %v273 = vpack.c.b16 %v213, %v211
    %v274 = vpack.c.b16 %v216, %v214
    %v275 = vpack.c.b16 %v217, %v215
    %v276 = vpack.c.b16 %v220, %v218
    %v277 = vpack.c.b16 %v221, %v219
    %v278 = vpack.c.b16 %v224, %v222
    %v279 = vpack.c.b16 %v225, %v223
    %v280 = vpack.c.b16 %v228, %v226
    %v281 = vpack.c.b16 %v229, %v227
    %v282 = vpack.c.b16 %v232, %v230
    %v283 = vpack.c.b16 %v233, %v231
    %v284 = vpack.c.b16 %v236, %v234
    %v285 = vpack.c.b16 %v237, %v235
    %v286 = vpack.c.b16 %v240, %v238
    %v287 = vpack.c.b16 %v241, %v239
    %v288 = vpack.c.b16 %v244, %v242
    %v289 = vpack.c.b16 %v245, %v243
    %v290 = vpack.c.b16 %v248, %v246
    %v291 = vpack.c.b16 %v249, %v247
    %v292 = vpack.c.b16 %v252, %v250
    %v293 = vpack.c.b16 %v253, %v251
    %v294 = vpack.c.b16 %v256, %v254
    %v295 = vpack.c.b16 %v257, %v255
    %v296 = vpack.c.b16 %v260, %v258
    %v297 = vpack.c.b16 %v261, %v259
    %v298 = vpack.c.b16 %v264, %v262
    %v299 = vpack.c.b16 %v265, %v263
    %v300 = vpack.c.b16 %v268, %v266
    %v301 = vpack.c.b16 %v269, %v267
    %v366 = vunpack.c.l.b16 %v126
    %v367 = vunpack.c.l.b16 %v127
    %v368 = vunpack.c.l.b16 %v128
    %v369 = vunpack.c.l.b16 %v129
    %v370 = vunpack.c.l.b16 %v130
    %v371 = vunpack.c.l.b16 %v131
    %v372 = vunpack.c.l.b16 %v132
    %v373 = vunpack.c.l.b16 %v133
    %v374 = vunpack.c.l.b16 %v134
    %v375 = vunpack.c.l.b16 %v135
    %v376 = vunpack.c.l.b16 %v136
    %v377 = vunpack.c.l.b16 %v137
    %v378 = vunpack.c.l.b16 %v138
    %v379 = vunpack.c.l.b16 %v139
    %v380 = vunpack.c.l.b16 %v140
    %v381 = vunpack.c.l.b16 %v141
    %v382 = vunpack.c.l.b16 %v142
    %v383 = vunpack.c.l.b16 %v143
    %v384 = vunpack.c.l.b16 %v144
    %v385 = vunpack.c.l.b16 %v145
    %v386 = vunpack.c.l.b16 %v146
    %v387 = vunpack.c.l.b16 %v147
    %v388 = vunpack.c.l.b16 %v148
    %v389 = vunpack.c.l.b16 %v149
    %v390 = vunpack.c.l.b16 %v150
    %v391 = vunpack.c.l.b16 %v151
    %v392 = vunpack.c.l.b16 %v152
    %v393 = vunpack.c.l.b16 %v153
    %v394 = vunpack.c.l.b16 %v154
    %v395 = vunpack.c.l.b16 %v155
    %v396 = vunpack.c.l.b16 %v156
    %v397 = vunpack.c.l.b16 %v157
    %v398 = vpack.c.b16 %v367, %v366
    %v399 = vpack.c.b16 %v369, %v368
    %v400 = vpack.c.b16 %v371, %v370
    %v401 = vpack.c.b16 %v373, %v372
    %v402 = vpack.c.b16 %v375, %v374
    %v403 = vpack.c.b16 %v377, %v376
    %v404 = vpack.c.b16 %v379, %v378
    %v405 = vpack.c.b16 %v381, %v380
    %v406 = vpack.c.b16 %v383, %v382
    %v407 = vpack.c.b16 %v385, %v384
    %v408 = vpack.c.b16 %v387, %v386
    %v409 = vpack.c.b16 %v389, %v388
    %v410 = vpack.c.b16 %v391, %v390
    %v411 = vpack.c.b16 %v393, %v392
    %v412 = vpack.c.b16 %v395, %v394
    %v413 = vpack.c.b16 %v397, %v396
    %430 = vmatprep.subr.bf16.mxu0 0
    %431 = vmatpush1.bf16.msra.mxu0 %v398
    %432 = vmatprep.subr.bf16.mxu0 0
    %433 = vmatpush1.bf16.msra.mxu0 %v399
    %434 = vmatprep.subr.bf16.mxu0 0
    %435 = vmatpush1.bf16.msra.mxu0 %v400
    %436 = vmatprep.subr.bf16.mxu0 0
    %437 = vmatpush1.bf16.msra.mxu0 %v401
    %438 = vmatprep.subr.bf16.mxu0 0
    %439 = vmatpush1.bf16.msra.mxu0 %v402
    %440 = vmatprep.subr.bf16.mxu0 0
    %441 = vmatpush1.bf16.msra.mxu0 %v403
    %442 = vmatprep.subr.bf16.mxu0 0
    %443 = vmatpush1.bf16.msra.mxu0 %v404
    %444 = vmatprep.subr.bf16.mxu0 0
    %445 = vmatpush1.bf16.msra.mxu0 %v405
    %446 = vmatprep.subr.bf16.mxu0 0
    %447 = vmatpush1.bf16.msra.mxu0 %v406
    %448 = vmatprep.subr.bf16.mxu0 0
    %449 = vmatpush1.bf16.msra.mxu0 %v407
    %450 = vmatprep.subr.bf16.mxu0 0
    %451 = vmatpush1.bf16.msra.mxu0 %v408
    %452 = vmatprep.subr.bf16.mxu0 0
    %453 = vmatpush1.bf16.msra.mxu0 %v409
    %454 = vmatprep.subr.bf16.mxu0 0
    %455 = vmatpush1.bf16.msra.mxu0 %v410
    %456 = vmatprep.subr.bf16.mxu0 0
    %457 = vmatpush1.bf16.msra.mxu0 %v411
    %458 = vmatprep.subr.bf16.mxu0 0
    %459 = vmatpush1.bf16.msra.mxu0 %v412
    %460 = vmatprep.subr.bf16.mxu0 0
    %461 = vmatpush1.bf16.msra.mxu0 %v413
    %462 = vmatprep.mubr.bf16.mxu0 %v271
    %463 = vmatmul.mubr.bf16.gmra.mrb[0].mxu0 %v270
    %v464 = vpop.f32.mrb[0].mxu0
    %v465 = vadd.f32 0.0, %v464
    %v466 = vpop.f32.mrb[0].mxu0
    %v467 = vpop.f32.mrb[0].mxu0
    %v468 = vadd.f32 0.0, %v467
    %v469 = vpop.f32.mrb[0].mxu0
    %470 = vmatprep.mubr.bf16.mxu0 %v273
    %471 = vmatmul.mubr.bf16.gmra.mrb[0].mxu0 %v272
    %v472 = vpop.f32.mrb[0].mxu0
    %v473 = vadd.f32 0.0, %v472
    %v474 = vpop.f32.mrb[0].mxu0
    %v475 = vpop.f32.mrb[0].mxu0
    %v476 = vadd.f32 0.0, %v475
    %v477 = vpop.f32.mrb[0].mxu0
    %478 = vmatprep.mubr.bf16.mxu0 %v275
    %479 = vmatmul.mubr.bf16.gmra.mrb[0].mxu0 %v274
    %v480 = vpop.f32.mrb[0].mxu0
    %v481 = vadd.f32 0.0, %v480
    %v482 = vpop.f32.mrb[0].mxu0
    %v483 = vpop.f32.mrb[0].mxu0
    %v484 = vadd.f32 0.0, %v483
    %v485 = vpop.f32.mrb[0].mxu0
    %486 = vmatprep.mubr.bf16.mxu0 %v277
    %487 = vmatmul.mubr.bf16.gmra.mrb[0].mxu0 %v276
    %v488 = vpop.f32.mrb[0].mxu0
    %v489 = vadd.f32 0.0, %v488
    %v490 = vpop.f32.mrb[0].mxu0
    %v491 = vpop.f32.mrb[0].mxu0
    %v492 = vadd.f32 0.0, %v491
    %v493 = vpop.f32.mrb[0].mxu0
    %494 = vmatprep.mubr.bf16.mxu0 %v279
    %495 = vmatmul.mubr.bf16.gmra.mrb[0].mxu0 %v278
    %v496 = vpop.f32.mrb[0].mxu0
    %v497 = vadd.f32 0.0, %v496
    %v498 = vpop.f32.mrb[0].mxu0
    %v499 = vpop.f32.mrb[0].mxu0
    %v500 = vadd.f32 0.0, %v499
    %v501 = vpop.f32.mrb[0].mxu0
    %502 = vmatprep.mubr.bf16.mxu0 %v281
    %503 = vmatmul.mubr.bf16.gmra.mrb[0].mxu0 %v280
    %v504 = vpop.f32.mrb[0].mxu0
    %v505 = vadd.f32 0.0, %v504
    %v506 = vpop.f32.mrb[0].mxu0
    %v507 = vpop.f32.mrb[0].mxu0
    %v508 = vadd.f32 0.0, %v507
    %v509 = vpop.f32.mrb[0].mxu0
    %510 = vmatprep.mubr.bf16.mxu0 %v283
    %511 = vmatmul.mubr.bf16.gmra.mrb[0].mxu0 %v282
    %v512 = vpop.f32.mrb[0].mxu0
    %v513 = vadd.f32 0.0, %v512
    %v514 = vpop.f32.mrb[0].mxu0
    %v515 = vpop.f32.mrb[0].mxu0
    %v516 = vadd.f32 0.0, %v515
    %v517 = vpop.f32.mrb[0].mxu0
    %518 = vmatprep.mubr.bf16.mxu0 %v285
    %519 = vmatmul.mubr.bf16.gmra.mrb[0].mxu0 %v284
    %v520 = vpop.f32.mrb[0].mxu0
    %v521 = vadd.f32 0.0, %v520
    %v522 = vpop.f32.mrb[0].mxu0
    %v523 = vpop.f32.mrb[0].mxu0
    %v524 = vadd.f32 0.0, %v523
    %v525 = vpop.f32.mrb[0].mxu0
    %526 = vmatprep.mubr.bf16.mxu0 %v287
    %527 = vmatmul.mubr.bf16.gmra.mrb[0].mxu0 %v286
    %v528 = vpop.f32.mrb[0].mxu0
    %v529 = vadd.f32 0.0, %v528
    %v530 = vpop.f32.mrb[0].mxu0
    %v531 = vpop.f32.mrb[0].mxu0
    %v532 = vadd.f32 0.0, %v531
    %v533 = vpop.f32.mrb[0].mxu0
    %534 = vmatprep.mubr.bf16.mxu0 %v289
    %535 = vmatmul.mubr.bf16.gmra.mrb[0].mxu0 %v288
    %v536 = vpop.f32.mrb[0].mxu0
    %v537 = vadd.f32 0.0, %v536
    %v538 = vpop.f32.mrb[0].mxu0
    %v539 = vpop.f32.mrb[0].mxu0
    %v540 = vadd.f32 0.0, %v539
    %v541 = vpop.f32.mrb[0].mxu0
    %542 = vmatprep.mubr.bf16.mxu0 %v291
    %543 = vmatmul.mubr.bf16.gmra.mrb[0].mxu0 %v290
    %v544 = vpop.f32.mrb[0].mxu0
    %v545 = vadd.f32 0.0, %v544
    %v546 = vpop.f32.mrb[0].mxu0
    %v547 = vpop.f32.mrb[0].mxu0
    %v548 = vadd.f32 0.0, %v547
    %v549 = vpop.f32.mrb[0].mxu0
    %550 = vmatprep.mubr.bf16.mxu0 %v293
    %551 = vmatmul.mubr.bf16.gmra.mrb[0].mxu0 %v292
    %v552 = vpop.f32.mrb[0].mxu0
    %v553 = vadd.f32 0.0, %v552
    %v554 = vpop.f32.mrb[0].mxu0
    %v555 = vpop.f32.mrb[0].mxu0
    %v556 = vadd.f32 0.0, %v555
    %v557 = vpop.f32.mrb[0].mxu0
    %558 = vmatprep.mubr.bf16.mxu0 %v295
    %559 = vmatmul.mubr.bf16.gmra.mrb[0].mxu0 %v294
    %v560 = vpop.f32.mrb[0].mxu0
    %v561 = vadd.f32 0.0, %v560
    %v562 = vpop.f32.mrb[0].mxu0
    %v563 = vpop.f32.mrb[0].mxu0
    %v564 = vadd.f32 0.0, %v563
    %v565 = vpop.f32.mrb[0].mxu0
    %566 = vmatprep.mubr.bf16.mxu0 %v297
    %567 = vmatmul.mubr.bf16.gmra.mrb[0].mxu0 %v296
    %v568 = vpop.f32.mrb[0].mxu0
    %v569 = vadd.f32 0.0, %v568
    %v570 = vpop.f32.mrb[0].mxu0
    %v571 = vpop.f32.mrb[0].mxu0
    %v572 = vadd.f32 0.0, %v571
    %v573 = vpop.f32.mrb[0].mxu0
    %574 = vmatprep.mubr.bf16.mxu0 %v299
    %575 = vmatmul.mubr.bf16.gmra.mrb[0].mxu0 %v298
    %v576 = vpop.f32.mrb[0].mxu0
    %v577 = vadd.f32 0.0, %v576
    %v578 = vpop.f32.mrb[0].mxu0
    %v579 = vpop.f32.mrb[0].mxu0
    %v580 = vadd.f32 0.0, %v579
    %v581 = vpop.f32.mrb[0].mxu0
    %582 = vmatprep.mubr.bf16.mxu0 %v301
    %583 = vmatmul.mubr.bf16.gmra.mrb[0].mxu0 %v300
    %v584 = vpop.f32.mrb[0].mxu0
    %v585 = vadd.f32 0.0, %v584
    %v586 = vpop.f32.mrb[0].mxu0
    %v587 = vpop.f32.mrb[0].mxu0
    %v588 = vadd.f32 0.0, %v587
    %v589 = vpop.f32.mrb[0].mxu0
    %590 = vdwg.mxu0
    %v591 = vpack.c.bf16 %v468, %v465
    %v592 = vpack.c.bf16 %v476, %v473
    %v593 = vpack.c.bf16 %v484, %v481
    %v594 = vpack.c.bf16 %v492, %v489
    %v595 = vpack.c.bf16 %v500, %v497
    %v596 = vpack.c.bf16 %v508, %v505
    %v597 = vpack.c.bf16 %v516, %v513
    %v598 = vpack.c.bf16 %v524, %v521
    %v599 = vpack.c.bf16 %v532, %v529
    %v600 = vpack.c.bf16 %v540, %v537
    %v601 = vpack.c.bf16 %v548, %v545
    %v602 = vpack.c.bf16 %v556, %v553
    %v603 = vpack.c.bf16 %v564, %v561
    %v604 = vpack.c.bf16 %v572, %v569
    %v605 = vpack.c.bf16 %v580, %v577
    %v606 = vpack.c.bf16 %v588, %v585
    %v607 = vlaneseq
    %v608 = vshrl.u32 %v607, 7
    %v609 = vsub.s32 0, %v608
    %v610 = vrot.slane %v125, %v609
    %v627 = vunpack.c.l.b16 %v158
    %v628 = vunpack.c.l.b16 %v159
    %v629 = vunpack.c.l.b16 %v160
    %v630 = vunpack.c.l.b16 %v161
    %v631 = vunpack.c.l.b16 %v162
    %v632 = vunpack.c.l.b16 %v163
    %v633 = vunpack.c.l.b16 %v164
    %v634 = vunpack.c.l.b16 %v165
    %v635 = vunpack.c.l.b16 %v166
    %v636 = vunpack.c.l.b16 %v167
    %v637 = vunpack.c.l.b16 %v168
    %v638 = vunpack.c.l.b16 %v169
    %v639 = vunpack.c.l.b16 %v170
    %v640 = vunpack.c.l.b16 %v171
    %v641 = vunpack.c.l.b16 %v172
    %v642 = vunpack.c.l.b16 %v173
    %v643 = vpack.c.b16 %v628, %v627
    %v644 = vpack.c.b16 %v630, %v629
    %v645 = vpack.c.b16 %v632, %v631
    %v646 = vpack.c.b16 %v634, %v633
    %v647 = vpack.c.b16 %v636, %v635
    %v648 = vpack.c.b16 %v638, %v637
    %v649 = vpack.c.b16 %v640, %v639
    %v650 = vpack.c.b16 %v642, %v641
    %659 = vmatprep.subr.bf16.mxu0 0
    %660 = vmatpush1.bf16.msra.mxu0 %v643
    %661 = vmatprep.subr.bf16.mxu0 0
    %662 = vmatpush1.bf16.msra.mxu0 %v644
    %663 = vmatprep.subr.bf16.mxu0 0
    %664 = vmatpush1.bf16.msra.mxu0 %v645
    %665 = vmatprep.subr.bf16.mxu0 0
    %666 = vmatpush1.bf16.msra.mxu0 %v646
    %667 = vmatprep.subr.bf16.mxu0 0
    %668 = vmatpush1.bf16.msra.mxu0 %v647
    %669 = vmatprep.subr.bf16.mxu0 0
    %670 = vmatpush1.bf16.msra.mxu0 %v648
    %671 = vmatprep.subr.bf16.mxu0 0
    %672 = vmatpush1.bf16.msra.mxu0 %v649
    %673 = vmatprep.subr.bf16.mxu0 0
    %674 = vmatpush1.bf16.msra.mxu0 %v650
    %675 = vmatprep.subr.bf16.mxu0 0
    %676 = vmatpush1.bf16.msra.mxu0 0
    %677 = vmatprep.subr.bf16.mxu0 0
    %678 = vmatpush1.bf16.msra.mxu0 0
    %679 = vmatprep.subr.bf16.mxu0 0
    %680 = vmatpush1.bf16.msra.mxu0 0
    %681 = vmatprep.subr.bf16.mxu0 0
    %682 = vmatpush1.bf16.msra.mxu0 0
    %683 = vmatprep.subr.bf16.mxu0 0
    %684 = vmatpush1.bf16.msra.mxu0 0
    %685 = vmatprep.subr.bf16.mxu0 0
    %686 = vmatpush1.bf16.msra.mxu0 0
    %687 = vmatprep.subr.bf16.mxu0 0
    %688 = vmatpush1.bf16.msra.mxu0 0
    %689 = vmatprep.subr.bf16.mxu0 0
    %690 = vmatpush1.bf16.msra.mxu0 0
    %691 = vmatprep.mubr.bf16.mxu0 0
    %692 = vmatmul.mubr.bf16.gmra.mrb[0].mxu0 %v591
    %v693 = vpop.f32.mrb[0].mxu0
    %v694 = vadd.f32 %v610, %v693
    %v695 = vpop.f32.mrb[0].mxu0
    %v696 = vpop.f32.mrb[0].mxu0
    %v697 = vadd.f32 %v610, %v696
    %v698 = vpop.f32.mrb[0].mxu0
    %699 = vmatprep.mubr.bf16.mxu0 0
    %700 = vmatmul.mubr.bf16.gmra.mrb[0].mxu0 %v592
    %v701 = vpop.f32.mrb[0].mxu0
    %v702 = vadd.f32 %v610, %v701
    %v703 = vpop.f32.mrb[0].mxu0
    %v704 = vpop.f32.mrb[0].mxu0
    %v705 = vadd.f32 %v610, %v704
    %v706 = vpop.f32.mrb[0].mxu0
    %707 = vmatprep.mubr.bf16.mxu0 0
    %708 = vmatmul.mubr.bf16.gmra.mrb[0].mxu0 %v593
    %v709 = vpop.f32.mrb[0].mxu0
    %v710 = vadd.f32 %v610, %v709
    %v711 = vpop.f32.mrb[0].mxu0
    %v712 = vpop.f32.mrb[0].mxu0
    %v713 = vadd.f32 %v610, %v712
    %v714 = vpop.f32.mrb[0].mxu0
    %715 = vmatprep.mubr.bf16.mxu0 0
    %716 = vmatmul.mubr.bf16.gmra.mrb[0].mxu0 %v594
    %v717 = vpop.f32.mrb[0].mxu0
    %v718 = vadd.f32 %v610, %v717
    %v719 = vpop.f32.mrb[0].mxu0
    %v720 = vpop.f32.mrb[0].mxu0
    %v721 = vadd.f32 %v610, %v720
    %v722 = vpop.f32.mrb[0].mxu0
    %723 = vmatprep.mubr.bf16.mxu0 0
    %724 = vmatmul.mubr.bf16.gmra.mrb[0].mxu0 %v595
    %v725 = vpop.f32.mrb[0].mxu0
    %v726 = vadd.f32 %v610, %v725
    %v727 = vpop.f32.mrb[0].mxu0
    %v728 = vpop.f32.mrb[0].mxu0
    %v729 = vadd.f32 %v610, %v728
    %v730 = vpop.f32.mrb[0].mxu0
    %731 = vmatprep.mubr.bf16.mxu0 0
    %732 = vmatmul.mubr.bf16.gmra.mrb[0].mxu0 %v596
    %v733 = vpop.f32.mrb[0].mxu0
    %v734 = vadd.f32 %v610, %v733
    %v735 = vpop.f32.mrb[0].mxu0
    %v736 = vpop.f32.mrb[0].mxu0
    %v737 = vadd.f32 %v610, %v736
    %v738 = vpop.f32.mrb[0].mxu0
    %739 = vmatprep.mubr.bf16.mxu0 0
    %740 = vmatmul.mubr.bf16.gmra.mrb[0].mxu0 %v597
    %v741 = vpop.f32.mrb[0].mxu0
    %v742 = vadd.f32 %v610, %v741
    %v743 = vpop.f32.mrb[0].mxu0
    %v744 = vpop.f32.mrb[0].mxu0
    %v745 = vadd.f32 %v610, %v744
    %v746 = vpop.f32.mrb[0].mxu0
    %747 = vmatprep.mubr.bf16.mxu0 0
    %748 = vmatmul.mubr.bf16.gmra.mrb[0].mxu0 %v598
    %v749 = vpop.f32.mrb[0].mxu0
    %v750 = vadd.f32 %v610, %v749
    %v751 = vpop.f32.mrb[0].mxu0
    %v752 = vpop.f32.mrb[0].mxu0
    %v753 = vadd.f32 %v610, %v752
    %v754 = vpop.f32.mrb[0].mxu0
    %755 = vmatprep.mubr.bf16.mxu0 0
    %756 = vmatmul.mubr.bf16.gmra.mrb[0].mxu0 %v599
    %v757 = vpop.f32.mrb[0].mxu0
    %v758 = vadd.f32 %v610, %v757
    %v759 = vpop.f32.mrb[0].mxu0
    %v760 = vpop.f32.mrb[0].mxu0
    %v761 = vadd.f32 %v610, %v760
    %v762 = vpop.f32.mrb[0].mxu0
    %763 = vmatprep.mubr.bf16.mxu0 0
    %764 = vmatmul.mubr.bf16.gmra.mrb[0].mxu0 %v600
    %v765 = vpop.f32.mrb[0].mxu0
    %v766 = vadd.f32 %v610, %v765
    %v767 = vpop.f32.mrb[0].mxu0
    %v768 = vpop.f32.mrb[0].mxu0
    %v769 = vadd.f32 %v610, %v768
    %v770 = vpop.f32.mrb[0].mxu0
    %771 = vmatprep.mubr.bf16.mxu0 0
    %772 = vmatmul.mubr.bf16.gmra.mrb[0].mxu0 %v601
    %v773 = vpop.f32.mrb[0].mxu0
    %v774 = vadd.f32 %v610, %v773
    %v775 = vpop.f32.mrb[0].mxu0
    %v776 = vpop.f32.mrb[0].mxu0
    %v777 = vadd.f32 %v610, %v776
    %v778 = vpop.f32.mrb[0].mxu0
    %779 = vmatprep.mubr.bf16.mxu0 0
    %780 = vmatmul.mubr.bf16.gmra.mrb[0].mxu0 %v602
    %v781 = vpop.f32.mrb[0].mxu0
    %v782 = vadd.f32 %v610, %v781
    %v783 = vpop.f32.mrb[0].mxu0
    %v784 = vpop.f32.mrb[0].mxu0
    %v785 = vadd.f32 %v610, %v784
    %v786 = vpop.f32.mrb[0].mxu0
    %787 = vmatprep.mubr.bf16.mxu0 0
    %788 = vmatmul.mubr.bf16.gmra.mrb[0].mxu0 %v603
    %v789 = vpop.f32.mrb[0].mxu0
    %v790 = vadd.f32 %v610, %v789
    %v791 = vpop.f32.mrb[0].mxu0
    %v792 = vpop.f32.mrb[0].mxu0
    %v793 = vadd.f32 %v610, %v792
    %v794 = vpop.f32.mrb[0].mxu0
    %795 = vmatprep.mubr.bf16.mxu0 0
    %796 = vmatmul.mubr.bf16.gmra.mrb[0].mxu0 %v604
    %v797 = vpop.f32.mrb[0].mxu0
    %v798 = vadd.f32 %v610, %v797
    %v799 = vpop.f32.mrb[0].mxu0
    %v800 = vpop.f32.mrb[0].mxu0
    %v801 = vadd.f32 %v610, %v800
    %v802 = vpop.f32.mrb[0].mxu0
    %803 = vmatprep.mubr.bf16.mxu0 0
    %804 = vmatmul.mubr.bf16.gmra.mrb[0].mxu0 %v605
    %v805 = vpop.f32.mrb[0].mxu0
    %v806 = vadd.f32 %v610, %v805
    %v807 = vpop.f32.mrb[0].mxu0
    %v808 = vpop.f32.mrb[0].mxu0
    %v809 = vadd.f32 %v610, %v808
    %v810 = vpop.f32.mrb[0].mxu0
    %811 = vmatprep.mubr.bf16.mxu0 0
    %812 = vmatmul.mubr.bf16.gmra.mrb[0].mxu0 %v606
    %v813 = vpop.f32.mrb[0].mxu0
    %v814 = vadd.f32 %v610, %v813
    %v815 = vpop.f32.mrb[0].mxu0
    %v816 = vpop.f32.mrb[0].mxu0
    %v817 = vadd.f32 %v610, %v816
    %v818 = vpop.f32.mrb[0].mxu0
    %819 = vdwg.mxu0
    %v820 = vmax.f32 %v694, 0.0
    %v821 = vmax.f32 %v697, 0.0
    %v822 = vmax.f32 %v702, 0.0
    %v823 = vmax.f32 %v705, 0.0
    %v824 = vmax.f32 %v710, 0.0
    %v825 = vmax.f32 %v713, 0.0
    %v826 = vmax.f32 %v718, 0.0
    %v827 = vmax.f32 %v721, 0.0
    %v828 = vmax.f32 %v726, 0.0
    %v829 = vmax.f32 %v729, 0.0
    %v830 = vmax.f32 %v734, 0.0
    %v831 = vmax.f32 %v737, 0.0
    %v832 = vmax.f32 %v742, 0.0
    %v833 = vmax.f32 %v745, 0.0
    %v834 = vmax.f32 %v750, 0.0
    %v835 = vmax.f32 %v753, 0.0
    %v836 = vmax.f32 %v758, 0.0
    %v837 = vmax.f32 %v761, 0.0
    %v838 = vmax.f32 %v766, 0.0
    %v839 = vmax.f32 %v769, 0.0
    %v840 = vmax.f32 %v774, 0.0
    %v841 = vmax.f32 %v777, 0.0
    %v842 = vmax.f32 %v782, 0.0
    %v843 = vmax.f32 %v785, 0.0
    %v844 = vmax.f32 %v790, 0.0
    %v845 = vmax.f32 %v793, 0.0
    %v846 = vmax.f32 %v798, 0.0
    %v847 = vmax.f32 %v801, 0.0
    %v848 = vmax.f32 %v806, 0.0
    %v849 = vmax.f32 %v809, 0.0
    %v850 = vmax.f32 %v814, 0.0
    %v851 = vmax.f32 %v817, 0.0
    %v852 = vpack.c.bf16 %v821, %v820
    %v853 = vpack.c.bf16 %v823, %v822
    %v854 = vpack.c.bf16 %v825, %v824
    %v855 = vpack.c.bf16 %v827, %v826
    %v856 = vpack.c.bf16 %v829, %v828
    %v857 = vpack.c.bf16 %v831, %v830
    %v858 = vpack.c.bf16 %v833, %v832
    %v859 = vpack.c.bf16 %v835, %v834
    %v860 = vpack.c.bf16 %v837, %v836
    %v861 = vpack.c.bf16 %v839, %v838
    %v862 = vpack.c.bf16 %v841, %v840
    %v863 = vpack.c.bf16 %v843, %v842
    %v864 = vpack.c.bf16 %v845, %v844
    %v865 = vpack.c.bf16 %v847, %v846
    %v866 = vpack.c.bf16 %v849, %v848
    %v867 = vpack.c.bf16 %v851, %v850
    %v868 = vld [vmem:[#allocation8] sm:$0xf]
    %v869 = vld [vmem:[#allocation8 + $0x4] sm:$0xf]
    %v870 = vld [vmem:[#allocation8 + $0x8] sm:$0xf]
    %v871 = vld [vmem:[#allocation8 + $0xc] sm:$0xf]
    %v872 = vld [vmem:[#allocation8 + $0x10] sm:$0xf]
    %v873 = vld [vmem:[#allocation8 + $0x14] sm:$0xf]
    %v874 = vld [vmem:[#allocation8 + $0x18] sm:$0xf]
    %v875 = vld [vmem:[#allocation8 + $0x1c] sm:$0xf]
    %v876 = vld [vmem:[#allocation8 + $0x20] sm:$0xf]
    %v877 = vld [vmem:[#allocation8 + $0x24] sm:$0xf]
    %v878 = vld [vmem:[#allocation8 + $0x28] sm:$0xf]
    %v879 = vld [vmem:[#allocation8 + $0x2c] sm:$0xf]
    %v880 = vld [vmem:[#allocation8 + $0x30] sm:$0xf]
    %v881 = vld [vmem:[#allocation8 + $0x34] sm:$0xf]
    %v882 = vld [vmem:[#allocation8 + $0x38] sm:$0xf]
    %v883 = vld [vmem:[#allocation8 + $0x3c] sm:$0xf]
    %884 = vmatprep.subr.bf16.mxu0 0
    %885 = vmatpush1.bf16.msra.mxu0 %v852
    %886 = vmatprep.subr.bf16.mxu0 0
    %887 = vmatpush1.bf16.msra.mxu0 %v853
    %888 = vmatprep.subr.bf16.mxu0 0
    %889 = vmatpush1.bf16.msra.mxu0 %v854
    %890 = vmatprep.subr.bf16.mxu0 0
    %891 = vmatpush1.bf16.msra.mxu0 %v855
    %892 = vmatprep.subr.bf16.mxu0 0
    %893 = vmatpush1.bf16.msra.mxu0 %v856
    %894 = vmatprep.subr.bf16.mxu0 0
    %895 = vmatpush1.bf16.msra.mxu0 %v857
    %896 = vmatprep.subr.bf16.mxu0 0
    %897 = vmatpush1.bf16.msra.mxu0 %v858
    %898 = vmatprep.subr.bf16.mxu0 0
    %899 = vmatpush1.bf16.msra.mxu0 %v859
    %900 = vmatprep.subr.bf16.mxu0 0
    %901 = vmatpush1.bf16.msra.mxu0 %v860
    %902 = vmatprep.subr.bf16.mxu0 0
    %903 = vmatpush1.bf16.msra.mxu0 %v861
    %904 = vmatprep.subr.bf16.mxu0 0
    %905 = vmatpush1.bf16.msra.mxu0 %v862
    %906 = vmatprep.subr.bf16.mxu0 0
    %907 = vmatpush1.bf16.msra.mxu0 %v863
    %908 = vmatprep.subr.bf16.mxu0 0
    %909 = vmatpush1.bf16.msra.mxu0 %v864
    %910 = vmatprep.subr.bf16.mxu0 0
    %911 = vmatpush1.bf16.msra.mxu0 %v865
    %912 = vmatprep.subr.bf16.mxu0 0
    %913 = vmatpush1.bf16.msra.mxu0 %v866
    %914 = vmatprep.subr.bf16.mxu0 0
    %915 = vmatpush1.bf16.msra.mxu0 %v867
    %916 = vmatprep.mubr.bf16.mxu0 %v271
    %917 = vmatmul.mubr.bf16.gmra.mrb[0].mxu0 %v270
    %v918 = vpop.f32.mrb[0].mxu0
    %v919 = vadd.f32 0.0, %v918
    %v920 = vpop.f32.mrb[0].mxu0
    %v921 = vpop.f32.mrb[0].mxu0
    %v922 = vadd.f32 0.0, %v921
    %v923 = vpop.f32.mrb[0].mxu0
    %924 = vmatprep.mubr.bf16.mxu0 %v273
    %925 = vmatmul.mubr.bf16.gmra.mrb[0].mxu0 %v272
    %v926 = vpop.f32.mrb[0].mxu0
    %v927 = vadd.f32 0.0, %v926
    %v928 = vpop.f32.mrb[0].mxu0
    %v929 = vpop.f32.mrb[0].mxu0
    %v930 = vadd.f32 0.0, %v929
    %v931 = vpop.f32.mrb[0].mxu0
    %932 = vmatprep.mubr.bf16.mxu0 %v275
    %933 = vmatmul.mubr.bf16.gmra.mrb[0].mxu0 %v274
    %v934 = vpop.f32.mrb[0].mxu0
    %v935 = vadd.f32 0.0, %v934
    %v936 = vpop.f32.mrb[0].mxu0
    %v937 = vpop.f32.mrb[0].mxu0
    %v938 = vadd.f32 0.0, %v937
    %v939 = vpop.f32.mrb[0].mxu0
    %940 = vmatprep.mubr.bf16.mxu0 %v277
    %941 = vmatmul.mubr.bf16.gmra.mrb[0].mxu0 %v276
    %v942 = vpop.f32.mrb[0].mxu0
    %v943 = vadd.f32 0.0, %v942
    %v944 = vpop.f32.mrb[0].mxu0
    %v945 = vpop.f32.mrb[0].mxu0
    %v946 = vadd.f32 0.0, %v945
    %v947 = vpop.f32.mrb[0].mxu0
    %948 = vmatprep.mubr.bf16.mxu0 %v279
    %949 = vmatmul.mubr.bf16.gmra.mrb[0].mxu0 %v278
    %v950 = vpop.f32.mrb[0].mxu0
    %v951 = vadd.f32 0.0, %v950
    %v952 = vpop.f32.mrb[0].mxu0
    %v953 = vpop.f32.mrb[0].mxu0
    %v954 = vadd.f32 0.0, %v953
    %v955 = vpop.f32.mrb[0].mxu0
    %956 = vmatprep.mubr.bf16.mxu0 %v281
    %957 = vmatmul.mubr.bf16.gmra.mrb[0].mxu0 %v280
    %v958 = vpop.f32.mrb[0].mxu0
    %v959 = vadd.f32 0.0, %v958
    %v960 = vpop.f32.mrb[0].mxu0
    %v961 = vpop.f32.mrb[0].mxu0
    %v962 = vadd.f32 0.0, %v961
    %v963 = vpop.f32.mrb[0].mxu0
    %964 = vmatprep.mubr.bf16.mxu0 %v283
    %965 = vmatmul.mubr.bf16.gmra.mrb[0].mxu0 %v282
    %v966 = vpop.f32.mrb[0].mxu0
    %v967 = vadd.f32 0.0, %v966
    %v968 = vpop.f32.mrb[0].mxu0
    %v969 = vpop.f32.mrb[0].mxu0
    %v970 = vadd.f32 0.0, %v969
    %v971 = vpop.f32.mrb[0].mxu0
    %972 = vmatprep.mubr.bf16.mxu0 %v285
    %973 = vmatmul.mubr.bf16.gmra.mrb[0].mxu0 %v284
    %v974 = vpop.f32.mrb[0].mxu0
    %v975 = vadd.f32 0.0, %v974
    %v976 = vpop.f32.mrb[0].mxu0
    %v977 = vpop.f32.mrb[0].mxu0
    %v978 = vadd.f32 0.0, %v977
    %v979 = vpop.f32.mrb[0].mxu0
    %980 = vmatprep.mubr.bf16.mxu0 %v287
    %981 = vmatmul.mubr.bf16.gmra.mrb[0].mxu0 %v286
    %v982 = vpop.f32.mrb[0].mxu0
    %v983 = vadd.f32 0.0, %v982
    %v984 = vpop.f32.mrb[0].mxu0
    %v985 = vpop.f32.mrb[0].mxu0
    %v986 = vadd.f32 0.0, %v985
    %v987 = vpop.f32.mrb[0].mxu0
    %988 = vmatprep.mubr.bf16.mxu0 %v289
    %989 = vmatmul.mubr.bf16.gmra.mrb[0].mxu0 %v288
    %v990 = vpop.f32.mrb[0].mxu0
    %v991 = vadd.f32 0.0, %v990
    %v992 = vpop.f32.mrb[0].mxu0
    %v993 = vpop.f32.mrb[0].mxu0
    %v994 = vadd.f32 0.0, %v993
    %v995 = vpop.f32.mrb[0].mxu0
    %996 = vmatprep.mubr.bf16.mxu0 %v291
    %997 = vmatmul.mubr.bf16.gmra.mrb[0].mxu0 %v290
    %v998 = vpop.f32.mrb[0].mxu0
    %v999 = vadd.f32 0.0, %v998
    %v1000 = vpop.f32.mrb[0].mxu0
    %v1001 = vpop.f32.mrb[0].mxu0
    %v1002 = vadd.f32 0.0, %v1001
    %v1003 = vpop.f32.mrb[0].mxu0
    %1004 = vmatprep.mubr.bf16.mxu0 %v293
    %1005 = vmatmul.mubr.bf16.gmra.mrb[0].mxu0 %v292
    %v1006 = vpop.f32.mrb[0].mxu0
    %v1007 = vadd.f32 0.0, %v1006
    %v1008 = vpop.f32.mrb[0].mxu0
    %v1009 = vpop.f32.mrb[0].mxu0
    %v1010 = vadd.f32 0.0, %v1009
    %v1011 = vpop.f32.mrb[0].mxu0
    %1012 = vmatprep.mubr.bf16.mxu0 %v295
    %1013 = vmatmul.mubr.bf16.gmra.mrb[0].mxu0 %v294
    %v1014 = vpop.f32.mrb[0].mxu0
    %v1015 = vadd.f32 0.0, %v1014
    %v1016 = vpop.f32.mrb[0].mxu0
    %v1017 = vpop.f32.mrb[0].mxu0
    %v1018 = vadd.f32 0.0, %v1017
    %v1019 = vpop.f32.mrb[0].mxu0
    %1020 = vmatprep.mubr.bf16.mxu0 %v297
    %1021 = vmatmul.mubr.bf16.gmra.mrb[0].mxu0 %v296
    %v1022 = vpop.f32.mrb[0].mxu0
    %v1023 = vadd.f32 0.0, %v1022
    %v1024 = vpop.f32.mrb[0].mxu0
    %v1025 = vpop.f32.mrb[0].mxu0
    %v1026 = vadd.f32 0.0, %v1025
    %v1027 = vpop.f32.mrb[0].mxu0
    %1028 = vmatprep.mubr.bf16.mxu0 %v299
    %1029 = vmatmul.mubr.bf16.gmra.mrb[0].mxu0 %v298
    %v1030 = vpop.f32.mrb[0].mxu0
    %v1031 = vadd.f32 0.0, %v1030
    %v1032 = vpop.f32.mrb[0].mxu0
    %v1033 = vpop.f32.mrb[0].mxu0
    %v1034 = vadd.f32 0.0, %v1033
    %v1035 = vpop.f32.mrb[0].mxu0
    %1036 = vmatprep.mubr.bf16.mxu0 %v301
    %1037 = vmatmul.mubr.bf16.gmra.mrb[0].mxu0 %v300
    %v1038 = vpop.f32.mrb[0].mxu0
    %v1039 = vadd.f32 0.0, %v1038
    %v1040 = vpop.f32.mrb[0].mxu0
    %v1041 = vpop.f32.mrb[0].mxu0
    %v1042 = vadd.f32 0.0, %v1041
    %v1043 = vpop.f32.mrb[0].mxu0
    %1044 = vdwg.mxu0
    %v1045 = vpack.c.bf16 %v922, %v919
    %v1046 = vpack.c.bf16 %v930, %v927
    %v1047 = vpack.c.bf16 %v938, %v935
    %v1048 = vpack.c.bf16 %v946, %v943
    %v1049 = vpack.c.bf16 %v954, %v951
    %v1050 = vpack.c.bf16 %v962, %v959
    %v1051 = vpack.c.bf16 %v970, %v967
    %v1052 = vpack.c.bf16 %v978, %v975
    %v1053 = vpack.c.bf16 %v986, %v983
    %v1054 = vpack.c.bf16 %v994, %v991
    %v1055 = vpack.c.bf16 %v1002, %v999
    %v1056 = vpack.c.bf16 %v1010, %v1007
    %v1057 = vpack.c.bf16 %v1018, %v1015
    %v1058 = vpack.c.bf16 %v1026, %v1023
    %v1059 = vpack.c.bf16 %v1034, %v1031
    %v1060 = vpack.c.bf16 %v1042, %v1039
    %v1061 = vlaneseq
    %v1062 = vshrl.u32 %v1061, 7
    %v1063 = vsub.s32 1, %v1062
    %v1064 = vrot.slane %v125, %v1063
    %v1081 = vunpack.c.l.b16 %v868
    %v1082 = vunpack.c.l.b16 %v869
    %v1083 = vunpack.c.l.b16 %v870
    %v1084 = vunpack.c.l.b16 %v871
    %v1085 = vunpack.c.l.b16 %v872
    %v1086 = vunpack.c.l.b16 %v873
    %v1087 = vunpack.c.l.b16 %v874
    %v1088 = vunpack.c.l.b16 %v875
    %v1089 = vunpack.c.l.b16 %v876
    %v1090 = vunpack.c.l.b16 %v877
    %v1091 = vunpack.c.l.b16 %v878
    %v1092 = vunpack.c.l.b16 %v879
    %v1093 = vunpack.c.l.b16 %v880
    %v1094 = vunpack.c.l.b16 %v881
    %v1095 = vunpack.c.l.b16 %v882
    %v1096 = vunpack.c.l.b16 %v883
    %v1097 = vpack.c.b16 %v1082, %v1081
    %v1098 = vpack.c.b16 %v1084, %v1083
    %v1099 = vpack.c.b16 %v1086, %v1085
    %v1100 = vpack.c.b16 %v1088, %v1087
    %v1101 = vpack.c.b16 %v1090, %v1089
    %v1102 = vpack.c.b16 %v1092, %v1091
    %v1103 = vpack.c.b16 %v1094, %v1093
    %v1104 = vpack.c.b16 %v1096, %v1095
    %1113 = vmatprep.subr.bf16.mxu0 0
    %1114 = vmatpush1.bf16.msra.mxu0 %v1097
    %1115 = vmatprep.subr.bf16.mxu0 0
    %1116 = vmatpush1.bf16.msra.mxu0 %v1098
    %1117 = vmatprep.subr.bf16.mxu0 0
    %1118 = vmatpush1.bf16.msra.mxu0 %v1099
    %1119 = vmatprep.subr.bf16.mxu0 0
    %1120 = vmatpush1.bf16.msra.mxu0 %v1100
    %1121 = vmatprep.subr.bf16.mxu0 0
    %1122 = vmatpush1.bf16.msra.mxu0 %v1101
    %1123 = vmatprep.subr.bf16.mxu0 0
    %1124 = vmatpush1.bf16.msra.mxu0 %v1102
    %1125 = vmatprep.subr.bf16.mxu0 0
    %1126 = vmatpush1.bf16.msra.mxu0 %v1103
    %1127 = vmatprep.subr.bf16.mxu0 0
    %1128 = vmatpush1.bf16.msra.mxu0 %v1104
    %1129 = vmatprep.subr.bf16.mxu0 0
    %1130 = vmatpush1.bf16.msra.mxu0 0
    %1131 = vmatprep.subr.bf16.mxu0 0
    %1132 = vmatpush1.bf16.msra.mxu0 0
    %1133 = vmatprep.subr.bf16.mxu0 0
    %1134 = vmatpush1.bf16.msra.mxu0 0
    %1135 = vmatprep.subr.bf16.mxu0 0
    %1136 = vmatpush1.bf16.msra.mxu0 0
    %1137 = vmatprep.subr.bf16.mxu0 0
    %1138 = vmatpush1.bf16.msra.mxu0 0
    %1139 = vmatprep.subr.bf16.mxu0 0
    %1140 = vmatpush1.bf16.msra.mxu0 0
    %1141 = vmatprep.subr.bf16.mxu0 0
    %1142 = vmatpush1.bf16.msra.mxu0 0
    %1143 = vmatprep.subr.bf16.mxu0 0
    %1144 = vmatpush1.bf16.msra.mxu0 0
    %1145 = vmatprep.mubr.bf16.mxu0 0
    %1146 = vmatmul.mubr.bf16.gmra.mrb[0].mxu0 %v1045
    %v1147 = vpop.f32.mrb[0].mxu0
    %v1148 = vadd.f32 %v1064, %v1147
    %v1149 = vpop.f32.mrb[0].mxu0
    %v1150 = vpop.f32.mrb[0].mxu0
    %v1151 = vadd.f32 %v1064, %v1150
    %v1152 = vpop.f32.mrb[0].mxu0
    %1153 = vmatprep.mubr.bf16.mxu0 0
    %1154 = vmatmul.mubr.bf16.gmra.mrb[0].mxu0 %v1046
    %v1155 = vpop.f32.mrb[0].mxu0
    %v1156 = vadd.f32 %v1064, %v1155
    %v1157 = vpop.f32.mrb[0].mxu0
    %v1158 = vpop.f32.mrb[0].mxu0
    %v1159 = vadd.f32 %v1064, %v1158
    %v1160 = vpop.f32.mrb[0].mxu0
    %1161 = vmatprep.mubr.bf16.mxu0 0
    %1162 = vmatmul.mubr.bf16.gmra.mrb[0].mxu0 %v1047
    %v1163 = vpop.f32.mrb[0].mxu0
    %v1164 = vadd.f32 %v1064, %v1163
    %v1165 = vpop.f32.mrb[0].mxu0
    %v1166 = vpop.f32.mrb[0].mxu0
    %v1167 = vadd.f32 %v1064, %v1166
    %v1168 = vpop.f32.mrb[0].mxu0
    %1169 = vmatprep.mubr.bf16.mxu0 0
    %1170 = vmatmul.mubr.bf16.gmra.mrb[0].mxu0 %v1048
    %v1171 = vpop.f32.mrb[0].mxu0
    %v1172 = vadd.f32 %v1064, %v1171
    %v1173 = vpop.f32.mrb[0].mxu0
    %v1174 = vpop.f32.mrb[0].mxu0
    %v1175 = vadd.f32 %v1064, %v1174
    %v1176 = vpop.f32.mrb[0].mxu0
    %1177 = vmatprep.mubr.bf16.mxu0 0
    %1178 = vmatmul.mubr.bf16.gmra.mrb[0].mxu0 %v1049
    %v1179 = vpop.f32.mrb[0].mxu0
    %v1180 = vadd.f32 %v1064, %v1179
    %v1181 = vpop.f32.mrb[0].mxu0
    %v1182 = vpop.f32.mrb[0].mxu0
    %v1183 = vadd.f32 %v1064, %v1182
    %v1184 = vpop.f32.mrb[0].mxu0
    %1185 = vmatprep.mubr.bf16.mxu0 0
    %1186 = vmatmul.mubr.bf16.gmra.mrb[0].mxu0 %v1050
    %v1187 = vpop.f32.mrb[0].mxu0
    %v1188 = vadd.f32 %v1064, %v1187
    %v1189 = vpop.f32.mrb[0].mxu0
    %v1190 = vpop.f32.mrb[0].mxu0
    %v1191 = vadd.f32 %v1064, %v1190
    %v1192 = vpop.f32.mrb[0].mxu0
    %1193 = vmatprep.mubr.bf16.mxu0 0
    %1194 = vmatmul.mubr.bf16.gmra.mrb[0].mxu0 %v1051
    %v1195 = vpop.f32.mrb[0].mxu0
    %v1196 = vadd.f32 %v1064, %v1195
    %v1197 = vpop.f32.mrb[0].mxu0
    %v1198 = vpop.f32.mrb[0].mxu0
    %v1199 = vadd.f32 %v1064, %v1198
    %v1200 = vpop.f32.mrb[0].mxu0
    %1201 = vmatprep.mubr.bf16.mxu0 0
    %1202 = vmatmul.mubr.bf16.gmra.mrb[0].mxu0 %v1052
    %v1203 = vpop.f32.mrb[0].mxu0
    %v1204 = vadd.f32 %v1064, %v1203
    %v1205 = vpop.f32.mrb[0].mxu0
    %v1206 = vpop.f32.mrb[0].mxu0
    %v1207 = vadd.f32 %v1064, %v1206
    %v1208 = vpop.f32.mrb[0].mxu0
    %1209 = vmatprep.mubr.bf16.mxu0 0
    %1210 = vmatmul.mubr.bf16.gmra.mrb[0].mxu0 %v1053
    %v1211 = vpop.f32.mrb[0].mxu0
    %v1212 = vadd.f32 %v1064, %v1211
    %v1213 = vpop.f32.mrb[0].mxu0
    %v1214 = vpop.f32.mrb[0].mxu0
    %v1215 = vadd.f32 %v1064, %v1214
    %v1216 = vpop.f32.mrb[0].mxu0
    %1217 = vmatprep.mubr.bf16.mxu0 0
    %1218 = vmatmul.mubr.bf16.gmra.mrb[0].mxu0 %v1054
    %v1219 = vpop.f32.mrb[0].mxu0
    %v1220 = vadd.f32 %v1064, %v1219
    %v1221 = vpop.f32.mrb[0].mxu0
    %v1222 = vpop.f32.mrb[0].mxu0
    %v1223 = vadd.f32 %v1064, %v1222
    %v1224 = vpop.f32.mrb[0].mxu0
    %1225 = vmatprep.mubr.bf16.mxu0 0
    %1226 = vmatmul.mubr.bf16.gmra.mrb[0].mxu0 %v1055
    %v1227 = vpop.f32.mrb[0].mxu0
    %v1228 = vadd.f32 %v1064, %v1227
    %v1229 = vpop.f32.mrb[0].mxu0
    %v1230 = vpop.f32.mrb[0].mxu0
    %v1231 = vadd.f32 %v1064, %v1230
    %v1232 = vpop.f32.mrb[0].mxu0
    %1233 = vmatprep.mubr.bf16.mxu0 0
    %1234 = vmatmul.mubr.bf16.gmra.mrb[0].mxu0 %v1056
    %v1235 = vpop.f32.mrb[0].mxu0
    %v1236 = vadd.f32 %v1064, %v1235
    %v1237 = vpop.f32.mrb[0].mxu0
    %v1238 = vpop.f32.mrb[0].mxu0
    %v1239 = vadd.f32 %v1064, %v1238
    %v1240 = vpop.f32.mrb[0].mxu0
    %1241 = vmatprep.mubr.bf16.mxu0 0
    %1242 = vmatmul.mubr.bf16.gmra.mrb[0].mxu0 %v1057
    %v1243 = vpop.f32.mrb[0].mxu0
    %v1244 = vadd.f32 %v1064, %v1243
    %v1245 = vpop.f32.mrb[0].mxu0
    %v1246 = vpop.f32.mrb[0].mxu0
    %v1247 = vadd.f32 %v1064, %v1246
    %v1248 = vpop.f32.mrb[0].mxu0
    %1249 = vmatprep.mubr.bf16.mxu0 0
    %1250 = vmatmul.mubr.bf16.gmra.mrb[0].mxu0 %v1058
    %v1251 = vpop.f32.mrb[0].mxu0
    %v1252 = vadd.f32 %v1064, %v1251
    %v1253 = vpop.f32.mrb[0].mxu0
    %v1254 = vpop.f32.mrb[0].mxu0
    %v1255 = vadd.f32 %v1064, %v1254
    %v1256 = vpop.f32.mrb[0].mxu0
    %1257 = vmatprep.mubr.bf16.mxu0 0
    %1258 = vmatmul.mubr.bf16.gmra.mrb[0].mxu0 %v1059
    %v1259 = vpop.f32.mrb[0].mxu0
    %v1260 = vadd.f32 %v1064, %v1259
    %v1261 = vpop.f32.mrb[0].mxu0
    %v1262 = vpop.f32.mrb[0].mxu0
    %v1263 = vadd.f32 %v1064, %v1262
    %v1264 = vpop.f32.mrb[0].mxu0
    %1265 = vmatprep.mubr.bf16.mxu0 0
    %1266 = vmatmul.mubr.bf16.gmra.mrb[0].mxu0 %v1060
    %v1267 = vpop.f32.mrb[0].mxu0
    %v1268 = vadd.f32 %v1064, %v1267
    %v1269 = vpop.f32.mrb[0].mxu0
    %v1270 = vpop.f32.mrb[0].mxu0
    %v1271 = vadd.f32 %v1064, %v1270
    %v1272 = vpop.f32.mrb[0].mxu0
    %1273 = vdwg.mxu0
    %v1274 = vmax.f32 %v1148, 0.0
    %v1275 = vmax.f32 %v1151, 0.0
    %v1276 = vmax.f32 %v1156, 0.0
    %v1277 = vmax.f32 %v1159, 0.0
    %v1278 = vmax.f32 %v1164, 0.0
    %v1279 = vmax.f32 %v1167, 0.0
    %v1280 = vmax.f32 %v1172, 0.0
    %v1281 = vmax.f32 %v1175, 0.0
    %v1282 = vmax.f32 %v1180, 0.0
    %v1283 = vmax.f32 %v1183, 0.0
    %v1284 = vmax.f32 %v1188, 0.0
    %v1285 = vmax.f32 %v1191, 0.0
    %v1286 = vmax.f32 %v1196, 0.0
    %v1287 = vmax.f32 %v1199, 0.0
    %v1288 = vmax.f32 %v1204, 0.0
    %v1289 = vmax.f32 %v1207, 0.0
    %v1290 = vmax.f32 %v1212, 0.0
    %v1291 = vmax.f32 %v1215, 0.0
    %v1292 = vmax.f32 %v1220, 0.0
    %v1293 = vmax.f32 %v1223, 0.0
    %v1294 = vmax.f32 %v1228, 0.0
    %v1295 = vmax.f32 %v1231, 0.0
    %v1296 = vmax.f32 %v1236, 0.0
    %v1297 = vmax.f32 %v1239, 0.0
    %v1298 = vmax.f32 %v1244, 0.0
    %v1299 = vmax.f32 %v1247, 0.0
    %v1300 = vmax.f32 %v1252, 0.0
    %v1301 = vmax.f32 %v1255, 0.0
    %v1302 = vmax.f32 %v1260, 0.0
    %v1303 = vmax.f32 %v1263, 0.0
    %v1304 = vmax.f32 %v1268, 0.0
    %v1305 = vmax.f32 %v1271, 0.0
    %v1306 = vpack.c.bf16 %v1275, %v1274
    %v1307 = vpack.c.bf16 %v1277, %v1276
    %v1308 = vpack.c.bf16 %v1279, %v1278
    %v1309 = vpack.c.bf16 %v1281, %v1280
    %v1310 = vpack.c.bf16 %v1283, %v1282
    %v1311 = vpack.c.bf16 %v1285, %v1284
    %v1312 = vpack.c.bf16 %v1287, %v1286
    %v1313 = vpack.c.bf16 %v1289, %v1288
    %v1314 = vpack.c.bf16 %v1291, %v1290
    %v1315 = vpack.c.bf16 %v1293, %v1292
    %v1316 = vpack.c.bf16 %v1295, %v1294
    %v1317 = vpack.c.bf16 %v1297, %v1296
    %v1318 = vpack.c.bf16 %v1299, %v1298
    %v1319 = vpack.c.bf16 %v1301, %v1300
    %v1320 = vpack.c.bf16 %v1303, %v1302
    %v1321 = vpack.c.bf16 %v1305, %v1304
    %v1322 = vld [vmem:[#allocation10] sm:$0xf]
    %v1323 = vld [vmem:[#allocation10 + $0x4] sm:$0xf]
    %v1324 = vld [vmem:[#allocation10 + $0x8] sm:$0xf]
    %v1325 = vld [vmem:[#allocation10 + $0xc] sm:$0xf]
    %v1326 = vld [vmem:[#allocation10 + $0x10] sm:$0xf]
    %v1327 = vld [vmem:[#allocation10 + $0x14] sm:$0xf]
    %v1328 = vld [vmem:[#allocation10 + $0x18] sm:$0xf]
    %v1329 = vld [vmem:[#allocation10 + $0x1c] sm:$0xf]
    %v1330 = vld [vmem:[#allocation10 + $0x20] sm:$0xf]
    %v1331 = vld [vmem:[#allocation10 + $0x24] sm:$0xf]
    %v1332 = vld [vmem:[#allocation10 + $0x28] sm:$0xf]
    %v1333 = vld [vmem:[#allocation10 + $0x2c] sm:$0xf]
    %v1334 = vld [vmem:[#allocation10 + $0x30] sm:$0xf]
    %v1335 = vld [vmem:[#allocation10 + $0x34] sm:$0xf]
    %v1336 = vld [vmem:[#allocation10 + $0x38] sm:$0xf]
    %v1337 = vld [vmem:[#allocation10 + $0x3c] sm:$0xf]
    %1338 = vmatprep.subr.bf16.mxu0 0
    %1339 = vmatpush1.bf16.msra.mxu0 %v1306
    %1340 = vmatprep.subr.bf16.mxu0 0
    %1341 = vmatpush1.bf16.msra.mxu0 %v1307
    %1342 = vmatprep.subr.bf16.mxu0 0
    %1343 = vmatpush1.bf16.msra.mxu0 %v1308
    %1344 = vmatprep.subr.bf16.mxu0 0
    %1345 = vmatpush1.bf16.msra.mxu0 %v1309
    %1346 = vmatprep.subr.bf16.mxu0 0
    %1347 = vmatpush1.bf16.msra.mxu0 %v1310
    %1348 = vmatprep.subr.bf16.mxu0 0
    %1349 = vmatpush1.bf16.msra.mxu0 %v1311
    %1350 = vmatprep.subr.bf16.mxu0 0
    %1351 = vmatpush1.bf16.msra.mxu0 %v1312
    %1352 = vmatprep.subr.bf16.mxu0 0
    %1353 = vmatpush1.bf16.msra.mxu0 %v1313
    %1354 = vmatprep.subr.bf16.mxu0 0
    %1355 = vmatpush1.bf16.msra.mxu0 %v1314
    %1356 = vmatprep.subr.bf16.mxu0 0
    %1357 = vmatpush1.bf16.msra.mxu0 %v1315
    %1358 = vmatprep.subr.bf16.mxu0 0
    %1359 = vmatpush1.bf16.msra.mxu0 %v1316
    %1360 = vmatprep.subr.bf16.mxu0 0
    %1361 = vmatpush1.bf16.msra.mxu0 %v1317
    %1362 = vmatprep.subr.bf16.mxu0 0
    %1363 = vmatpush1.bf16.msra.mxu0 %v1318
    %1364 = vmatprep.subr.bf16.mxu0 0
    %1365 = vmatpush1.bf16.msra.mxu0 %v1319
    %1366 = vmatprep.subr.bf16.mxu0 0
    %1367 = vmatpush1.bf16.msra.mxu0 %v1320
    %1368 = vmatprep.subr.bf16.mxu0 0
    %1369 = vmatpush1.bf16.msra.mxu0 %v1321
    %1370 = vmatprep.mubr.bf16.mxu0 %v271
    %1371 = vmatmul.mubr.bf16.gmra.mrb[0].mxu0 %v270
    %v1372 = vpop.f32.mrb[0].mxu0
    %v1373 = vadd.f32 0.0, %v1372
    %v1374 = vpop.f32.mrb[0].mxu0
    %v1375 = vpop.f32.mrb[0].mxu0
    %v1376 = vadd.f32 0.0, %v1375
    %v1377 = vpop.f32.mrb[0].mxu0
    %1378 = vmatprep.mubr.bf16.mxu0 %v273
    %1379 = vmatmul.mubr.bf16.gmra.mrb[0].mxu0 %v272
    %v1380 = vpop.f32.mrb[0].mxu0
    %v1381 = vadd.f32 0.0, %v1380
    %v1382 = vpop.f32.mrb[0].mxu0
    %v1383 = vpop.f32.mrb[0].mxu0
    %v1384 = vadd.f32 0.0, %v1383
    %v1385 = vpop.f32.mrb[0].mxu0
    %1386 = vmatprep.mubr.bf16.mxu0 %v275
    %1387 = vmatmul.mubr.bf16.gmra.mrb[0].mxu0 %v274
    %v1388 = vpop.f32.mrb[0].mxu0
    %v1389 = vadd.f32 0.0, %v1388
    %v1390 = vpop.f32.mrb[0].mxu0
    %v1391 = vpop.f32.mrb[0].mxu0
    %v1392 = vadd.f32 0.0, %v1391
    %v1393 = vpop.f32.mrb[0].mxu0
    %1394 = vmatprep.mubr.bf16.mxu0 %v277
    %1395 = vmatmul.mubr.bf16.gmra.mrb[0].mxu0 %v276
    %v1396 = vpop.f32.mrb[0].mxu0
    %v1397 = vadd.f32 0.0, %v1396
    %v1398 = vpop.f32.mrb[0].mxu0
    %v1399 = vpop.f32.mrb[0].mxu0
    %v1400 = vadd.f32 0.0, %v1399
    %v1401 = vpop.f32.mrb[0].mxu0
    %1402 = vmatprep.mubr.bf16.mxu0 %v279
    %1403 = vmatmul.mubr.bf16.gmra.mrb[0].mxu0 %v278
    %v1404 = vpop.f32.mrb[0].mxu0
    %v1405 = vadd.f32 0.0, %v1404
    %v1406 = vpop.f32.mrb[0].mxu0
    %v1407 = vpop.f32.mrb[0].mxu0
    %v1408 = vadd.f32 0.0, %v1407
    %v1409 = vpop.f32.mrb[0].mxu0
    %1410 = vmatprep.mubr.bf16.mxu0 %v281
    %1411 = vmatmul.mubr.bf16.gmra.mrb[0].mxu0 %v280
    %v1412 = vpop.f32.mrb[0].mxu0
    %v1413 = vadd.f32 0.0, %v1412
    %v1414 = vpop.f32.mrb[0].mxu0
    %v1415 = vpop.f32.mrb[0].mxu0
    %v1416 = vadd.f32 0.0, %v1415
    %v1417 = vpop.f32.mrb[0].mxu0
    %1418 = vmatprep.mubr.bf16.mxu0 %v283
    %1419 = vmatmul.mubr.bf16.gmra.mrb[0].mxu0 %v282
    %v1420 = vpop.f32.mrb[0].mxu0
    %v1421 = vadd.f32 0.0, %v1420
    %v1422 = vpop.f32.mrb[0].mxu0
    %v1423 = vpop.f32.mrb[0].mxu0
    %v1424 = vadd.f32 0.0, %v1423
    %v1425 = vpop.f32.mrb[0].mxu0
    %1426 = vmatprep.mubr.bf16.mxu0 %v285
    %1427 = vmatmul.mubr.bf16.gmra.mrb[0].mxu0 %v284
    %v1428 = vpop.f32.mrb[0].mxu0
    %v1429 = vadd.f32 0.0, %v1428
    %v1430 = vpop.f32.mrb[0].mxu0
    %v1431 = vpop.f32.mrb[0].mxu0
    %v1432 = vadd.f32 0.0, %v1431
    %v1433 = vpop.f32.mrb[0].mxu0
    %1434 = vmatprep.mubr.bf16.mxu0 %v287
    %1435 = vmatmul.mubr.bf16.gmra.mrb[0].mxu0 %v286
    %v1436 = vpop.f32.mrb[0].mxu0
    %v1437 = vadd.f32 0.0, %v1436
    %v1438 = vpop.f32.mrb[0].mxu0
    %v1439 = vpop.f32.mrb[0].mxu0
    %v1440 = vadd.f32 0.0, %v1439
    %v1441 = vpop.f32.mrb[0].mxu0
    %1442 = vmatprep.mubr.bf16.mxu0 %v289
    %1443 = vmatmul.mubr.bf16.gmra.mrb[0].mxu0 %v288
    %v1444 = vpop.f32.mrb[0].mxu0
    %v1445 = vadd.f32 0.0, %v1444
    %v1446 = vpop.f32.mrb[0].mxu0
    %v1447 = vpop.f32.mrb[0].mxu0
    %v1448 = vadd.f32 0.0, %v1447
    %v1449 = vpop.f32.mrb[0].mxu0
    %1450 = vmatprep.mubr.bf16.mxu0 %v291
    %1451 = vmatmul.mubr.bf16.gmra.mrb[0].mxu0 %v290
    %v1452 = vpop.f32.mrb[0].mxu0
    %v1453 = vadd.f32 0.0, %v1452
    %v1454 = vpop.f32.mrb[0].mxu0
    %v1455 = vpop.f32.mrb[0].mxu0
    %v1456 = vadd.f32 0.0, %v1455
    %v1457 = vpop.f32.mrb[0].mxu0
    %1458 = vmatprep.mubr.bf16.mxu0 %v293
    %1459 = vmatmul.mubr.bf16.gmra.mrb[0].mxu0 %v292
    %v1460 = vpop.f32.mrb[0].mxu0
    %v1461 = vadd.f32 0.0, %v1460
    %v1462 = vpop.f32.mrb[0].mxu0
    %v1463 = vpop.f32.mrb[0].mxu0
    %v1464 = vadd.f32 0.0, %v1463
    %v1465 = vpop.f32.mrb[0].mxu0
    %1466 = vmatprep.mubr.bf16.mxu0 %v295
    %1467 = vmatmul.mubr.bf16.gmra.mrb[0].mxu0 %v294
    %v1468 = vpop.f32.mrb[0].mxu0
    %v1469 = vadd.f32 0.0, %v1468
    %v1470 = vpop.f32.mrb[0].mxu0
    %v1471 = vpop.f32.mrb[0].mxu0
    %v1472 = vadd.f32 0.0, %v1471
    %v1473 = vpop.f32.mrb[0].mxu0
    %1474 = vmatprep.mubr.bf16.mxu0 %v297
    %1475 = vmatmul.mubr.bf16.gmra.mrb[0].mxu0 %v296
    %v1476 = vpop.f32.mrb[0].mxu0
    %v1477 = vadd.f32 0.0, %v1476
    %v1478 = vpop.f32.mrb[0].mxu0
    %v1479 = vpop.f32.mrb[0].mxu0
    %v1480 = vadd.f32 0.0, %v1479
    %v1481 = vpop.f32.mrb[0].mxu0
    %1482 = vmatprep.mubr.bf16.mxu0 %v299
    %1483 = vmatmul.mubr.bf16.gmra.mrb[0].mxu0 %v298
    %v1484 = vpop.f32.mrb[0].mxu0
    %v1485 = vadd.f32 0.0, %v1484
    %v1486 = vpop.f32.mrb[0].mxu0
    %v1487 = vpop.f32.mrb[0].mxu0
    %v1488 = vadd.f32 0.0, %v1487
    %v1489 = vpop.f32.mrb[0].mxu0
    %1490 = vmatprep.mubr.bf16.mxu0 %v301
    %1491 = vmatmul.mubr.bf16.gmra.mrb[0].mxu0 %v300
    %v1492 = vpop.f32.mrb[0].mxu0
    %v1493 = vadd.f32 0.0, %v1492
    %v1494 = vpop.f32.mrb[0].mxu0
    %v1495 = vpop.f32.mrb[0].mxu0
    %v1496 = vadd.f32 0.0, %v1495
    %v1497 = vpop.f32.mrb[0].mxu0
    %1498 = vdwg.mxu0
    %v1499 = vpack.c.bf16 %v1376, %v1373
    %v1500 = vpack.c.bf16 %v1384, %v1381
    %v1501 = vpack.c.bf16 %v1392, %v1389
    %v1502 = vpack.c.bf16 %v1400, %v1397
    %v1503 = vpack.c.bf16 %v1408, %v1405
    %v1504 = vpack.c.bf16 %v1416, %v1413
    %v1505 = vpack.c.bf16 %v1424, %v1421
    %v1506 = vpack.c.bf16 %v1432, %v1429
    %v1507 = vpack.c.bf16 %v1440, %v1437
    %v1508 = vpack.c.bf16 %v1448, %v1445
    %v1509 = vpack.c.bf16 %v1456, %v1453
    %v1510 = vpack.c.bf16 %v1464, %v1461
    %v1511 = vpack.c.bf16 %v1472, %v1469
    %v1512 = vpack.c.bf16 %v1480, %v1477
    %v1513 = vpack.c.bf16 %v1488, %v1485
    %v1514 = vpack.c.bf16 %v1496, %v1493
    %v1515 = vlaneseq
    %v1516 = vshrl.u32 %v1515, 7
    %v1517 = vsub.s32 2, %v1516
    %v1518 = vrot.slane %v125, %v1517
    %v1535 = vunpack.c.l.b16 %v1322
    %v1536 = vunpack.c.l.b16 %v1323
    %v1537 = vunpack.c.l.b16 %v1324
    %v1538 = vunpack.c.l.b16 %v1325
    %v1539 = vunpack.c.l.b16 %v1326
    %v1540 = vunpack.c.l.b16 %v1327
    %v1541 = vunpack.c.l.b16 %v1328
    %v1542 = vunpack.c.l.b16 %v1329
    %v1543 = vunpack.c.l.b16 %v1330
    %v1544 = vunpack.c.l.b16 %v1331
    %v1545 = vunpack.c.l.b16 %v1332
    %v1546 = vunpack.c.l.b16 %v1333
    %v1547 = vunpack.c.l.b16 %v1334
    %v1548 = vunpack.c.l.b16 %v1335
    %v1549 = vunpack.c.l.b16 %v1336
    %v1550 = vunpack.c.l.b16 %v1337
    %v1551 = vpack.c.b16 %v1536, %v1535
    %v1552 = vpack.c.b16 %v1538, %v1537
    %v1553 = vpack.c.b16 %v1540, %v1539
    %v1554 = vpack.c.b16 %v1542, %v1541
    %v1555 = vpack.c.b16 %v1544, %v1543
    %v1556 = vpack.c.b16 %v1546, %v1545
    %v1557 = vpack.c.b16 %v1548, %v1547
    %v1558 = vpack.c.b16 %v1550, %v1549
    %1567 = vmatprep.subr.bf16.mxu0 0
    %1568 = vmatpush1.bf16.msra.mxu0 %v1551
    %1569 = vmatprep.subr.bf16.mxu0 0
    %1570 = vmatpush1.bf16.msra.mxu0 %v1552
    %1571 = vmatprep.subr.bf16.mxu0 0
    %1572 = vmatpush1.bf16.msra.mxu0 %v1553
    %1573 = vmatprep.subr.bf16.mxu0 0
    %1574 = vmatpush1.bf16.msra.mxu0 %v1554
    %1575 = vmatprep.subr.bf16.mxu0 0
    %1576 = vmatpush1.bf16.msra.mxu0 %v1555
    %1577 = vmatprep.subr.bf16.mxu0 0
    %1578 = vmatpush1.bf16.msra.mxu0 %v1556
    %1579 = vmatprep.subr.bf16.mxu0 0
    %1580 = vmatpush1.bf16.msra.mxu0 %v1557
    %1581 = vmatprep.subr.bf16.mxu0 0
    %1582 = vmatpush1.bf16.msra.mxu0 %v1558
    %1583 = vmatprep.subr.bf16.mxu0 0
    %1584 = vmatpush1.bf16.msra.mxu0 0
    %1585 = vmatprep.subr.bf16.mxu0 0
    %1586 = vmatpush1.bf16.msra.mxu0 0
    %1587 = vmatprep.subr.bf16.mxu0 0
    %1588 = vmatpush1.bf16.msra.mxu0 0
    %1589 = vmatprep.subr.bf16.mxu0 0
    %1590 = vmatpush1.bf16.msra.mxu0 0
    %1591 = vmatprep.subr.bf16.mxu0 0
    %1592 = vmatpush1.bf16.msra.mxu0 0
    %1593 = vmatprep.subr.bf16.mxu0 0
    %1594 = vmatpush1.bf16.msra.mxu0 0
    %1595 = vmatprep.subr.bf16.mxu0 0
    %1596 = vmatpush1.bf16.msra.mxu0 0
    %1597 = vmatprep.subr.bf16.mxu0 0
    %1598 = vmatpush1.bf16.msra.mxu0 0
    %1599 = vmatprep.mubr.bf16.mxu0 0
    %1600 = vmatmul.mubr.bf16.gmra.mrb[0].mxu0 %v1499
    %v1601 = vpop.f32.mrb[0].mxu0
    %v1602 = vadd.f32 %v1518, %v1601
    %v1603 = vpop.f32.mrb[0].mxu0
    %v1604 = vpop.f32.mrb[0].mxu0
    %v1605 = vadd.f32 %v1518, %v1604
    %v1606 = vpop.f32.mrb[0].mxu0
    %1607 = vmatprep.mubr.bf16.mxu0 0
    %1608 = vmatmul.mubr.bf16.gmra.mrb[0].mxu0 %v1500
    %v1609 = vpop.f32.mrb[0].mxu0
    %v1610 = vadd.f32 %v1518, %v1609
    %v1611 = vpop.f32.mrb[0].mxu0
    %v1612 = vpop.f32.mrb[0].mxu0
    %v1613 = vadd.f32 %v1518, %v1612
    %v1614 = vpop.f32.mrb[0].mxu0
    %1615 = vmatprep.mubr.bf16.mxu0 0
    %1616 = vmatmul.mubr.bf16.gmra.mrb[0].mxu0 %v1501
    %v1617 = vpop.f32.mrb[0].mxu0
    %v1618 = vadd.f32 %v1518, %v1617
    %v1619 = vpop.f32.mrb[0].mxu0
    %v1620 = vpop.f32.mrb[0].mxu0
    %v1621 = vadd.f32 %v1518, %v1620
    %v1622 = vpop.f32.mrb[0].mxu0
    %1623 = vmatprep.mubr.bf16.mxu0 0
    %1624 = vmatmul.mubr.bf16.gmra.mrb[0].mxu0 %v1502
    %v1625 = vpop.f32.mrb[0].mxu0
    %v1626 = vadd.f32 %v1518, %v1625
    %v1627 = vpop.f32.mrb[0].mxu0
    %v1628 = vpop.f32.mrb[0].mxu0
    %v1629 = vadd.f32 %v1518, %v1628
    %v1630 = vpop.f32.mrb[0].mxu0
    %1631 = vmatprep.mubr.bf16.mxu0 0
    %1632 = vmatmul.mubr.bf16.gmra.mrb[0].mxu0 %v1503
    %v1633 = vpop.f32.mrb[0].mxu0
    %v1634 = vadd.f32 %v1518, %v1633
    %v1635 = vpop.f32.mrb[0].mxu0
    %v1636 = vpop.f32.mrb[0].mxu0
    %v1637 = vadd.f32 %v1518, %v1636
    %v1638 = vpop.f32.mrb[0].mxu0
    %1639 = vmatprep.mubr.bf16.mxu0 0
    %1640 = vmatmul.mubr.bf16.gmra.mrb[0].mxu0 %v1504
    %v1641 = vpop.f32.mrb[0].mxu0
    %v1642 = vadd.f32 %v1518, %v1641
    %v1643 = vpop.f32.mrb[0].mxu0
    %v1644 = vpop.f32.mrb[0].mxu0
    %v1645 = vadd.f32 %v1518, %v1644
    %v1646 = vpop.f32.mrb[0].mxu0
    %1647 = vmatprep.mubr.bf16.mxu0 0
    %1648 = vmatmul.mubr.bf16.gmra.mrb[0].mxu0 %v1505
    %v1649 = vpop.f32.mrb[0].mxu0
    %v1650 = vadd.f32 %v1518, %v1649
    %v1651 = vpop.f32.mrb[0].mxu0
    %v1652 = vpop.f32.mrb[0].mxu0
    %v1653 = vadd.f32 %v1518, %v1652
    %v1654 = vpop.f32.mrb[0].mxu0
    %1655 = vmatprep.mubr.bf16.mxu0 0
    %1656 = vmatmul.mubr.bf16.gmra.mrb[0].mxu0 %v1506
    %v1657 = vpop.f32.mrb[0].mxu0
    %v1658 = vadd.f32 %v1518, %v1657
    %v1659 = vpop.f32.mrb[0].mxu0
    %v1660 = vpop.f32.mrb[0].mxu0
    %v1661 = vadd.f32 %v1518, %v1660
    %v1662 = vpop.f32.mrb[0].mxu0
    %1663 = vmatprep.mubr.bf16.mxu0 0
    %1664 = vmatmul.mubr.bf16.gmra.mrb[0].mxu0 %v1507
    %v1665 = vpop.f32.mrb[0].mxu0
    %v1666 = vadd.f32 %v1518, %v1665
    %v1667 = vpop.f32.mrb[0].mxu0
    %v1668 = vpop.f32.mrb[0].mxu0
    %v1669 = vadd.f32 %v1518, %v1668
    %v1670 = vpop.f32.mrb[0].mxu0
    %1671 = vmatprep.mubr.bf16.mxu0 0
    %1672 = vmatmul.mubr.bf16.gmra.mrb[0].mxu0 %v1508
    %v1673 = vpop.f32.mrb[0].mxu0
    %v1674 = vadd.f32 %v1518, %v1673
    %v1675 = vpop.f32.mrb[0].mxu0
    %v1676 = vpop.f32.mrb[0].mxu0
    %v1677 = vadd.f32 %v1518, %v1676
    %v1678 = vpop.f32.mrb[0].mxu0
    %1679 = vmatprep.mubr.bf16.mxu0 0
    %1680 = vmatmul.mubr.bf16.gmra.mrb[0].mxu0 %v1509
    %v1681 = vpop.f32.mrb[0].mxu0
    %v1682 = vadd.f32 %v1518, %v1681
    %v1683 = vpop.f32.mrb[0].mxu0
    %v1684 = vpop.f32.mrb[0].mxu0
    %v1685 = vadd.f32 %v1518, %v1684
    %v1686 = vpop.f32.mrb[0].mxu0
    %1687 = vmatprep.mubr.bf16.mxu0 0
    %1688 = vmatmul.mubr.bf16.gmra.mrb[0].mxu0 %v1510
    %v1689 = vpop.f32.mrb[0].mxu0
    %v1690 = vadd.f32 %v1518, %v1689
    %v1691 = vpop.f32.mrb[0].mxu0
    %v1692 = vpop.f32.mrb[0].mxu0
    %v1693 = vadd.f32 %v1518, %v1692
    %v1694 = vpop.f32.mrb[0].mxu0
    %1695 = vmatprep.mubr.bf16.mxu0 0
    %1696 = vmatmul.mubr.bf16.gmra.mrb[0].mxu0 %v1511
    %v1697 = vpop.f32.mrb[0].mxu0
    %v1698 = vadd.f32 %v1518, %v1697
    %v1699 = vpop.f32.mrb[0].mxu0
    %v1700 = vpop.f32.mrb[0].mxu0
    %v1701 = vadd.f32 %v1518, %v1700
    %v1702 = vpop.f32.mrb[0].mxu0
    %1703 = vmatprep.mubr.bf16.mxu0 0
    %1704 = vmatmul.mubr.bf16.gmra.mrb[0].mxu0 %v1512
    %v1705 = vpop.f32.mrb[0].mxu0
    %v1706 = vadd.f32 %v1518, %v1705
    %v1707 = vpop.f32.mrb[0].mxu0
    %v1708 = vpop.f32.mrb[0].mxu0
    %v1709 = vadd.f32 %v1518, %v1708
    %v1710 = vpop.f32.mrb[0].mxu0
    %1711 = vmatprep.mubr.bf16.mxu0 0
    %1712 = vmatmul.mubr.bf16.gmra.mrb[0].mxu0 %v1513
    %v1713 = vpop.f32.mrb[0].mxu0
    %v1714 = vadd.f32 %v1518, %v1713
    %v1715 = vpop.f32.mrb[0].mxu0
    %v1716 = vpop.f32.mrb[0].mxu0
    %v1717 = vadd.f32 %v1518, %v1716
    %v1718 = vpop.f32.mrb[0].mxu0
    %1719 = vmatprep.mubr.bf16.mxu0 0
    %1720 = vmatmul.mubr.bf16.gmra.mrb[0].mxu0 %v1514
    %v1721 = vpop.f32.mrb[0].mxu0
    %v1722 = vadd.f32 %v1518, %v1721
    %v1723 = vpop.f32.mrb[0].mxu0
    %v1724 = vpop.f32.mrb[0].mxu0
    %v1725 = vadd.f32 %v1518, %v1724
    %v1726 = vpop.f32.mrb[0].mxu0
    %1727 = vdwg.mxu0
    %1728 = vst [vmem:[#allocation11] sm:$0xff] %v1602
    %1729 = vst [vmem:[#allocation11 + $0x8] sm:$0xff] %v1605
    %1730 = vst [vmem:[#allocation11 + $0x10] sm:$0xff] %v1610
    %1731 = vst [vmem:[#allocation11 + $0x18] sm:$0xff] %v1613
    %1732 = vst [vmem:[#allocation11 + $0x20] sm:$0xff] %v1618
    %1733 = vst [vmem:[#allocation11 + $0x28] sm:$0xff] %v1621
    %1734 = vst [vmem:[#allocation11 + $0x30] sm:$0xff] %v1626
    %1735 = vst [vmem:[#allocation11 + $0x38] sm:$0xff] %v1629
    %1736 = vst [vmem:[#allocation11 + $0x40] sm:$0xff] %v1634
    %1737 = vst [vmem:[#allocation11 + $0x48] sm:$0xff] %v1637
    %1738 = vst [vmem:[#allocation11 + $0x50] sm:$0xff] %v1642
    %1739 = vst [vmem:[#allocation11 + $0x58] sm:$0xff] %v1645
    %1740 = vst [vmem:[#allocation11 + $0x60] sm:$0xff] %v1650
    %1741 = vst [vmem:[#allocation11 + $0x68] sm:$0xff] %v1653
    %1742 = vst [vmem:[#allocation11 + $0x70] sm:$0xff] %v1658
    %1743 = vst [vmem:[#allocation11 + $0x78] sm:$0xff] %v1661
    %1744 = vst [vmem:[#allocation11 + $0x80] sm:$0xff] %v1666
    %1745 = vst [vmem:[#allocation11 + $0x88] sm:$0xff] %v1669
    %1746 = vst [vmem:[#allocation11 + $0x90] sm:$0xff] %v1674
    %1747 = vst [vmem:[#allocation11 + $0x98] sm:$0xff] %v1677
    %1748 = vst [vmem:[#allocation11 + $0xa0] sm:$0xff] %v1682
    %1749 = vst [vmem:[#allocation11 + $0xa8] sm:$0xff] %v1685
    %1750 = vst [vmem:[#allocation11 + $0xb0] sm:$0xff] %v1690
    %1751 = vst [vmem:[#allocation11 + $0xb8] sm:$0xff] %v1693
    %1752 = vst [vmem:[#allocation11 + $0xc0] sm:$0xff] %v1698
    %1753 = vst [vmem:[#allocation11 + $0xc8] sm:$0xff] %v1701
    %1754 = vst [vmem:[#allocation11 + $0xd0] sm:$0xff] %v1706
    %1755 = vst [vmem:[#allocation11 + $0xd8] sm:$0xff] %v1709
    %1756 = vst [vmem:[#allocation11 + $0xe0] sm:$0xff] %v1714
    %1757 = vst [vmem:[#allocation11 + $0xe8] sm:$0xff] %v1717
    %1758 = vst [vmem:[#allocation11 + $0xf0] sm:$0xff] %v1722
    %1759 = vst [vmem:[#allocation11 + $0xf8] sm:$0xff] %v1725
    // Predicated region
    $region46: #{tpu_custom_call.1} parent=1 // pred_check
      _
    $region47: #{tpu_custom_call.1} parent=1 // pred_check_branch
      %1761 = sbr.rel (0) target = $region49
    $region48: #{tpu_custom_call.1} parent=1 // pred_region
      %s1763 = ssub.s32 4096, 4096
      %1764 = vsyncadd [#allocation4], %s1763
      %s1765 = sshll.u32 [#allocation11], 4
      %s1766 = int_to_ptr.vmem [resolvable:$true] %s1765
      %1771 = dma.vmem_to_hbm [thread:$0]  %s1766, 4096, %s6, [#allocation4], 128, 128, 8
    $region49: #{tpu_custom_call.1} parent=1 // pred_fallthru
      _
    // Predicated region
    $region50: #{tpu_custom_call.1} parent=1 // pred_check
      _
    $region51: #{tpu_custom_call.1} parent=1 // pred_check_branch
      %1773 = sbr.rel (0) target = $region53
    $region52: #{tpu_custom_call.1} parent=1 // pred_region
      %1774 = dma.done [#allocation4], 4096
    $region53: #{tpu_custom_call.1} parent=1 // pred_fallthru
      _
    %1775 = vsyncpa [#allocation3], 1
    %1776 = vsyncpa [#allocation6], 1
    %1777 = vsyncpa [#allocation9], 1
    %1778 = vsyncpa [#allocation4], 1

</llo_original>
